<compile_context>
chip_gen: v7x
topology: tpu7x:2x2x1
jax: 0.10.0
libtpu: 0.0.40
codegen_flags: <defaults>
</compile_context>

<pallas_src>
import functools

import jax
import jax.numpy as jnp
import numpy as np
from jax.experimental import pallas as pl
from jax.experimental.pallas import tpu as pltpu

EPS = 1e-5


def _conv_block_kernel(*refs, TH, W, normalize):
    """One (batch, row-strip) tile: [optional fused BN+ReLU of the previous
    layer] -> 3x3 'same' conv as a single im2col matmul -> raw conv output tile
    plus per-tile (sum, sum_sq) channel statistics for the following BN."""
    if normalize:
        (x_ref, top_ref, bot_ref, sc_ref, sh_ref, w_ref, y_ref, st_ref) = refs
    else:
        (x_ref, top_ref, bot_ref, w_ref, y_ref, st_ref) = refs

    C_in = x_ref.shape[-1]
    C_out = w_ref.shape[-1]
    s = pl.program_id(1)
    n_strips = pl.num_programs(1)

    def pre(v):
        # Fused BatchNorm (previous layer, train stats) + ReLU, applied on load.
        if normalize:
            return jnp.maximum(v * sc_ref[...] + sh_ref[...], 0.0)
        return v

    interior = pre(x_ref[0])                                           # (TH, W, C_in)
    # Halo rows: the clamped index maps fetch rows s*TH-1 / s*TH+TH (clamped in
    # range); a 0/1 mask turns the image border into the conv's zero padding.
    top = pre(top_ref[0]) * (s > 0).astype(jnp.float32)                # (1, W, C_in)
    bot = pre(bot_ref[0]) * (s < n_strips - 1).astype(jnp.float32)     # (1, W, C_in)

    body = jnp.concatenate([top, interior, bot], axis=0)               # (TH+2, W, C_in)
    zcol = jnp.zeros((TH + 2, 1, C_in), jnp.float32)
    window = jnp.concatenate([zcol, body, zcol], axis=1)               # (TH+2, W+2, C_in)

    # im2col: fold the 9 taps into the matmul K dimension -> one MXU matmul.
    cols = jnp.concatenate(
        [window[dy:dy + TH, dx:dx + W, :].reshape(TH * W, C_in)
         for dy in range(3) for dx in range(3)],
        axis=1)                                                        # (TH*W, 9*C_in)

    # NOTE(v6e/v7x): casting `cols` and the weight panel to bf16 here (keeping
    # preferred_element_type=f32) halves activation bytes and hits the fast MXU
    # path; kept in f32 for tight parity with the f32 reference.
    acc = jnp.dot(cols, w_ref[...], preferred_element_type=jnp.float32)  # (TH*W, C_out)

    y_ref[...] = acc.reshape(1, TH, W, C_out)
    s1 = jnp.sum(acc, axis=0, keepdims=True)           # one-pass BN statistics
    s2 = jnp.sum(acc * acc, axis=0, keepdims=True)
    st_ref[...] = jnp.concatenate([s1, s2], axis=0).reshape(1, 1, 2, C_out)


def _bn_relu_kernel(x_ref, sc_ref, sh_ref, o_ref):
    # Lane-dense elementwise BN + ReLU: blocks are (rows, W*Cout).
    o_ref[...] = jnp.maximum(x_ref[...] * sc_ref[...] + sh_ref[...], 0.0)


def _conv_stage(x, w_mat, scale, shift, TH):
    """3x3 'same' conv over an NHWC tensor, tiled over (batch, H row-strips).

    If scale/shift are given, the fused BN+ReLU of the previous layer is applied
    to the input (including its halo rows) before the conv.  Returns the raw
    conv output and per-tile (sum, sum_sq) channel statistics.
    """
    N, H, W, C_in = x.shape
    C_out = w_mat.shape[-1]
    S = H // TH
    normalize = scale is not None

    strip_map = lambda n, s: (n, s, 0, 0)
    top_map = lambda n, s: (n, jnp.maximum(s * TH - 1, 0), 0, 0)
    bot_map = lambda n, s: (n, jnp.minimum(s * TH + TH, H - 1), 0, 0)

    in_specs = [
        pl.BlockSpec((1, TH, W, C_in), strip_map),   # row strip (auto-pipelined)
        pl.BlockSpec((1, 1, W, C_in), top_map),      # top halo row
        pl.BlockSpec((1, 1, W, C_in), bot_map),      # bottom halo row
    ]
    args = [x, x, x]
    if normalize:
        in_specs += [pl.BlockSpec((1, C_in), lambda n, s: (0, 0))] * 2
        args += [scale.reshape(1, C_in), shift.reshape(1, C_in)]
    in_specs.append(pl.BlockSpec((9 * C_in, C_out), lambda n, s: (0, 0)))
    args.append(w_mat)

    kernel = functools.partial(_conv_block_kernel, TH=TH, W=W, normalize=normalize)
    y, st = pl.pallas_call(
        kernel,
        grid=(N, S),
        in_specs=in_specs,
        out_specs=(pl.BlockSpec((1, TH, W, C_out), strip_map),
                   pl.BlockSpec((1, 1, 2, C_out), lambda n, s: (n, s, 0, 0))),
        out_shape=(jax.ShapeDtypeStruct((N, H, W, C_out), jnp.float32),
                   jax.ShapeDtypeStruct((N, S, 2, C_out), jnp.float32)),
        compiler_params=pltpu.CompilerParams(
            dimension_semantics=("parallel", "parallel")),
    )(*args)
    return y, st


def _finalize_bn(stats, gamma, beta, count):
    """Reduce per-tile (sum, sum_sq) to the exact global train-mode BN affine."""
    s1 = jnp.sum(stats[:, :, 0, :], axis=(0, 1))
    s2 = jnp.sum(stats[:, :, 1, :], axis=(0, 1))
    mean = s1 / count
    var = jnp.maximum(s2 / count - mean * mean, 0.0)   # biased variance, one pass
    scale = gamma * jax.lax.rsqrt(var + EPS)
    shift = beta - mean * scale
    return scale, shift


@jax.jit
def double_conv(x_nchw, w1, b1, g1, be1, w2, b2, g2, be2):
    """Forward pass of DoubleConv.  x_nchw: (N, Cin, H, W); weights in OIHW."""
    # Conv biases are accepted for parity with the PyTorch module but are
    # exactly cancelled by the train-mode BatchNorm mean subtraction.
    del b1, b2
    N, Cin, H, W = x_nchw.shape
    Cmid = w1.shape[0]
    Cout = w2.shape[0]
    NHW = N * H * W

    # NCHW -> NHWC so channels sit on the lane axis.
    # TODO(synk): fold this boundary transpose into the block DMA itself.
    x = jnp.transpose(x_nchw, (0, 2, 3, 1)).astype(jnp.float32)

    # OIHW -> (kh*kw*Cin, Cout): one weight panel per conv for the im2col matmul.
    w1m = jnp.transpose(w1, (2, 3, 1, 0)).reshape(9 * Cin, Cmid).astype(jnp.float32)
    w2m = jnp.transpose(w2, (2, 3, 1, 0)).reshape(9 * Cmid, Cout).astype(jnp.float32)

    # Row-strip height.  For large UNet feature maps raise it until the
    # double-buffered (TH+2, W, C) tiles approach the VMEM budget (only 64 MiB
    # on v7x; set CompilerParams(vmem_limit_bytes=...) with headroom there).
    TH = 8 if H % 8 == 0 else H

    # Stage 1: conv1 + per-tile BN1 statistics.
    y1, st1 = _conv_stage(x, w1m, None, None, TH)
    scale1, shift1 = _finalize_bn(st1, g1, be1, NHW)

    # Stage 2: fused BN1+ReLU on load, conv2, per-tile BN2 statistics.
    y2, st2 = _conv_stage(y1, w2m, scale1, shift1, TH)
    scale2, shift2 = _finalize_bn(st2, g2, be2, NHW)

    # Stage 3: BN2 + ReLU as a lane-dense elementwise pass over (N*H, W*Cout).
    NH, WC = N * H, W * Cout
    TR = 8 if NH % 8 == 0 else NH
    out_flat = pl.pallas_call(
        _bn_relu_kernel,
        grid=(NH // TR,),
        in_specs=[pl.BlockSpec((TR, WC), lambda r: (r, 0)),
                  pl.BlockSpec((1, WC), lambda r: (0, 0)),
                  pl.BlockSpec((1, WC), lambda r: (0, 0))],
        out_specs=pl.BlockSpec((TR, WC), lambda r: (r, 0)),
        out_shape=jax.ShapeDtypeStruct((NH, WC), jnp.float32),
        compiler_params=pltpu.CompilerParams(dimension_semantics=("parallel",)),
    )(y2.reshape(NH, WC),
      jnp.tile(scale2, W).reshape(1, WC),
      jnp.tile(shift2, W).reshape(1, WC))

    out = out_flat.reshape(N, H, W, Cout)
    return jnp.transpose(out, (0, 3, 1, 2))   # back to NCHW


def _reference(x, w1, b1, g1, be1, w2, b2, g2, be2):
    """Pure-JAX reference mirroring the PyTorch forward (training-mode BN)."""
    def conv(x, w, b):
        y = jax.lax.conv_general_dilated(
            x, w, window_strides=(1, 1), padding=((1, 1), (1, 1)),
            dimension_numbers=('NCHW', 'OIHW', 'NCHW'))
        return y + b[None, :, None, None]

    def bn_relu(x, g, be):
        mean = jnp.mean(x, axis=(0, 2, 3), keepdims=True)
        var = jnp.mean((x - mean) ** 2, axis=(0, 2, 3), keepdims=True)
        y = g[None, :, None, None] * (x - mean) * jax.lax.rsqrt(var + EPS) \
            + be[None, :, None, None]
        return jnp.maximum(y, 0.0)

    h = bn_relu(conv(x, w1, b1), g1, be1)
    return bn_relu(conv(h, w2, b2), g2, be2)


if __name__ == "__main__":
    # Small shapes consistent with DoubleConv(in_channels=4, out_channels=8)
    N, Cin, H, W = 2, 4, 16, 16
    Cmid = Cout = 8

    key = jax.random.PRNGKey(0)
    ks = jax.random.split(key, 9)
    x = jax.random.normal(ks[0], (N, Cin, H, W), jnp.float32)

    # PyTorch-shaped synthetic parameters (OIHW weights, (C,) vectors)
    w1 = jax.random.normal(ks[1], (Cmid, Cin, 3, 3), jnp.float32) * 0.1
    b1 = jax.random.normal(ks[2], (Cmid,), jnp.float32) * 0.1
    g1 = 1.0 + jax.random.normal(ks[3], (Cmid,), jnp.float32) * 0.1
    be1 = jax.random.normal(ks[4], (Cmid,), jnp.float32) * 0.1
    w2 = jax.random.normal(ks[5], (Cout, Cmid, 3, 3), jnp.float32) * 0.1
    b2 = jax.random.normal(ks[6], (Cout,), jnp.float32) * 0.1
    g2 = 1.0 + jax.random.normal(ks[7], (Cout,), jnp.float32) * 0.1
    be2 = jax.random.normal(ks[8], (Cout,), jnp.float32) * 0.1

    out = jax.block_until_ready(double_conv(x, w1, b1, g1, be1, w2, b2, g2, be2))
    ref = jax.block_until_ready(_reference(x, w1, b1, g1, be1, w2, b2, g2, be2))
    np.testing.assert_allclose(np.asarray(out), np.asarray(ref),
                               rtol=1e-3, atol=1e-3)

    print("KERNEL_OK")
</pallas_src>

<mosaic_0001>
module attributes {stable_mosaic.version = 11 : i64} {
  func.func @_conv_block_kernel(%arg0: i32, %arg1: i32, %arg2: memref<1x8x16x4xf32, #tpu.memory_space<vmem>>, %arg3: memref<1x1x16x4xf32, #tpu.memory_space<vmem>>, %arg4: memref<1x1x16x4xf32, #tpu.memory_space<vmem>>, %arg5: memref<36x8xf32, #tpu.memory_space<vmem>>, %arg6: memref<1x8x16x8xf32, #tpu.memory_space<vmem>>, %arg7: memref<1x1x2x8xf32, #tpu.memory_space<vmem>>) attributes {dimension_semantics = [#tpu.dimension_semantics<parallel>, #tpu.dimension_semantics<parallel>], iteration_bounds = array<i64: 2, 2>, scalar_prefetch = 0 : i64, scratch_operands = 0 : i64, tpu.core_type = #tpu.core_type<tc>, window_params = [{transform_indices = @transform_0, window_bounds = array<i64: 1, 8, 16, 4>}, {transform_indices = @transform_1, window_bounds = array<i64: 1, 1, 16, 4>}, {transform_indices = @transform_2, window_bounds = array<i64: 1, 1, 16, 4>}, {pipeline_mode = #tpu.pipeline_mode<synchronous>, transform_indices = @transform_3, window_bounds = array<i64: 36, 8>}, {transform_indices = @transform_4, window_bounds = array<i64: 1, 8, 16, 8>}, {transform_indices = @transform_5, window_bounds = array<i64: 1, 1, 2, 8>}]} {
    %c0 = arith.constant 0 : index
    %c0_0 = arith.constant 0 : index
    %c0_1 = arith.constant 0 : index
    %c0_2 = arith.constant 0 : index
    %0 = vector.load %arg2[%c0, %c0_0, %c0_1, %c0_2] : memref<1x8x16x4xf32, #tpu.memory_space<vmem>>, vector<1x8x16x4xf32>
    %1 = vector.shape_cast %0 : vector<1x8x16x4xf32> to vector<8x16x4xf32>
    %c0_3 = arith.constant 0 : index
    %c0_4 = arith.constant 0 : index
    %c0_5 = arith.constant 0 : index
    %c0_6 = arith.constant 0 : index
    %2 = vector.load %arg3[%c0_3, %c0_4, %c0_5, %c0_6] : memref<1x1x16x4xf32, #tpu.memory_space<vmem>>, vector<1x1x16x4xf32>
    %3 = vector.shape_cast %2 : vector<1x1x16x4xf32> to vector<1x16x4xf32>
    %c0_i32 = arith.constant 0 : i32
    %4 = arith.cmpi sgt, %arg1, %c0_i32 : i32
    %5 = arith.extui %4 : i1 to i32
    %6 = arith.sitofp %5 : i32 to f32
    %7 = vector.broadcast %6 : f32 to vector<1x16x4xf32>
    %8 = arith.mulf %3, %7 : vector<1x16x4xf32>
    %c0_7 = arith.constant 0 : index
    %c0_8 = arith.constant 0 : index
    %c0_9 = arith.constant 0 : index
    %c0_10 = arith.constant 0 : index
    %9 = vector.load %arg4[%c0_7, %c0_8, %c0_9, %c0_10] : memref<1x1x16x4xf32, #tpu.memory_space<vmem>>, vector<1x1x16x4xf32>
    %10 = vector.shape_cast %9 : vector<1x1x16x4xf32> to vector<1x16x4xf32>
    %c1_i32 = arith.constant 1 : i32
    %11 = arith.cmpi slt, %arg1, %c1_i32 : i32
    %12 = arith.extui %11 : i1 to i32
    %13 = arith.sitofp %12 : i32 to f32
    %14 = vector.broadcast %13 : f32 to vector<1x16x4xf32>
    %15 = arith.mulf %10, %14 : vector<1x16x4xf32>
    %16 = tpu.concatenate %8, %1, %15 in 0 : vector<1x16x4xf32>, vector<8x16x4xf32>, vector<1x16x4xf32> -> vector<10x16x4xf32>
    %cst = arith.constant 0.000000e+00 : f32
    %17 = vector.broadcast %cst : f32 to vector<10x1x4xf32>
    %18 = tpu.concatenate %17, %16, %17 in 1 : vector<10x1x4xf32>, vector<10x16x4xf32>, vector<10x1x4xf32> -> vector<10x18x4xf32>
    %19 = vector.extract_strided_slice %18 {offsets = [0, 0, 0], sizes = [8, 16, 4], strides = [1, 1, 1]} : vector<10x18x4xf32> to vector<8x16x4xf32>
    %20 = vector.shape_cast %19 : vector<8x16x4xf32> to vector<128x4xf32>
    %21 = vector.extract_strided_slice %18 {offsets = [0, 1, 0], sizes = [8, 16, 4], strides = [1, 1, 1]} : vector<10x18x4xf32> to vector<8x16x4xf32>
    %22 = vector.shape_cast %21 : vector<8x16x4xf32> to vector<128x4xf32>
    %23 = vector.extract_strided_slice %18 {offsets = [0, 2, 0], sizes = [8, 16, 4], strides = [1, 1, 1]} : vector<10x18x4xf32> to vector<8x16x4xf32>
    %24 = vector.shape_cast %23 : vector<8x16x4xf32> to vector<128x4xf32>
    %25 = vector.extract_strided_slice %18 {offsets = [1, 0, 0], sizes = [8, 16, 4], strides = [1, 1, 1]} : vector<10x18x4xf32> to vector<8x16x4xf32>
    %26 = vector.shape_cast %25 : vector<8x16x4xf32> to vector<128x4xf32>
    %27 = vector.extract_strided_slice %18 {offsets = [1, 1, 0], sizes = [8, 16, 4], strides = [1, 1, 1]} : vector<10x18x4xf32> to vector<8x16x4xf32>
    %28 = vector.shape_cast %27 : vector<8x16x4xf32> to vector<128x4xf32>
    %29 = vector.extract_strided_slice %18 {offsets = [1, 2, 0], sizes = [8, 16, 4], strides = [1, 1, 1]} : vector<10x18x4xf32> to vector<8x16x4xf32>
    %30 = vector.shape_cast %29 : vector<8x16x4xf32> to vector<128x4xf32>
    %31 = vector.extract_strided_slice %18 {offsets = [2, 0, 0], sizes = [8, 16, 4], strides = [1, 1, 1]} : vector<10x18x4xf32> to vector<8x16x4xf32>
    %32 = vector.shape_cast %31 : vector<8x16x4xf32> to vector<128x4xf32>
    %33 = vector.extract_strided_slice %18 {offsets = [2, 1, 0], sizes = [8, 16, 4], strides = [1, 1, 1]} : vector<10x18x4xf32> to vector<8x16x4xf32>
    %34 = vector.shape_cast %33 : vector<8x16x4xf32> to vector<128x4xf32>
    %35 = vector.extract_strided_slice %18 {offsets = [2, 2, 0], sizes = [8, 16, 4], strides = [1, 1, 1]} : vector<10x18x4xf32> to vector<8x16x4xf32>
    %36 = vector.shape_cast %35 : vector<8x16x4xf32> to vector<128x4xf32>
    %37 = tpu.concatenate %20, %22, %24, %26, %28, %30, %32, %34, %36 in 1 : vector<128x4xf32>, vector<128x4xf32>, vector<128x4xf32>, vector<128x4xf32>, vector<128x4xf32>, vector<128x4xf32>, vector<128x4xf32>, vector<128x4xf32>, vector<128x4xf32> -> vector<128x36xf32>
    %c0_11 = arith.constant 0 : index
    %c0_12 = arith.constant 0 : index
    %38 = vector.load %arg5[%c0_11, %c0_12] : memref<36x8xf32, #tpu.memory_space<vmem>>, vector<36x8xf32>
    %cst_13 = arith.constant dense<0.000000e+00> : vector<128x8xf32>
    %39 = tpu.matmul %37, %38, %cst_13 {dimension_numbers = #tpu.dot_dimension_numbers<[1], [0], [0], [1], [0, 0, 1, 1], [], []>} : vector<128x36xf32>, vector<36x8xf32>, vector<128x8xf32> -> vector<128x8xf32>
    %40 = vector.shape_cast %39 : vector<128x8xf32> to vector<1x8x16x8xf32>
    %c0_14 = arith.constant 0 : index
    %c0_15 = arith.constant 0 : index
    %c0_16 = arith.constant 0 : index
    %c0_17 = arith.constant 0 : index
    %41 = vector.load %arg6[%c0_14, %c0_15, %c0_16, %c0_17] : memref<1x8x16x8xf32, #tpu.memory_space<vmem>>, vector<1x8x16x8xf32>
    tpu.vector_store %arg6[%c0_14, %c0_15, %c0_16, %c0_17], %40 {strides = array<i32>} : memref<1x8x16x8xf32, #tpu.memory_space<vmem>>, vector<1x8x16x8xf32>,
    %cst_18 = arith.constant dense<0.000000e+00> : vector<8xf32>
    %42 = vector.multi_reduction <add>, %39, %cst_18 [0] : vector<128x8xf32> to vector<8xf32>
    %43 = vector.shape_cast %42 : vector<8xf32> to vector<1x8xf32>
    %44 = arith.mulf %39, %39 : vector<128x8xf32>
    %cst_19 = arith.constant dense<0.000000e+00> : vector<8xf32>
    %45 = vector.multi_reduction <add>, %44, %cst_19 [0] : vector<128x8xf32> to vector<8xf32>
    %46 = vector.shape_cast %45 : vector<8xf32> to vector<1x8xf32>
    %47 = tpu.concatenate %43, %46 in 0 : vector<1x8xf32>, vector<1x8xf32> -> vector<2x8xf32>
    %48 = vector.shape_cast %47 : vector<2x8xf32> to vector<1x1x2x8xf32>
    %c0_20 = arith.constant 0 : index
    %c0_21 = arith.constant 0 : index
    %c0_22 = arith.constant 0 : index
    %c0_23 = arith.constant 0 : index
    %49 = vector.load %arg7[%c0_20, %c0_21, %c0_22, %c0_23] : memref<1x1x2x8xf32, #tpu.memory_space<vmem>>, vector<1x1x2x8xf32>
    tpu.vector_store %arg7[%c0_20, %c0_21, %c0_22, %c0_23], %48 {strides = array<i32>} : memref<1x1x2x8xf32, #tpu.memory_space<vmem>>, vector<1x1x2x8xf32>,
    return
  }
  func.func @transform_0(%arg0: i32, %arg1: i32) -> (i32, i32, i32, i32) {
    %c0_i32 = arith.constant 0 : i32
    %c0_i32_0 = arith.constant 0 : i32
    %c0_i32_1 = arith.constant 0 : i32
    return %arg0, %arg1, %c0_i32, %c0_i32_0 : i32, i32, i32, i32
  }
  func.func @transform_1(%arg0: i32, %arg1: i32) -> (i32, i32, i32, i32) {
    %c8_i32 = arith.constant 8 : i32
    %0 = arith.muli %arg1, %c8_i32 : i32
    %c1_i32 = arith.constant 1 : i32
    %1 = arith.subi %0, %c1_i32 : i32
    %c0_i32 = arith.constant 0 : i32
    %2 = arith.maxsi %1, %c0_i32 : i32
    %c0_i32_0 = arith.constant 0 : i32
    %c0_i32_1 = arith.constant 0 : i32
    %c0_i32_2 = arith.constant 0 : i32
    return %arg0, %2, %c0_i32_0, %c0_i32_1 : i32, i32, i32, i32
  }
  func.func @transform_2(%arg0: i32, %arg1: i32) -> (i32, i32, i32, i32) {
    %c8_i32 = arith.constant 8 : i32
    %0 = arith.muli %arg1, %c8_i32 : i32
    %c8_i32_0 = arith.constant 8 : i32
    %1 = arith.addi %0, %c8_i32_0 : i32
    %c15_i32 = arith.constant 15 : i32
    %2 = arith.minsi %1, %c15_i32 : i32
    %c0_i32 = arith.constant 0 : i32
    %c0_i32_1 = arith.constant 0 : i32
    %c0_i32_2 = arith.constant 0 : i32
    return %arg0, %2, %c0_i32, %c0_i32_1 : i32, i32, i32, i32
  }
  func.func @transform_3(%arg0: i32, %arg1: i32) -> (i32, i32) {
    %c0_i32 = arith.constant 0 : i32
    %c0_i32_0 = arith.constant 0 : i32
    %c0_i32_1 = arith.constant 0 : i32
    return %c0_i32, %c0_i32_0 : i32, i32
  }
  func.func @transform_4(%arg0: i32, %arg1: i32) -> (i32, i32, i32, i32) {
    %c0_i32 = arith.constant 0 : i32
    %c0_i32_0 = arith.constant 0 : i32
    %c0_i32_1 = arith.constant 0 : i32
    return %arg0, %arg1, %c0_i32, %c0_i32_0 : i32, i32, i32, i32
  }
  func.func @transform_5(%arg0: i32, %arg1: i32) -> (i32, i32, i32, i32) {
    %c0_i32 = arith.constant 0 : i32
    %c0_i32_0 = arith.constant 0 : i32
    %c0_i32_1 = arith.constant 0 : i32
    return %arg0, %arg1, %c0_i32, %c0_i32_0 : i32, i32, i32, i32
  }
}

module attributes {stable_mosaic.version = 11 : i64} {
  func.func @_conv_block_kernel(%arg0: i32, %arg1: i32, %arg2: memref<1x8x16x8xf32, #tpu.memory_space<vmem>>, %arg3: memref<1x1x16x8xf32, #tpu.memory_space<vmem>>, %arg4: memref<1x1x16x8xf32, #tpu.memory_space<vmem>>, %arg5: memref<1x8xf32, #tpu.memory_space<vmem>>, %arg6: memref<1x8xf32, #tpu.memory_space<vmem>>, %arg7: memref<72x8xf32, #tpu.memory_space<vmem>>, %arg8: memref<1x8x16x8xf32, #tpu.memory_space<vmem>>, %arg9: memref<1x1x2x8xf32, #tpu.memory_space<vmem>>) attributes {dimension_semantics = [#tpu.dimension_semantics<parallel>, #tpu.dimension_semantics<parallel>], iteration_bounds = array<i64: 2, 2>, scalar_prefetch = 0 : i64, scratch_operands = 0 : i64, tpu.core_type = #tpu.core_type<tc>, window_params = [{transform_indices = @transform_0, window_bounds = array<i64: 1, 8, 16, 8>}, {transform_indices = @transform_1, window_bounds = array<i64: 1, 1, 16, 8>}, {transform_indices = @transform_2, window_bounds = array<i64: 1, 1, 16, 8>}, {pipeline_mode = #tpu.pipeline_mode<synchronous>, transform_indices = @transform_3, window_bounds = array<i64: 1, 8>}, {pipeline_mode = #tpu.pipeline_mode<synchronous>, transform_indices = @transform_4, window_bounds = array<i64: 1, 8>}, {pipeline_mode = #tpu.pipeline_mode<synchronous>, transform_indices = @transform_5, window_bounds = array<i64: 72, 8>}, {transform_indices = @transform_6, window_bounds = array<i64: 1, 8, 16, 8>}, {transform_indices = @transform_7, window_bounds = array<i64: 1, 1, 2, 8>}]} {
    %c0 = arith.constant 0 : index
    %c0_0 = arith.constant 0 : index
    %c0_1 = arith.constant 0 : index
    %c0_2 = arith.constant 0 : index
    %0 = vector.load %arg2[%c0, %c0_0, %c0_1, %c0_2] : memref<1x8x16x8xf32, #tpu.memory_space<vmem>>, vector<1x8x16x8xf32>
    %1 = vector.shape_cast %0 : vector<1x8x16x8xf32> to vector<8x16x8xf32>
    %c0_3 = arith.constant 0 : index
    %c0_4 = arith.constant 0 : index
    %2 = vector.load %arg5[%c0_3, %c0_4] : memref<1x8xf32, #tpu.memory_space<vmem>>, vector<1x8xf32>
    %3 = vector.shape_cast %2 : vector<1x8xf32> to vector<1x1x8xf32>
    %4 = vector.broadcast %3 : vector<1x1x8xf32> to vector<8x16x8xf32>
    %5 = arith.mulf %1, %4 : vector<8x16x8xf32>
    %c0_5 = arith.constant 0 : index
    %c0_6 = arith.constant 0 : index
    %6 = vector.load %arg6[%c0_5, %c0_6] : memref<1x8xf32, #tpu.memory_space<vmem>>, vector<1x8xf32>
    %7 = vector.shape_cast %6 : vector<1x8xf32> to vector<1x1x8xf32>
    %8 = vector.broadcast %7 : vector<1x1x8xf32> to vector<8x16x8xf32>
    %9 = arith.addf %5, %8 : vector<8x16x8xf32>
    %cst = arith.constant 0.000000e+00 : f32
    %10 = vector.broadcast %cst : f32 to vector<8x16x8xf32>
    %11 = arith.maximumf %9, %10 : vector<8x16x8xf32>
    %c0_7 = arith.constant 0 : index
    %c0_8 = arith.constant 0 : index
    %c0_9 = arith.constant 0 : index
    %c0_10 = arith.constant 0 : index
    %12 = vector.load %arg3[%c0_7, %c0_8, %c0_9, %c0_10] : memref<1x1x16x8xf32, #tpu.memory_space<vmem>>, vector<1x1x16x8xf32>
    %13 = vector.shape_cast %12 : vector<1x1x16x8xf32> to vector<1x16x8xf32>
    %c0_11 = arith.constant 0 : index
    %c0_12 = arith.constant 0 : index
    %14 = vector.load %arg5[%c0_11, %c0_12] : memref<1x8xf32, #tpu.memory_space<vmem>>, vector<1x8xf32>
    %15 = vector.shape_cast %14 : vector<1x8xf32> to vector<1x1x8xf32>
    %16 = vector.broadcast %15 : vector<1x1x8xf32> to vector<1x16x8xf32>
    %17 = arith.mulf %13, %16 : vector<1x16x8xf32>
    %c0_13 = arith.constant 0 : index
    %c0_14 = arith.constant 0 : index
    %18 = vector.load %arg6[%c0_13, %c0_14] : memref<1x8xf32, #tpu.memory_space<vmem>>, vector<1x8xf32>
    %19 = vector.shape_cast %18 : vector<1x8xf32> to vector<1x1x8xf32>
    %20 = vector.broadcast %19 : vector<1x1x8xf32> to vector<1x16x8xf32>
    %21 = arith.addf %17, %20 : vector<1x16x8xf32>
    %cst_15 = arith.constant 0.000000e+00 : f32
    %22 = vector.broadcast %cst_15 : f32 to vector<1x16x8xf32>
    %23 = arith.maximumf %21, %22 : vector<1x16x8xf32>
    %c0_i32 = arith.constant 0 : i32
    %24 = arith.cmpi sgt, %arg1, %c0_i32 : i32
    %25 = arith.extui %24 : i1 to i32
    %26 = arith.sitofp %25 : i32 to f32
    %27 = vector.broadcast %26 : f32 to vector<1x16x8xf32>
    %28 = arith.mulf %23, %27 : vector<1x16x8xf32>
    %c0_16 = arith.constant 0 : index
    %c0_17 = arith.constant 0 : index
    %c0_18 = arith.constant 0 : index
    %c0_19 = arith.constant 0 : index
    %29 = vector.load %arg4[%c0_16, %c0_17, %c0_18, %c0_19] : memref<1x1x16x8xf32, #tpu.memory_space<vmem>>, vector<1x1x16x8xf32>
    %30 = vector.shape_cast %29 : vector<1x1x16x8xf32> to vector<1x16x8xf32>
    %c0_20 = arith.constant 0 : index
    %c0_21 = arith.constant 0 : index
    %31 = vector.load %arg5[%c0_20, %c0_21] : memref<1x8xf32, #tpu.memory_space<vmem>>, vector<1x8xf32>
    %32 = vector.shape_cast %31 : vector<1x8xf32> to vector<1x1x8xf32>
    %33 = vector.broadcast %32 : vector<1x1x8xf32> to vector<1x16x8xf32>
    %34 = arith.mulf %30, %33 : vector<1x16x8xf32>
    %c0_22 = arith.constant 0 : index
    %c0_23 = arith.constant 0 : index
    %35 = vector.load %arg6[%c0_22, %c0_23] : memref<1x8xf32, #tpu.memory_space<vmem>>, vector<1x8xf32>
    %36 = vector.shape_cast %35 : vector<1x8xf32> to vector<1x1x8xf32>
    %37 = vector.broadcast %36 : vector<1x1x8xf32> to vector<1x16x8xf32>
    %38 = arith.addf %34, %37 : vector<1x16x8xf32>
    %cst_24 = arith.constant 0.000000e+00 : f32
    %39 = vector.broadcast %cst_24 : f32 to vector<1x16x8xf32>
    %40 = arith.maximumf %38, %39 : vector<1x16x8xf32>
    %c1_i32 = arith.constant 1 : i32
    %41 = arith.cmpi slt, %arg1, %c1_i32 : i32
    %42 = arith.extui %41 : i1 to i32
    %43 = arith.sitofp %42 : i32 to f32
    %44 = vector.broadcast %43 : f32 to vector<1x16x8xf32>
    %45 = arith.mulf %40, %44 : vector<1x16x8xf32>
    %46 = tpu.concatenate %28, %11, %45 in 0 : vector<1x16x8xf32>, vector<8x16x8xf32>, vector<1x16x8xf32> -> vector<10x16x8xf32>
    %cst_25 = arith.constant 0.000000e+00 : f32
    %47 = vector.broadcast %cst_25 : f32 to vector<10x1x8xf32>
    %48 = tpu.concatenate %47, %46, %47 in 1 : vector<10x1x8xf32>, vector<10x16x8xf32>, vector<10x1x8xf32> -> vector<10x18x8xf32>
    %49 = vector.extract_strided_slice %48 {offsets = [0, 0, 0], sizes = [8, 16, 8], strides = [1, 1, 1]} : vector<10x18x8xf32> to vector<8x16x8xf32>
    %50 = vector.shape_cast %49 : vector<8x16x8xf32> to vector<128x8xf32>
    %51 = vector.extract_strided_slice %48 {offsets = [0, 1, 0], sizes = [8, 16, 8], strides = [1, 1, 1]} : vector<10x18x8xf32> to vector<8x16x8xf32>
    %52 = vector.shape_cast %51 : vector<8x16x8xf32> to vector<128x8xf32>
    %53 = vector.extract_strided_slice %48 {offsets = [0, 2, 0], sizes = [8, 16, 8], strides = [1, 1, 1]} : vector<10x18x8xf32> to vector<8x16x8xf32>
    %54 = vector.shape_cast %53 : vector<8x16x8xf32> to vector<128x8xf32>
    %55 = vector.extract_strided_slice %48 {offsets = [1, 0, 0], sizes = [8, 16, 8], strides = [1, 1, 1]} : vector<10x18x8xf32> to vector<8x16x8xf32>
    %56 = vector.shape_cast %55 : vector<8x16x8xf32> to vector<128x8xf32>
    %57 = vector.extract_strided_slice %48 {offsets = [1, 1, 0], sizes = [8, 16, 8], strides = [1, 1, 1]} : vector<10x18x8xf32> to vector<8x16x8xf32>
    %58 = vector.shape_cast %57 : vector<8x16x8xf32> to vector<128x8xf32>
    %59 = vector.extract_strided_slice %48 {offsets = [1, 2, 0], sizes = [8, 16, 8], strides = [1, 1, 1]} : vector<10x18x8xf32> to vector<8x16x8xf32>
    %60 = vector.shape_cast %59 : vector<8x16x8xf32> to vector<128x8xf32>
    %61 = vector.extract_strided_slice %48 {offsets = [2, 0, 0], sizes = [8, 16, 8], strides = [1, 1, 1]} : vector<10x18x8xf32> to vector<8x16x8xf32>
    %62 = vector.shape_cast %61 : vector<8x16x8xf32> to vector<128x8xf32>
    %63 = vector.extract_strided_slice %48 {offsets = [2, 1, 0], sizes = [8, 16, 8], strides = [1, 1, 1]} : vector<10x18x8xf32> to vector<8x16x8xf32>
    %64 = vector.shape_cast %63 : vector<8x16x8xf32> to vector<128x8xf32>
    %65 = vector.extract_strided_slice %48 {offsets = [2, 2, 0], sizes = [8, 16, 8], strides = [1, 1, 1]} : vector<10x18x8xf32> to vector<8x16x8xf32>
    %66 = vector.shape_cast %65 : vector<8x16x8xf32> to vector<128x8xf32>
    %67 = tpu.concatenate %50, %52, %54, %56, %58, %60, %62, %64, %66 in 1 : vector<128x8xf32>, vector<128x8xf32>, vector<128x8xf32>, vector<128x8xf32>, vector<128x8xf32>, vector<128x8xf32>, vector<128x8xf32>, vector<128x8xf32>, vector<128x8xf32> -> vector<128x72xf32>
    %c0_26 = arith.constant 0 : index
    %c0_27 = arith.constant 0 : index
    %68 = vector.load %arg7[%c0_26, %c0_27] : memref<72x8xf32, #tpu.memory_space<vmem>>, vector<72x8xf32>
    %cst_28 = arith.constant dense<0.000000e+00> : vector<128x8xf32>
    %69 = tpu.matmul %67, %68, %cst_28 {dimension_numbers = #tpu.dot_dimension_numbers<[1], [0], [0], [1], [0, 0, 1, 1], [], []>} : vector<128x72xf32>, vector<72x8xf32>, vector<128x8xf32> -> vector<128x8xf32>
    %70 = vector.shape_cast %69 : vector<128x8xf32> to vector<1x8x16x8xf32>
    %c0_29 = arith.constant 0 : index
    %c0_30 = arith.constant 0 : index
    %c0_31 = arith.constant 0 : index
    %c0_32 = arith.constant 0 : index
    %71 = vector.load %arg8[%c0_29, %c0_30, %c0_31, %c0_32] : memref<1x8x16x8xf32, #tpu.memory_space<vmem>>, vector<1x8x16x8xf32>
    tpu.vector_store %arg8[%c0_29, %c0_30, %c0_31, %c0_32], %70 {strides = array<i32>} : memref<1x8x16x8xf32, #tpu.memory_space<vmem>>, vector<1x8x16x8xf32>,
    %cst_33 = arith.constant dense<0.000000e+00> : vector<8xf32>
    %72 = vector.multi_reduction <add>, %69, %cst_33 [0] : vector<128x8xf32> to vector<8xf32>
    %73 = vector.shape_cast %72 : vector<8xf32> to vector<1x8xf32>
    %74 = arith.mulf %69, %69 : vector<128x8xf32>
    %cst_34 = arith.constant dense<0.000000e+00> : vector<8xf32>
    %75 = vector.multi_reduction <add>, %74, %cst_34 [0] : vector<128x8xf32> to vector<8xf32>
    %76 = vector.shape_cast %75 : vector<8xf32> to vector<1x8xf32>
    %77 = tpu.concatenate %73, %76 in 0 : vector<1x8xf32>, vector<1x8xf32> -> vector<2x8xf32>
    %78 = vector.shape_cast %77 : vector<2x8xf32> to vector<1x1x2x8xf32>
    %c0_35 = arith.constant 0 : index
    %c0_36 = arith.constant 0 : index
    %c0_37 = arith.constant 0 : index
    %c0_38 = arith.constant 0 : index
    %79 = vector.load %arg9[%c0_35, %c0_36, %c0_37, %c0_38] : memref<1x1x2x8xf32, #tpu.memory_space<vmem>>, vector<1x1x2x8xf32>
    tpu.vector_store %arg9[%c0_35, %c0_36, %c0_37, %c0_38], %78 {strides = array<i32>} : memref<1x1x2x8xf32, #tpu.memory_space<vmem>>, vector<1x1x2x8xf32>,
    return
  }
  func.func @transform_0(%arg0: i32, %arg1: i32) -> (i32, i32, i32, i32) {
    %c0_i32 = arith.constant 0 : i32
    %c0_i32_0 = arith.constant 0 : i32
    %c0_i32_1 = arith.constant 0 : i32
    return %arg0, %arg1, %c0_i32, %c0_i32_0 : i32, i32, i32, i32
  }
  func.func @transform_1(%arg0: i32, %arg1: i32) -> (i32, i32, i32, i32) {
    %c8_i32 = arith.constant 8 : i32
    %0 = arith.muli %arg1, %c8_i32 : i32
    %c1_i32 = arith.constant 1 : i32
    %1 = arith.subi %0, %c1_i32 : i32
    %c0_i32 = arith.constant 0 : i32
    %2 = arith.maxsi %1, %c0_i32 : i32
    %c0_i32_0 = arith.constant 0 : i32
    %c0_i32_1 = arith.constant 0 : i32
    %c0_i32_2 = arith.constant 0 : i32
    return %arg0, %2, %c0_i32_0, %c0_i32_1 : i32, i32, i32, i32
  }
  func.func @transform_2(%arg0: i32, %arg1: i32) -> (i32, i32, i32, i32) {
    %c8_i32 = arith.constant 8 : i32
    %0 = arith.muli %arg1, %c8_i32 : i32
    %c8_i32_0 = arith.constant 8 : i32
    %1 = arith.addi %0, %c8_i32_0 : i32
    %c15_i32 = arith.constant 15 : i32
    %2 = arith.minsi %1, %c15_i32 : i32
    %c0_i32 = arith.constant 0 : i32
    %c0_i32_1 = arith.constant 0 : i32
    %c0_i32_2 = arith.constant 0 : i32
    return %arg0, %2, %c0_i32, %c0_i32_1 : i32, i32, i32, i32
  }
  func.func @transform_3(%arg0: i32, %arg1: i32) -> (i32, i32) {
    %c0_i32 = arith.constant 0 : i32
    %c0_i32_0 = arith.constant 0 : i32
    %c0_i32_1 = arith.constant 0 : i32
    return %c0_i32, %c0_i32_0 : i32, i32
  }
  func.func @transform_4(%arg0: i32, %arg1: i32) -> (i32, i32) {
    %c0_i32 = arith.constant 0 : i32
    %c0_i32_0 = arith.constant 0 : i32
    %c0_i32_1 = arith.constant 0 : i32
    return %c0_i32, %c0_i32_0 : i32, i32
  }
  func.func @transform_5(%arg0: i32, %arg1: i32) -> (i32, i32) {
    %c0_i32 = arith.constant 0 : i32
    %c0_i32_0 = arith.constant 0 : i32
    %c0_i32_1 = arith.constant 0 : i32
    return %c0_i32, %c0_i32_0 : i32, i32
  }
  func.func @transform_6(%arg0: i32, %arg1: i32) -> (i32, i32, i32, i32) {
    %c0_i32 = arith.constant 0 : i32
    %c0_i32_0 = arith.constant 0 : i32
    %c0_i32_1 = arith.constant 0 : i32
    return %arg0, %arg1, %c0_i32, %c0_i32_0 : i32, i32, i32, i32
  }
  func.func @transform_7(%arg0: i32, %arg1: i32) -> (i32, i32, i32, i32) {
    %c0_i32 = arith.constant 0 : i32
    %c0_i32_0 = arith.constant 0 : i32
    %c0_i32_1 = arith.constant 0 : i32
    return %arg0, %arg1, %c0_i32, %c0_i32_0 : i32, i32, i32, i32
  }
}

module attributes {stable_mosaic.version = 11 : i64} {
  func.func @_bn_relu_kernel(%arg0: i32, %arg1: memref<8x128xf32, #tpu.memory_space<vmem>>, %arg2: memref<1x128xf32, #tpu.memory_space<vmem>>, %arg3: memref<1x128xf32, #tpu.memory_space<vmem>>, %arg4: memref<8x128xf32, #tpu.memory_space<vmem>>) attributes {dimension_semantics = [#tpu.dimension_semantics<parallel>], iteration_bounds = array<i64: 4>, scalar_prefetch = 0 : i64, scratch_operands = 0 : i64, tpu.core_type = #tpu.core_type<tc>, window_params = [{transform_indices = @transform_0, window_bounds = array<i64: 8, 128>}, {pipeline_mode = #tpu.pipeline_mode<synchronous>, transform_indices = @transform_1, window_bounds = array<i64: 1, 128>}, {pipeline_mode = #tpu.pipeline_mode<synchronous>, transform_indices = @transform_2, window_bounds = array<i64: 1, 128>}, {transform_indices = @transform_3, window_bounds = array<i64: 8, 128>}]} {
    %c0 = arith.constant 0 : index
    %c0_0 = arith.constant 0 : index
    %0 = vector.load %arg1[%c0, %c0_0] : memref<8x128xf32, #tpu.memory_space<vmem>>, vector<8x128xf32>
    %c0_1 = arith.constant 0 : index
    %c0_2 = arith.constant 0 : index
    %1 = vector.load %arg2[%c0_1, %c0_2] : memref<1x128xf32, #tpu.memory_space<vmem>>, vector<1x128xf32>
    %2 = vector.broadcast %1 : vector<1x128xf32> to vector<8x128xf32>
    %3 = arith.mulf %0, %2 : vector<8x128xf32>
    %c0_3 = arith.constant 0 : index
    %c0_4 = arith.constant 0 : index
    %4 = vector.load %arg3[%c0_3, %c0_4] : memref<1x128xf32, #tpu.memory_space<vmem>>, vector<1x128xf32>
    %5 = vector.broadcast %4 : vector<1x128xf32> to vector<8x128xf32>
    %6 = arith.addf %3, %5 : vector<8x128xf32>
    %cst = arith.constant 0.000000e+00 : f32
    %7 = vector.broadcast %cst : f32 to vector<8x128xf32>
    %8 = arith.maximumf %6, %7 : vector<8x128xf32>
    %c0_5 = arith.constant 0 : index
    %c0_6 = arith.constant 0 : index
    %9 = vector.load %arg4[%c0_5, %c0_6] : memref<8x128xf32, #tpu.memory_space<vmem>>, vector<8x128xf32>
    tpu.vector_store %arg4[%c0_5, %c0_6], %8 {strides = array<i32>} : memref<8x128xf32, #tpu.memory_space<vmem>>, vector<8x128xf32>,
    return
  }
  func.func @transform_0(%arg0: i32) -> (i32, i32) {
    %c0_i32 = arith.constant 0 : i32
    %c0_i32_0 = arith.constant 0 : i32
    return %arg0, %c0_i32 : i32, i32
  }
  func.func @transform_1(%arg0: i32) -> (i32, i32) {
    %c0_i32 = arith.constant 0 : i32
    %c0_i32_0 = arith.constant 0 : i32
    %c0_i32_1 = arith.constant 0 : i32
    return %c0_i32, %c0_i32_0 : i32, i32
  }
  func.func @transform_2(%arg0: i32) -> (i32, i32) {
    %c0_i32 = arith.constant 0 : i32
    %c0_i32_0 = arith.constant 0 : i32
    %c0_i32_1 = arith.constant 0 : i32
    return %c0_i32, %c0_i32_0 : i32, i32
  }
  func.func @transform_3(%arg0: i32) -> (i32, i32) {
    %c0_i32 = arith.constant 0 : i32
    %c0_i32_0 = arith.constant 0 : i32
    return %arg0, %c0_i32 : i32, i32
  }
}

</mosaic_0001>

<llo_original>
// kernel: tile.13
$region0: #{tile.13}
  #allocation0 [shape = 's32[1]{0}', space=sflag, size = 0x4, scoped, tag = 'scoped memory for tile.13']
  %s0 = inlined_call_operand.vmem [shape: f32[8], index: 0, kind: input, shape index: {}]
  %s1 = inlined_call_operand.vmem [shape: f32[16,8], index: 1, kind: output, shape index: {}]
  // Predicated region
  $region2: #{tile.13} parent=0 // pred_check
    _
  $region3: #{tile.13} parent=0 // pred_check_branch
    %3 = sbr.rel (0) target = $region5
  $region4: #{tile.13} parent=0 // pred_region
    _
  $region5: #{tile.13} parent=0 // pred_fallthru
    _
  %v4 = vld [vmem:[%s0] ss:$0 sm:$0xff]
  %5 = vst [vmem:[%s1] sm:$0xff] %v4
  %s6 = scalar_lea.vmem %s1, 8
  %7 = vst [vmem:[%s6] sm:$0xff] %v4

// kernel: tile.14
$region0: #{tile.14}
  %s0 = inlined_call_operand.vmem [shape: f32[16,8], index: 0, kind: input, shape index: {}]
  %s1 = inlined_call_operand.vmem [shape: f32[1,128], index: 1, kind: output, shape index: {}]
  $region1: #{tile.14} parent=0
    #allocation0 [shape = 'u8[4096]{0}', space=vmem, size = 0x1000, scoped, tag = 'scoped mem for output reshape']
    %v2 = vld [vmem:[%s0] sm:$0x1]
    %vm3 = vcmask 64512
    %4 = vst.msk [vmem:[#allocation0] sm:$0x1] %vm3, %v2
    %s5 = scalar_lea.vmem %s0, 15
    %v6 = vld [vmem:[%s5] sm:$0x1]
    %7 = vrot.lane.b32.xlu0 %v6, 120
    %v8 = vpop.permute.xlu0 %7
    %vm9 = vcmask 1048512
    %10 = vst.msk [vmem:[#allocation0] sm:$0x1] %vm9, %v8
    %s11 = scalar_lea.vmem %s0, 14
    %v12 = vld [vmem:[%s11] sm:$0x1]
    %13 = vrot.lane.b32.xlu0 %v12, 112
    %v14 = vpop.permute.xlu0 %13
    %vm15 = vcmask 982912
    %16 = vst.msk [vmem:[#allocation0] sm:$0x1] %vm15, %v14
    %s17 = scalar_lea.vmem %s0, 13
    %v18 = vld [vmem:[%s17] sm:$0x1]
    %19 = vrot.lane.b32.xlu0 %v18, 104
    %v20 = vpop.permute.xlu0 %19
    %vm21 = vcmask 917312
    %22 = vst.msk [vmem:[#allocation0] sm:$0x1] %vm21, %v20
    %s23 = scalar_lea.vmem %s0, 12
    %v24 = vld [vmem:[%s23] sm:$0x1]
    %25 = vrot.lane.b32.xlu0 %v24, 96
    %v26 = vpop.permute.xlu0 %25
    %vm27 = vcmask 851712
    %28 = vst.msk [vmem:[#allocation0] sm:$0x1] %vm27, %v26
    %s29 = scalar_lea.vmem %s0, 11
    %v30 = vld [vmem:[%s29] sm:$0x1]
    %31 = vrot.lane.b32.xlu0 %v30, 88
    %v32 = vpop.permute.xlu0 %31
    %vm33 = vcmask 786112
    %34 = vst.msk [vmem:[#allocation0] sm:$0x1] %vm33, %v32
    %s35 = scalar_lea.vmem %s0, 10
    %v36 = vld [vmem:[%s35] sm:$0x1]
    %37 = vrot.lane.b32.xlu0 %v36, 80
    %v38 = vpop.permute.xlu0 %37
    %vm39 = vcmask 720512
    %40 = vst.msk [vmem:[#allocation0] sm:$0x1] %vm39, %v38
    %s41 = scalar_lea.vmem %s0, 9
    %v42 = vld [vmem:[%s41] sm:$0x1]
    %43 = vrot.lane.b32.xlu0 %v42, 72
    %v44 = vpop.permute.xlu0 %43
    %vm45 = vcmask 654912
    %46 = vst.msk [vmem:[#allocation0] sm:$0x1] %vm45, %v44
    %s47 = scalar_lea.vmem %s0, 8
    %v48 = vld [vmem:[%s47] sm:$0x1]
    %49 = vrot.lane.b32.xlu0 %v48, 64
    %v50 = vpop.permute.xlu0 %49
    %vm51 = vcmask 589312
    %52 = vst.msk [vmem:[#allocation0] sm:$0x1] %vm51, %v50
    %s53 = scalar_lea.vmem %s0, 7
    %v54 = vld [vmem:[%s53] sm:$0x1]
    %55 = vrot.lane.b32.xlu0 %v54, 56
    %v56 = vpop.permute.xlu0 %55
    %vm57 = vcmask 523712
    %58 = vst.msk [vmem:[#allocation0] sm:$0x1] %vm57, %v56
    %s59 = scalar_lea.vmem %s0, 6
    %v60 = vld [vmem:[%s59] sm:$0x1]
    %61 = vrot.lane.b32.xlu0 %v60, 48
    %v62 = vpop.permute.xlu0 %61
    %vm63 = vcmask 458112
    %64 = vst.msk [vmem:[#allocation0] sm:$0x1] %vm63, %v62
    %s65 = scalar_lea.vmem %s0, 5
    %v66 = vld [vmem:[%s65] sm:$0x1]
    %67 = vrot.lane.b32.xlu0 %v66, 40
    %v68 = vpop.permute.xlu0 %67
    %vm69 = vcmask 392512
    %70 = vst.msk [vmem:[#allocation0] sm:$0x1] %vm69, %v68
    %s71 = scalar_lea.vmem %s0, 4
    %v72 = vld [vmem:[%s71] sm:$0x1]
    %73 = vrot.lane.b32.xlu0 %v72, 32
    %v74 = vpop.permute.xlu0 %73
    %vm75 = vcmask 326912
    %76 = vst.msk [vmem:[#allocation0] sm:$0x1] %vm75, %v74
    %s77 = scalar_lea.vmem %s0, 3
    %v78 = vld [vmem:[%s77] sm:$0x1]
    %79 = vrot.lane.b32.xlu0 %v78, 24
    %v80 = vpop.permute.xlu0 %79
    %vm81 = vcmask 261312
    %82 = vst.msk [vmem:[#allocation0] sm:$0x1] %vm81, %v80
    %s83 = scalar_lea.vmem %s0, 2
    %v84 = vld [vmem:[%s83] sm:$0x1]
    %85 = vrot.lane.b32.xlu0 %v84, 16
    %v86 = vpop.permute.xlu0 %85
    %vm87 = vcmask 195712
    %88 = vst.msk [vmem:[#allocation0] sm:$0x1] %vm87, %v86
    %s89 = scalar_lea.vmem %s0, 1
    %v90 = vld [vmem:[%s89] sm:$0x1]
    %91 = vrot.lane.b32.xlu0 %v90, 8
    %v92 = vpop.permute.xlu0 %91
    %vm93 = vcmask 130112
    %94 = vst.msk [vmem:[#allocation0] sm:$0x1] %vm93, %v92
    %s96 = sshllo.u32 0, 1
    %v98 = vld [vmem:[#allocation0] sm:%s96]
    %s99 = sshllo.u32 0, 1
    %100 = vst [vmem:[%s1] sm:%s99] %v98

// kernel: double_conv.5
$region0: #{double_conv.5}
  #allocation0 [shape = 'u32[]', space=smem, size = 0x4, offset = 0x4, fixed_abs, tag = 'smem constant byte address 0x4 - core index']
  #allocation1 [shape = 'u32[144,128]{1,0:T(1,128)}', space=vmem, size = 0x12000, scoped, tag = 'internal scratch']
  %s0 = inlined_call_operand.vmem [shape: f32[32,128], index: 0, kind: input, shape index: {}]
  %s1 = inlined_call_operand.vmem [shape: f32[1,128], index: 1, kind: input, shape index: {}]
  %s2 = inlined_call_operand.vmem [shape: f32[1,128], index: 2, kind: input, shape index: {}]
  %s3 = inlined_call_operand.vmem [shape: f32[32,128], index: 3, kind: output, shape index: {}]
  %s4 = sld [smem:[#allocation0]]
  $region45: #{double_conv.5} parent=0
    _
  %s6 = ssub.s32 1, %s4
  %s7 = scalar_select 0, %s6, %s4
  loop: start=0, step=1, limit=6
  $region2: #{double_conv.5} parent=0 // loop_pre_header
    _
  $region3: #{double_conv.5} parent=0 // loop_header
    %s9 = sphi 0, %s13
    %p10 = scmp.ge.s32.totalorder %s9, 6
    %s19 = sphi 0, %s21
    %s22 = sphi 0, %s19
    %s23 = sphi 0, %s22
    %s39 = sphi 0, %s23
    %s43 = sphi 0, %s43
    %s45 = sphi 0, %s43
    %s46 = sphi 0, %s45
    %s60 = sphi 0, %s46
    %s64 = sphi 0, %s64
    %s66 = sphi 0, %s64
    %s67 = sphi 0, %s66
    %s81 = sphi 0, %s67
    %s87 = sphi 0, %s89
    %s90 = sphi 0, %s87
    %s91 = sphi 0, %s90
    %s107 = sphi 0, %s91
  $region4: #{double_conv.5} parent=0 // loop_header_branch
    %12 = sbr.rel (%p10) target = $region8
  $region5: #{double_conv.5} parent=0 // loop_body
    %s14 = ssub.s32 %s9, 1
    %s15 = ssub.s32 %s9, 2
    %s16 = sadd.s32 %s9, 1
    %s17 = ssub.s32 %s9, %s16
    %p18 = scmp.eq.s32.totalorder %s17, 0
    %s20 = sadd.s32 %s19, 1
    %s21 = scalar_select %p18, %s19, %s20
    %p24 = pneg %p18
    %p25 = scmp.eq.s32.totalorder %s9, 3
    %p26 = por %p24, %p25
    %p27 = scmp.ne.s32.totalorder %s19, %s22
    %p28 = scmp.eq.s32.totalorder %s9, 0
    %p29 = por %p27, %p28
    %p30 = scmp.ne.s32.totalorder %s19, %s22
    %p31 = scmp.eq.s32.totalorder %s14, 3
    %p32 = por %p30, %p31
    %p33 = scmp.ne.s32.totalorder %s22, %s23
    %p34 = scmp.eq.s32.totalorder %s14, 0
    %p35 = por %p33, %p34
    %p36 = scmp.ne.s32.totalorder %s22, %s23
    %p37 = scmp.eq.s32.totalorder %s15, 3
    %p38 = por %p36, %p37
    %p40 = scmp.ne.s32.totalorder %s23, %s39
    %p41 = scmp.eq.s32.totalorder %s15, 0
    %p42 = por %p40, %p41
    %s44 = sadd.s32 %s43, 1
    %p47 = scmp.eq.s32.totalorder %s9, 3
    %p48 = scmp.ne.s32.totalorder %s43, %s45
    %p49 = scmp.eq.s32.totalorder %s9, 0
    %p50 = por %p48, %p49
    %p51 = scmp.ne.s32.totalorder %s43, %s45
    %p52 = scmp.eq.s32.totalorder %s14, 3
    %p53 = por %p51, %p52
    %p54 = scmp.ne.s32.totalorder %s45, %s46
    %p55 = scmp.eq.s32.totalorder %s14, 0
    %p56 = por %p54, %p55
    %p57 = scmp.ne.s32.totalorder %s45, %s46
    %p58 = scmp.eq.s32.totalorder %s15, 3
    %p59 = por %p57, %p58
    %p61 = scmp.ne.s32.totalorder %s46, %s60
    %p62 = scmp.eq.s32.totalorder %s15, 0
    %p63 = por %p61, %p62
    %s65 = sadd.s32 %s64, 1
    %p68 = scmp.eq.s32.totalorder %s9, 3
    %p69 = scmp.ne.s32.totalorder %s64, %s66
    %p70 = scmp.eq.s32.totalorder %s9, 0
    %p71 = por %p69, %p70
    %p72 = scmp.ne.s32.totalorder %s64, %s66
    %p73 = scmp.eq.s32.totalorder %s14, 3
    %p74 = por %p72, %p73
    %p75 = scmp.ne.s32.totalorder %s66, %s67
    %p76 = scmp.eq.s32.totalorder %s14, 0
    %p77 = por %p75, %p76
    %p78 = scmp.ne.s32.totalorder %s66, %s67
    %p79 = scmp.eq.s32.totalorder %s15, 3
    %p80 = por %p78, %p79
    %p82 = scmp.ne.s32.totalorder %s67, %s81
    %p83 = scmp.eq.s32.totalorder %s15, 0
    %p84 = por %p82, %p83
    %s85 = ssub.s32 %s9, %s16
    %p86 = scmp.eq.s32.totalorder %s85, 0
    %s88 = sadd.s32 %s87, 1
    %s89 = scalar_select %p86, %s87, %s88
    %p92 = pneg %p86
    %p93 = scmp.eq.s32.totalorder %s9, 3
    %p94 = por %p92, %p93
    %p95 = scmp.ne.s32.totalorder %s87, %s90
    %p96 = scmp.eq.s32.totalorder %s9, 0
    %p97 = por %p95, %p96
    %p98 = scmp.ne.s32.totalorder %s87, %s90
    %p99 = scmp.eq.s32.totalorder %s14, 3
    %p100 = por %p98, %p99
    %p101 = scmp.ne.s32.totalorder %s90, %s91
    %p102 = scmp.eq.s32.totalorder %s14, 0
    %p103 = por %p101, %p102
    %p104 = scmp.ne.s32.totalorder %s90, %s91
    %p105 = scmp.eq.s32.totalorder %s15, 3
    %p106 = por %p104, %p105
    %p108 = scmp.ne.s32.totalorder %s91, %s107
    %p109 = scmp.eq.s32.totalorder %s15, 0
    %p110 = por %p108, %p109
    %p111 = scmp.le.s32.totalorder 1, %s9
    %p112 = scmp.lt.s32.totalorder %s9, 5
    %p113 = pnand %p111, %p112
    %p114 = pneg %p113
    // Predicated region
    $region9: #{double_conv.5} parent=5 // pred_check
      _
    $region10: #{double_conv.5} parent=5 // pred_check_branch
      %116 = sbr.rel (%p113) target = $region12
    $region11: #{double_conv.5} parent=5 // pred_region
      %s117 = ssub.s32 %s9, 1
      // Predicated region
      $region13: #{double_conv.5} parent=11 // pred_check
        %p118 = pneg %p56
      $region14: #{double_conv.5} parent=11 // pred_check_branch
        %120 = sbr.rel (%p118) target = $region16
      $region15: #{double_conv.5} parent=11 // pred_region
        _
      $region16: #{double_conv.5} parent=11 // pred_fallthru
        _
      // Predicated region
      $region17: #{double_conv.5} parent=11 // pred_check
        %p121 = pneg %p77
      $region18: #{double_conv.5} parent=11 // pred_check_branch
        %123 = sbr.rel (%p121) target = $region20
      $region19: #{double_conv.5} parent=11 // pred_region
        _
      $region20: #{double_conv.5} parent=11 // pred_fallthru
        _
    $region12: #{double_conv.5} parent=5 // pred_fallthru
      _
    %p124 = scmp.lt.s32.totalorder %s9, 4
    // Predicated region
    $region21: #{double_conv.5} parent=5 // pred_check
      %p125 = pneg %p124
    $region22: #{double_conv.5} parent=5 // pred_check_branch
      %127 = sbr.rel (%p125) target = $region24
    $region23: #{double_conv.5} parent=5 // pred_region
      // Predicated region
      $region25: #{double_conv.5} parent=23 // pred_check
        %p128 = pneg %p29
      $region26: #{double_conv.5} parent=23 // pred_check_branch
        %130 = sbr.rel (%p128) target = $region28
      $region27: #{double_conv.5} parent=23 // pred_region
        %p131 = scmp.lt.s32.totalorder %s9, 3
        %s132 = scalar_select %p131, %s9, 3
        %s133 = smul.addr %s132, 8
        %s134 = scalar_lea.vmem %s0, %s133
      $region28: #{double_conv.5} parent=23 // pred_fallthru
        _
    $region24: #{double_conv.5} parent=5 // pred_fallthru
      _
    %p135 = scmp.le.s32.totalorder 1, %s9
    %p136 = scmp.lt.s32.totalorder %s9, 5
    %p137 = pnand %p135, %p136
    %p138 = pneg %p137
    // Predicated region
    $region29: #{double_conv.5} parent=5 // pred_check
      _
    $region30: #{double_conv.5} parent=5 // pred_check_branch
      %140 = sbr.rel (%p137) target = $region32
    $region31: #{double_conv.5} parent=5 // pred_region
      %s141 = ssub.s32 %s9, 1
      %p142 = scmp.lt.s32.totalorder %s14, 3
      %s143 = scalar_select %p142, %s14, 3
      %s144 = smul.addr %s143, 8
      %s145 = scalar_lea.vmem %s0, %s144
      %p146 = pneg %p35
      %p147 = pneg %p32
      %p148 = pneg %p56
      %p149 = pneg %p53
      %p150 = pneg %p77
      %p151 = pneg %p74
      %p152 = pneg %p103
      %p153 = pneg %p100
      %p154 = scmp.lt.s32.totalorder %s14, 3
      %s155 = scalar_select %p154, %s14, 3
      %s156 = smul.addr %s155, 8
      %s157 = scalar_lea.vmem %s3, %s156
      %p158 = scmp.lt.s32.totalorder %s14, 3
      %s159 = scalar_select %p158, %s14, 3
      %s160 = smul.addr %s159, 8
      %s161 = scalar_lea.vmem %s0, %s160
      %p162 = scmp.lt.s32.totalorder %s14, 3
      %s163 = scalar_select %p162, %s14, 3
      %s164 = smul.addr %s163, 8
      %s165 = scalar_lea.vmem %s3, %s164
      %v166 = vld [vmem:[%s161] sm:$0xff]
      %v167 = vld [vmem:[%s1] sm:$0x1]
      %v169 = vlaneseq
      %v170 = vshrl.u32 %v169, 7
      %v171 = vsub.s32 0, %v170
      %v172 = vrot.slane %v167, %v171
      %v174 = vmul.f32 %v166, %v172
      %v175 = vld [vmem:[%s2] sm:$0x1]
      %v177 = vlaneseq
      %v178 = vshrl.u32 %v177, 7
      %v179 = vsub.s32 0, %v178
      %v180 = vrot.slane %v175, %v179
      %v182 = vadd.f32 %v174, %v180
      %v183 = vmax.f32 %v182, 0.0
      %184 = vst [vmem:[%s165] sm:$0xff] %v183
      %p185 = scmp.lt.s32.totalorder %s14, 3
      %s186 = scalar_select %p185, %s14, 3
      %s187 = smul.addr %s186, 8
      %s188 = scalar_lea.vmem %s3, %s187
      // Predicated region
      $region33: #{double_conv.5} parent=31 // pred_check
        %p189 = pneg %p100
      $region34: #{double_conv.5} parent=31 // pred_check_branch
        %191 = sbr.rel (%p189) target = $region36
      $region35: #{double_conv.5} parent=31 // pred_region
        _
      $region36: #{double_conv.5} parent=31 // pred_fallthru
        _
    $region32: #{double_conv.5} parent=5 // pred_fallthru
      _
    %p192 = scmp.le.s32.totalorder 2, %s9
    // Predicated region
    $region37: #{double_conv.5} parent=5 // pred_check
      %p193 = pneg %p192
    $region38: #{double_conv.5} parent=5 // pred_check_branch
      %195 = sbr.rel (%p193) target = $region40
    $region39: #{double_conv.5} parent=5 // pred_region
      %s196 = ssub.s32 %s9, 2
      // Predicated region
      $region41: #{double_conv.5} parent=39 // pred_check
        %p197 = pneg %p106
      $region42: #{double_conv.5} parent=39 // pred_check_branch
        %199 = sbr.rel (%p197) target = $region44
      $region43: #{double_conv.5} parent=39 // pred_region
        %p200 = scmp.lt.s32.totalorder %s15, 3
        %s201 = scalar_select %p200, %s15, 3
        %s202 = smul.addr %s201, 8
        %s203 = scalar_lea.vmem %s3, %s202
      $region44: #{double_conv.5} parent=39 // pred_fallthru
        _
    $region40: #{double_conv.5} parent=5 // pred_fallthru
      _
  $region6: #{double_conv.5} parent=0 // loop_footer
    %s13 = sadd.s32 1, %s9
  $region7: #{double_conv.5} parent=0 // loop_footer_branch
    %8 = sbr.rel target = $region3
  $region8: #{double_conv.5} parent=0 // loop_exit
    _

// kernel: double_conv.3
$region0: #{double_conv.3}
  #allocation0 [shape = 'u32[]', space=smem, size = 0x4, offset = 0x4, fixed_abs, tag = 'smem constant byte address 0x4 - core index']
  #allocation1 [shape = 'u32[144,128]{1,0:T(1,128)}', space=vmem, size = 0x12000, scoped, tag = 'internal scratch']
  %s0 = inlined_call_operand.vmem [shape: f32[2,16,16,4], index: 0, kind: input, shape index: {}, may-alias: {0,1,2}]
  %s1 = inlined_call_operand.vmem [shape: f32[2,16,16,4], index: 1, kind: input, shape index: {}, may-alias: {0,1,2}]
  %s2 = inlined_call_operand.vmem [shape: f32[2,16,16,4], index: 2, kind: input, shape index: {}, may-alias: {0,1,2}]
  %s3 = inlined_call_operand.vmem [shape: f32[36,8], index: 3, kind: input, shape index: {}]
  %s4 = inlined_call_operand.vmem [shape: f32[2,16,16,8], index: 4, kind: output, shape index: {0}]
  %s5 = inlined_call_operand.vmem [shape: f32[2,2,2,8], index: 5, kind: output, shape index: {1}]
  %6 = xla_tuple %s4, %s5
  %s7 = sld [smem:[#allocation0]]
  $region57: #{double_conv.3} parent=0
    _
  %s9 = ssub.s32 1, %s7
  %s10 = scalar_select 0, %s9, %s7
  loop: start=0, step=1, limit=6
  $region2: #{double_conv.3} parent=0 // loop_pre_header
    _
  $region3: #{double_conv.3} parent=0 // loop_header
    %s12 = sphi 0, %s16
    %p13 = scmp.ge.s32.totalorder %s12, 6
    %s19 = sphi 0, %s31
    %s20 = sphi 0, %s27
    %s21 = sphi 0, %s19
    %s22 = sphi 0, %s20
    %s23 = sphi 0, %s21
    %s24 = sphi 0, %s22
    %s36 = sphi 0, %s38
    %s39 = sphi 0, %s36
    %s40 = sphi 0, %s39
    %s56 = sphi 0, %s40
    %s72 = sphi 0, %s74
    %s75 = sphi 0, %s72
    %s76 = sphi 0, %s75
    %s92 = sphi 0, %s76
    %s108 = sphi 0, %s110
    %s111 = sphi 0, %s108
    %s112 = sphi 0, %s111
    %s128 = sphi 0, %s112
    %s132 = sphi 0, %s132
    %s134 = sphi 0, %s132
    %s135 = sphi 0, %s134
    %s149 = sphi 0, %s135
    %s157 = sphi 0, %s159
    %s160 = sphi 0, %s157
    %s161 = sphi 0, %s160
    %s177 = sphi 0, %s161
    %s185 = sphi 0, %s187
    %s188 = sphi 0, %s185
    %s189 = sphi 0, %s188
    %s205 = sphi 0, %s189
  $region4: #{double_conv.3} parent=0 // loop_header_branch
    %15 = sbr.rel (%p13) target = $region8
  $region5: #{double_conv.3} parent=0 // loop_body
    %s17 = ssub.s32 %s12, 1
    %s18 = ssub.s32 %s12, 2
    %s25 = sadd.s32 1, %s20
    %p26 = scmp.ge.s32.totalorder %s25, 2
    %s27 = scalar_select %p26, 0, %s25
    %s28 = sadd.s32 1, %s19
    %s29 = scalar_select %p26, %s28, %s19
    %p30 = scmp.ge.s32.totalorder %s29, 2
    %s31 = scalar_select %p30, 0, %s29
    %s32 = ssub.s32 %s19, %s31
    %s33 = ssub.s32 %s20, %s27
    %s34 = sor.u32 %s32, %s33
    %p35 = scmp.eq.s32.totalorder %s34, 0
    %s37 = sadd.s32 %s36, 1
    %s38 = scalar_select %p35, %s36, %s37
    %p41 = pneg %p35
    %p42 = scmp.eq.s32.totalorder %s12, 3
    %p43 = por %p41, %p42
    %p44 = scmp.ne.s32.totalorder %s36, %s39
    %p45 = scmp.eq.s32.totalorder %s12, 0
    %p46 = por %p44, %p45
    %p47 = scmp.ne.s32.totalorder %s36, %s39
    %p48 = scmp.eq.s32.totalorder %s17, 3
    %p49 = por %p47, %p48
    %p50 = scmp.ne.s32.totalorder %s39, %s40
    %p51 = scmp.eq.s32.totalorder %s17, 0
    %p52 = por %p50, %p51
    %p53 = scmp.ne.s32.totalorder %s39, %s40
    %p54 = scmp.eq.s32.totalorder %s18, 3
    %p55 = por %p53, %p54
    %p57 = scmp.ne.s32.totalorder %s40, %s56
    %p58 = scmp.eq.s32.totalorder %s18, 0
    %p59 = por %p57, %p58
    %s60 = smul.u32 %s20, 8
    %s61 = ssub.s32 %s60, 1
    %p62 = scmp.gt.s32.totalorder %s61, 0
    %s63 = scalar_select %p62, %s61, 0
    %s64 = smul.u32 %s27, 8
    %s65 = ssub.s32 %s64, 1
    %p66 = scmp.gt.s32.totalorder %s65, 0
    %s67 = scalar_select %p66, %s65, 0
    %s68 = ssub.s32 %s19, %s31
    %s69 = ssub.s32 %s63, %s67
    %s70 = sor.u32 %s68, %s69
    %p71 = scmp.eq.s32.totalorder %s70, 0
    %s73 = sadd.s32 %s72, 1
    %s74 = scalar_select %p71, %s72, %s73
    %p77 = pneg %p71
    %p78 = scmp.eq.s32.totalorder %s12, 3
    %p79 = por %p77, %p78
    %p80 = scmp.ne.s32.totalorder %s72, %s75
    %p81 = scmp.eq.s32.totalorder %s12, 0
    %p82 = por %p80, %p81
    %p83 = scmp.ne.s32.totalorder %s72, %s75
    %p84 = scmp.eq.s32.totalorder %s17, 3
    %p85 = por %p83, %p84
    %p86 = scmp.ne.s32.totalorder %s75, %s76
    %p87 = scmp.eq.s32.totalorder %s17, 0
    %p88 = por %p86, %p87
    %p89 = scmp.ne.s32.totalorder %s75, %s76
    %p90 = scmp.eq.s32.totalorder %s18, 3
    %p91 = por %p89, %p90
    %p93 = scmp.ne.s32.totalorder %s76, %s92
    %p94 = scmp.eq.s32.totalorder %s18, 0
    %p95 = por %p93, %p94
    %s96 = smul.u32 %s20, 8
    %s97 = sadd.s32 %s96, 8
    %p98 = scmp.lt.s32.totalorder %s97, 15
    %s99 = scalar_select %p98, %s97, 15
    %s100 = smul.u32 %s27, 8
    %s101 = sadd.s32 %s100, 8
    %p102 = scmp.lt.s32.totalorder %s101, 15
    %s103 = scalar_select %p102, %s101, 15
    %s104 = ssub.s32 %s19, %s31
    %s105 = ssub.s32 %s99, %s103
    %s106 = sor.u32 %s104, %s105
    %p107 = scmp.eq.s32.totalorder %s106, 0
    %s109 = sadd.s32 %s108, 1
    %s110 = scalar_select %p107, %s108, %s109
    %p113 = pneg %p107
    %p114 = scmp.eq.s32.totalorder %s12, 3
    %p115 = por %p113, %p114
    %p116 = scmp.ne.s32.totalorder %s108, %s111
    %p117 = scmp.eq.s32.totalorder %s12, 0
    %p118 = por %p116, %p117
    %p119 = scmp.ne.s32.totalorder %s108, %s111
    %p120 = scmp.eq.s32.totalorder %s17, 3
    %p121 = por %p119, %p120
    %p122 = scmp.ne.s32.totalorder %s111, %s112
    %p123 = scmp.eq.s32.totalorder %s17, 0
    %p124 = por %p122, %p123
    %p125 = scmp.ne.s32.totalorder %s111, %s112
    %p126 = scmp.eq.s32.totalorder %s18, 3
    %p127 = por %p125, %p126
    %p129 = scmp.ne.s32.totalorder %s112, %s128
    %p130 = scmp.eq.s32.totalorder %s18, 0
    %p131 = por %p129, %p130
    %s133 = sadd.s32 %s132, 1
    %p136 = scmp.eq.s32.totalorder %s12, 3
    %p137 = scmp.ne.s32.totalorder %s132, %s134
    %p138 = scmp.eq.s32.totalorder %s12, 0
    %p139 = por %p137, %p138
    %p140 = scmp.ne.s32.totalorder %s132, %s134
    %p141 = scmp.eq.s32.totalorder %s17, 3
    %p142 = por %p140, %p141
    %p143 = scmp.ne.s32.totalorder %s134, %s135
    %p144 = scmp.eq.s32.totalorder %s17, 0
    %p145 = por %p143, %p144
    %p146 = scmp.ne.s32.totalorder %s134, %s135
    %p147 = scmp.eq.s32.totalorder %s18, 3
    %p148 = por %p146, %p147
    %p150 = scmp.ne.s32.totalorder %s135, %s149
    %p151 = scmp.eq.s32.totalorder %s18, 0
    %p152 = por %p150, %p151
    %s153 = ssub.s32 %s19, %s31
    %s154 = ssub.s32 %s20, %s27
    %s155 = sor.u32 %s153, %s154
    %p156 = scmp.eq.s32.totalorder %s155, 0
    %s158 = sadd.s32 %s157, 1
    %s159 = scalar_select %p156, %s157, %s158
    %p162 = pneg %p156
    %p163 = scmp.eq.s32.totalorder %s12, 3
    %p164 = por %p162, %p163
    %p165 = scmp.ne.s32.totalorder %s157, %s160
    %p166 = scmp.eq.s32.totalorder %s12, 0
    %p167 = por %p165, %p166
    %p168 = scmp.ne.s32.totalorder %s157, %s160
    %p169 = scmp.eq.s32.totalorder %s17, 3
    %p170 = por %p168, %p169
    %p171 = scmp.ne.s32.totalorder %s160, %s161
    %p172 = scmp.eq.s32.totalorder %s17, 0
    %p173 = por %p171, %p172
    %p174 = scmp.ne.s32.totalorder %s160, %s161
    %p175 = scmp.eq.s32.totalorder %s18, 3
    %p176 = por %p174, %p175
    %p178 = scmp.ne.s32.totalorder %s161, %s177
    %p179 = scmp.eq.s32.totalorder %s18, 0
    %p180 = por %p178, %p179
    %s181 = ssub.s32 %s19, %s31
    %s182 = ssub.s32 %s20, %s27
    %s183 = sor.u32 %s181, %s182
    %p184 = scmp.eq.s32.totalorder %s183, 0
    %s186 = sadd.s32 %s185, 1
    %s187 = scalar_select %p184, %s185, %s186
    %p190 = pneg %p184
    %p191 = scmp.eq.s32.totalorder %s12, 3
    %p192 = por %p190, %p191
    %p193 = scmp.ne.s32.totalorder %s185, %s188
    %p194 = scmp.eq.s32.totalorder %s12, 0
    %p195 = por %p193, %p194
    %p196 = scmp.ne.s32.totalorder %s185, %s188
    %p197 = scmp.eq.s32.totalorder %s17, 3
    %p198 = por %p196, %p197
    %p199 = scmp.ne.s32.totalorder %s188, %s189
    %p200 = scmp.eq.s32.totalorder %s17, 0
    %p201 = por %p199, %p200
    %p202 = scmp.ne.s32.totalorder %s188, %s189
    %p203 = scmp.eq.s32.totalorder %s18, 3
    %p204 = por %p202, %p203
    %p206 = scmp.ne.s32.totalorder %s189, %s205
    %p207 = scmp.eq.s32.totalorder %s18, 0
    %p208 = por %p206, %p207
    %p209 = scmp.le.s32.totalorder 1, %s12
    %p210 = scmp.lt.s32.totalorder %s12, 5
    %p211 = pnand %p209, %p210
    %p212 = pneg %p211
    // Predicated region
    $region9: #{double_conv.3} parent=5 // pred_check
      _
    $region10: #{double_conv.3} parent=5 // pred_check_branch
      %214 = sbr.rel (%p211) target = $region12
    $region11: #{double_conv.3} parent=5 // pred_region
      %s215 = ssub.s32 %s12, 1
      // Predicated region
      $region13: #{double_conv.3} parent=11 // pred_check
        %p216 = pneg %p145
      $region14: #{double_conv.3} parent=11 // pred_check_branch
        %218 = sbr.rel (%p216) target = $region16
      $region15: #{double_conv.3} parent=11 // pred_region
        _
      $region16: #{double_conv.3} parent=11 // pred_fallthru
        _
    $region12: #{double_conv.3} parent=5 // pred_fallthru
      _
    %p219 = scmp.lt.s32.totalorder %s12, 4
    // Predicated region
    $region17: #{double_conv.3} parent=5 // pred_check
      %p220 = pneg %p219
    $region18: #{double_conv.3} parent=5 // pred_check_branch
      %222 = sbr.rel (%p220) target = $region20
    $region19: #{double_conv.3} parent=5 // pred_region
      // Predicated region
      $region21: #{double_conv.3} parent=19 // pred_check
        %p223 = pneg %p46
      $region22: #{double_conv.3} parent=19 // pred_check_branch
        %225 = sbr.rel (%p223) target = $region24
      $region23: #{double_conv.3} parent=19 // pred_region
        %s226 = smul.u32 8, %s20
        %p227 = scmp.lt.s32.totalorder %s19, 1
        %s228 = scalar_select %p227, %s19, 1
        %p229 = scmp.lt.s32.totalorder %s226, 15
        %s230 = scalar_select %p229, %s226, 15
        %s231 = smul.addr %s230, 2
        %s232 = smul.addr %s228, 32
        %s233 = sadd.s32 %s231, %s232
        %s234 = smul.addr %s233, 8
        %s235 = scalar_lea.vmem %s0, %s234
        %s236 = smul.u32 8, %s20
      $region24: #{double_conv.3} parent=19 // pred_fallthru
        _
      // Predicated region
      $region25: #{double_conv.3} parent=19 // pred_check
        %p237 = pneg %p82
      $region26: #{double_conv.3} parent=19 // pred_check_branch
        %239 = sbr.rel (%p237) target = $region28
      $region27: #{double_conv.3} parent=19 // pred_region
        %s240 = smul.u32 %s20, 8
        %s241 = ssub.s32 %s240, 1
        %p242 = scmp.gt.s32.totalorder %s241, 0
        %s243 = scalar_select %p242, %s241, 0
        %p244 = scmp.lt.s32.totalorder %s19, 1
        %s245 = scalar_select %p244, %s19, 1
        %p246 = scmp.lt.s32.totalorder %s243, 15
        %s247 = scalar_select %p246, %s243, 15
        %s248 = smul.addr %s247, 2
        %s249 = smul.addr %s245, 32
        %s250 = sadd.s32 %s248, %s249
        %s251 = smul.addr %s250, 8
        %s252 = scalar_lea.vmem %s1, %s251
        %s253 = smul.u32 %s20, 8
        %s254 = ssub.s32 %s253, 1
        %p255 = scmp.gt.s32.totalorder %s254, 0
        %s256 = scalar_select %p255, %s254, 0
      $region28: #{double_conv.3} parent=19 // pred_fallthru
        _
      // Predicated region
      $region29: #{double_conv.3} parent=19 // pred_check
        %p257 = pneg %p118
      $region30: #{double_conv.3} parent=19 // pred_check_branch
        %259 = sbr.rel (%p257) target = $region32
      $region31: #{double_conv.3} parent=19 // pred_region
        %s260 = smul.u32 %s20, 8
        %s261 = sadd.s32 %s260, 8
        %p262 = scmp.lt.s32.totalorder %s261, 15
        %s263 = scalar_select %p262, %s261, 15
        %p264 = scmp.lt.s32.totalorder %s19, 1
        %s265 = scalar_select %p264, %s19, 1
        %p266 = scmp.lt.s32.totalorder %s263, 15
        %s267 = scalar_select %p266, %s263, 15
        %s268 = smul.addr %s267, 2
        %s269 = smul.addr %s265, 32
        %s270 = sadd.s32 %s268, %s269
        %s271 = smul.addr %s270, 8
        %s272 = scalar_lea.vmem %s2, %s271
        %s273 = smul.u32 %s20, 8
        %s274 = sadd.s32 %s273, 8
        %p275 = scmp.lt.s32.totalorder %s274, 15
        %s276 = scalar_select %p275, %s274, 15
      $region32: #{double_conv.3} parent=19 // pred_fallthru
        _
    $region20: #{double_conv.3} parent=5 // pred_fallthru
      _
    %p277 = scmp.le.s32.totalorder 1, %s12
    %p278 = scmp.lt.s32.totalorder %s12, 5
    %p279 = pnand %p277, %p278
    %p280 = pneg %p279
    // Predicated region
    $region33: #{double_conv.3} parent=5 // pred_check
      _
    $region34: #{double_conv.3} parent=5 // pred_check_branch
      %282 = sbr.rel (%p279) target = $region36
    $region35: #{double_conv.3} parent=5 // pred_region
      %s283 = ssub.s32 %s12, 1
      %s284 = smul.u32 8, %s22
      %p285 = scmp.lt.s32.totalorder %s21, 1
      %s286 = scalar_select %p285, %s21, 1
      %p287 = scmp.lt.s32.totalorder %s284, 15
      %s288 = scalar_select %p287, %s284, 15
      %s289 = smul.addr %s288, 2
      %s290 = smul.addr %s286, 32
      %s291 = sadd.s32 %s289, %s290
      %s292 = smul.addr %s291, 8
      %s293 = scalar_lea.vmem %s0, %s292
      %p294 = pneg %p52
      %p295 = pneg %p49
      %s296 = smul.u32 %s22, 8
      %s297 = ssub.s32 %s296, 1
      %p298 = scmp.gt.s32.totalorder %s297, 0
      %s299 = scalar_select %p298, %s297, 0
      %p300 = scmp.lt.s32.totalorder %s21, 1
      %s301 = scalar_select %p300, %s21, 1
      %p302 = scmp.lt.s32.totalorder %s299, 15
      %s303 = scalar_select %p302, %s299, 15
      %s304 = smul.addr %s303, 2
      %s305 = smul.addr %s301, 32
      %s306 = sadd.s32 %s304, %s305
      %s307 = smul.addr %s306, 8
      %s308 = scalar_lea.vmem %s1, %s307
      %p309 = pneg %p88
      %p310 = pneg %p85
      %s311 = smul.u32 %s22, 8
      %s312 = sadd.s32 %s311, 8
      %p313 = scmp.lt.s32.totalorder %s312, 15
      %s314 = scalar_select %p313, %s312, 15
      %p315 = scmp.lt.s32.totalorder %s21, 1
      %s316 = scalar_select %p315, %s21, 1
      %p317 = scmp.lt.s32.totalorder %s314, 15
      %s318 = scalar_select %p317, %s314, 15
      %s319 = smul.addr %s318, 2
      %s320 = smul.addr %s316, 32
      %s321 = sadd.s32 %s319, %s320
      %s322 = smul.addr %s321, 8
      %s323 = scalar_lea.vmem %s2, %s322
      %p324 = pneg %p124
      %p325 = pneg %p121
      %p326 = pneg %p145
      %p327 = pneg %p142
      %p328 = pneg %p173
      %p329 = pneg %p170
      %s330 = smul.u32 8, %s22
      %p331 = scmp.lt.s32.totalorder %s21, 1
      %s332 = scalar_select %p331, %s21, 1
      %p333 = scmp.lt.s32.totalorder %s330, 15
      %s334 = scalar_select %p333, %s330, 15
      %s335 = smul.addr %s334, 2
      %s336 = smul.addr %s332, 32
      %s337 = sadd.s32 %s335, %s336
      %s338 = smul.addr %s337, 8
      %s339 = scalar_lea.vmem %s4, %s338
      %p340 = pneg %p201
      %p341 = pneg %p198
      %p342 = scmp.lt.s32.totalorder %s21, 1
      %s343 = scalar_select %p342, %s21, 1
      %p344 = scmp.lt.s32.totalorder %s22, 1
      %s345 = scalar_select %p344, %s22, 1
      %s346 = smul.addr %s343, 2
      %s347 = sadd.s32 %s345, %s346
      %s348 = smul.addr %s347, 2
      %s349 = scalar_lea.vmem %s5, %s348
      %s350 = smul.u32 8, %s22
      %p351 = scmp.lt.s32.totalorder %s21, 1
      %s352 = scalar_select %p351, %s21, 1
      %p353 = scmp.lt.s32.totalorder %s350, 15
      %s354 = scalar_select %p353, %s350, 15
      %s355 = smul.addr %s354, 2
      %s356 = smul.addr %s352, 32
      %s357 = sadd.s32 %s355, %s356
      %s358 = smul.addr %s357, 8
      %s359 = scalar_lea.vmem %s0, %s358
      %s360 = smul.u32 8, %s22
      %s361 = smul.u32 %s22, 8
      %s362 = ssub.s32 %s361, 1
      %p363 = scmp.gt.s32.totalorder %s362, 0
      %s364 = scalar_select %p363, %s362, 0
      %p365 = scmp.lt.s32.totalorder %s21, 1
      %s366 = scalar_select %p365, %s21, 1
      %p367 = scmp.lt.s32.totalorder %s364, 15
      %s368 = scalar_select %p367, %s364, 15
      %s369 = smul.addr %s368, 2
      %s370 = smul.addr %s366, 32
      %s371 = sadd.s32 %s369, %s370
      %s372 = smul.addr %s371, 8
      %s373 = scalar_lea.vmem %s1, %s372
      %s374 = smul.u32 %s22, 8
      %s375 = ssub.s32 %s374, 1
      %p376 = scmp.gt.s32.totalorder %s375, 0
      %s377 = scalar_select %p376, %s375, 0
      %s378 = smul.u32 %s22, 8
      %s379 = sadd.s32 %s378, 8
      %p380 = scmp.lt.s32.totalorder %s379, 15
      %s381 = scalar_select %p380, %s379, 15
      %p382 = scmp.lt.s32.totalorder %s21, 1
      %s383 = scalar_select %p382, %s21, 1
      %p384 = scmp.lt.s32.totalorder %s381, 15
      %s385 = scalar_select %p384, %s381, 15
      %s386 = smul.addr %s385, 2
      %s387 = smul.addr %s383, 32
      %s388 = sadd.s32 %s386, %s387
      %s389 = smul.addr %s388, 8
      %s390 = scalar_lea.vmem %s2, %s389
      %s391 = smul.u32 %s22, 8
      %s392 = sadd.s32 %s391, 8
      %p393 = scmp.lt.s32.totalorder %s392, 15
      %s394 = scalar_select %p393, %s392, 15
      %s395 = smul.u32 8, %s22
      %p396 = scmp.lt.s32.totalorder %s21, 1
      %s397 = scalar_select %p396, %s21, 1
      %p398 = scmp.lt.s32.totalorder %s395, 15
      %s399 = scalar_select %p398, %s395, 15
      %s400 = smul.addr %s399, 2
      %s401 = smul.addr %s397, 32
      %s402 = sadd.s32 %s400, %s401
      %s403 = smul.addr %s402, 8
      %s404 = scalar_lea.vmem %s4, %s403
      %s405 = smul.u32 8, %s22
      %p406 = scmp.lt.s32.totalorder %s21, 1
      %s407 = scalar_select %p406, %s21, 1
      %p408 = scmp.lt.s32.totalorder %s22, 1
      %s409 = scalar_select %p408, %s22, 1
      %s410 = smul.addr %s407, 2
      %s411 = sadd.s32 %s409, %s410
      %s412 = smul.addr %s411, 2
      %s413 = scalar_lea.vmem %s5, %s412
      %v414 = vld [vmem:[%s359] sm:$0xff]
      %v415 = vld [vmem:[%s359 + $0x8] sm:$0xff]
      %v416 = vld [vmem:[%s359 + $0x10] sm:$0xff]
      %v417 = vld [vmem:[%s359 + $0x18] sm:$0xff]
      %v418 = vld [vmem:[%s359 + $0x20] sm:$0xff]
      %v419 = vld [vmem:[%s359 + $0x28] sm:$0xff]
      %v420 = vld [vmem:[%s359 + $0x30] sm:$0xff]
      %v421 = vld [vmem:[%s359 + $0x38] sm:$0xff]
      %v422 = vld [vmem:[%s359 + $0x40] sm:$0xff]
      %v423 = vld [vmem:[%s359 + $0x48] sm:$0xff]
      %v424 = vld [vmem:[%s359 + $0x50] sm:$0xff]
      %v425 = vld [vmem:[%s359 + $0x58] sm:$0xff]
      %v426 = vld [vmem:[%s359 + $0x60] sm:$0xff]
      %v427 = vld [vmem:[%s359 + $0x68] sm:$0xff]
      %v428 = vld [vmem:[%s359 + $0x70] sm:$0xff]
      %v429 = vld [vmem:[%s359 + $0x78] sm:$0xff]
      %v430 = vld [vmem:[%s373] sm:$0xff]
      %v431 = vld [vmem:[%s373 + $0x8] sm:$0xff]
      %p432 = scmp.gt.s32.totalorder %s22, 0
      %s433 = scalar_select %p432, 1, 0
      %s434 = scvt.s32.f32 %s433
      %v435 = vstv %s434
      %v436 = vmul.f32 %v430, %v435
      %v437 = vmul.f32 %v431, %v435
      %v438 = vld [vmem:[%s390] sm:$0xff]
      %v439 = vld [vmem:[%s390 + $0x8] sm:$0xff]
      %p440 = scmp.lt.s32.totalorder %s22, 1
      %s441 = scalar_select %p440, 1, 0
      %s442 = scvt.s32.f32 %s441
      %v443 = vstv %s442
      %v444 = vmul.f32 %v438, %v443
      %v445 = vmul.f32 %v439, %v443
      %vm466 = vcmask 1040384
      %v467 = vrot.slane %v436, 7
      %v468 = vrot.slane %v437, 7
      %v469 = vsel %vm466, %v467, %v468
      %v470 = vrot.slane %v414, 7
      %v471 = vrot.slane %v415, 7
      %v472 = vsel %vm466, %v470, %v471
      %v473 = vrot.slane %v416, 7
      %v474 = vrot.slane %v417, 7
      %v475 = vsel %vm466, %v473, %v474
      %v476 = vrot.slane %v418, 7
      %v477 = vrot.slane %v419, 7
      %v478 = vsel %vm466, %v476, %v477
      %v479 = vrot.slane %v420, 7
      %v480 = vrot.slane %v421, 7
      %v481 = vsel %vm466, %v479, %v480
      %v482 = vrot.slane %v422, 7
      %v483 = vrot.slane %v423, 7
      %v484 = vsel %vm466, %v482, %v483
      %v485 = vrot.slane %v424, 7
      %v486 = vrot.slane %v425, 7
      %v487 = vsel %vm466, %v485, %v486
      %v488 = vrot.slane %v426, 7
      %v489 = vrot.slane %v427, 7
      %v490 = vsel %vm466, %v488, %v489
      %v491 = vrot.slane %v428, 7
      %v492 = vrot.slane %v429, 7
      %v493 = vsel %vm466, %v491, %v492
      %v494 = vrot.slane %v444, 7
      %v495 = vrot.slane %v445, 7
      %v496 = vsel %vm466, %v494, %v495
      %v525 = vsel %vm466, 0.0, %v467
      %v526 = vsel %vm466, 0.0, %v470
      %v527 = vsel %vm466, 0.0, %v473
      %v528 = vsel %vm466, 0.0, %v476
      %v529 = vsel %vm466, 0.0, %v479
      %v530 = vsel %vm466, 0.0, %v482
      %v531 = vsel %vm466, 0.0, %v485
      %v532 = vsel %vm466, 0.0, %v488
      %v533 = vsel %vm466, 0.0, %v491
      %v534 = vsel %vm466, 0.0, %v494
      %v535 = vsel %vm466, %v468, 0.0
      %v536 = vsel %vm466, %v471, 0.0
      %v537 = vsel %vm466, %v474, 0.0
      %v538 = vsel %vm466, %v477, 0.0
      %v539 = vsel %vm466, %v480, 0.0
      %v540 = vsel %vm466, %v483, 0.0
      %v541 = vsel %vm466, %v486, 0.0
      %v542 = vsel %vm466, %v489, 0.0
      %v543 = vsel %vm466, %v492, 0.0
      %v544 = vsel %vm466, %v495, 0.0
      %vm561 = vcmask 1046528
      %v562 = vrot.slane %v525, 1
      %v563 = vrot.slane %v469, 1
      %v564 = vsel %vm561, %v562, %v563
      %v565 = vrot.slane %v535, 1
      %v566 = vsel %vm561, %v563, %v565
      %v567 = vrot.slane %v526, 1
      %v568 = vrot.slane %v472, 1
      %v569 = vsel %vm561, %v567, %v568
      %v570 = vrot.slane %v536, 1
      %v571 = vsel %vm561, %v568, %v570
      %v572 = vrot.slane %v527, 1
      %v573 = vrot.slane %v475, 1
      %v574 = vsel %vm561, %v572, %v573
      %v575 = vrot.slane %v537, 1
      %v576 = vsel %vm561, %v573, %v575
      %v577 = vrot.slane %v528, 1
      %v578 = vrot.slane %v478, 1
      %v579 = vsel %vm561, %v577, %v578
      %v580 = vrot.slane %v538, 1
      %v581 = vsel %vm561, %v578, %v580
      %v582 = vrot.slane %v529, 1
      %v583 = vrot.slane %v481, 1
      %v584 = vsel %vm561, %v582, %v583
      %v585 = vrot.slane %v539, 1
      %v586 = vsel %vm561, %v583, %v585
      %v587 = vrot.slane %v530, 1
      %v588 = vrot.slane %v484, 1
      %v589 = vsel %vm561, %v587, %v588
      %v590 = vrot.slane %v540, 1
      %v591 = vsel %vm561, %v588, %v590
      %v592 = vrot.slane %v531, 1
      %v593 = vrot.slane %v487, 1
      %v594 = vsel %vm561, %v592, %v593
      %v595 = vrot.slane %v541, 1
      %v596 = vsel %vm561, %v593, %v595
      %v597 = vrot.slane %v532, 1
      %v598 = vrot.slane %v490, 1
      %v599 = vsel %vm561, %v597, %v598
      %v600 = vrot.slane %v542, 1
      %v601 = vsel %vm561, %v598, %v600
      %vm602 = vcmask 1045504
      %v603 = vrot.slane %v525, 2
      %v604 = vrot.slane %v469, 2
      %v605 = vsel %vm602, %v603, %v604
      %v606 = vrot.slane %v535, 2
      %v607 = vsel %vm602, %v604, %v606
      %v608 = vrot.slane %v526, 2
      %v609 = vrot.slane %v472, 2
      %v610 = vsel %vm602, %v608, %v609
      %v611 = vrot.slane %v536, 2
      %v612 = vsel %vm602, %v609, %v611
      %v613 = vrot.slane %v527, 2
      %v614 = vrot.slane %v475, 2
      %v615 = vsel %vm602, %v613, %v614
      %v616 = vrot.slane %v537, 2
      %v617 = vsel %vm602, %v614, %v616
      %v618 = vrot.slane %v528, 2
      %v619 = vrot.slane %v478, 2
      %v620 = vsel %vm602, %v618, %v619
      %v621 = vrot.slane %v538, 2
      %v622 = vsel %vm602, %v619, %v621
      %v623 = vrot.slane %v529, 2
      %v624 = vrot.slane %v481, 2
      %v625 = vsel %vm602, %v623, %v624
      %v626 = vrot.slane %v539, 2
      %v627 = vsel %vm602, %v624, %v626
      %v628 = vrot.slane %v530, 2
      %v629 = vrot.slane %v484, 2
      %v630 = vsel %vm602, %v628, %v629
      %v631 = vrot.slane %v540, 2
      %v632 = vsel %vm602, %v629, %v631
      %v633 = vrot.slane %v531, 2
      %v634 = vrot.slane %v487, 2
      %v635 = vsel %vm602, %v633, %v634
      %v636 = vrot.slane %v541, 2
      %v637 = vsel %vm602, %v634, %v636
      %v638 = vrot.slane %v532, 2
      %v639 = vrot.slane %v490, 2
      %v640 = vsel %vm602, %v638, %v639
      %v641 = vrot.slane %v542, 2
      %v642 = vsel %vm602, %v639, %v641
      %v645 = vrot.slane %v533, 1
      %v646 = vrot.slane %v493, 1
      %v647 = vsel %vm561, %v645, %v646
      %v648 = vrot.slane %v543, 1
      %v649 = vsel %vm561, %v646, %v648
      %v650 = vrot.slane %v533, 2
      %v651 = vrot.slane %v493, 2
      %v652 = vsel %vm602, %v650, %v651
      %v653 = vrot.slane %v543, 2
      %v654 = vsel %vm602, %v651, %v653
      %v657 = vrot.slane %v534, 1
      %v658 = vrot.slane %v496, 1
      %v659 = vsel %vm561, %v657, %v658
      %v660 = vrot.slane %v544, 1
      %v661 = vsel %vm561, %v658, %v660
      %v662 = vrot.slane %v534, 2
      %v663 = vrot.slane %v496, 2
      %v664 = vsel %vm602, %v662, %v663
      %v665 = vrot.slane %v544, 2
      %v666 = vsel %vm602, %v663, %v665
      %667 = vrot.lane.b32.xlu0 %v564, 4
      %v668 = vpop.permute.xlu0 %667
      %669 = vrot.lane.b32.xlu0 %v566, 4
      %v670 = vpop.permute.xlu0 %669
      %671 = vrot.lane.b32.xlu0 %v569, 4
      %v672 = vpop.permute.xlu0 %671
      %673 = vrot.lane.b32.xlu0 %v571, 4
      %v674 = vpop.permute.xlu0 %673
      %675 = vrot.lane.b32.xlu0 %v574, 4
      %v676 = vpop.permute.xlu0 %675
      %677 = vrot.lane.b32.xlu0 %v576, 4
      %v678 = vpop.permute.xlu0 %677
      %679 = vrot.lane.b32.xlu0 %v579, 4
      %v680 = vpop.permute.xlu0 %679
      %681 = vrot.lane.b32.xlu0 %v581, 4
      %v682 = vpop.permute.xlu0 %681
      %683 = vrot.lane.b32.xlu0 %v584, 4
      %v684 = vpop.permute.xlu0 %683
      %685 = vrot.lane.b32.xlu0 %v586, 4
      %v686 = vpop.permute.xlu0 %685
      %687 = vrot.lane.b32.xlu0 %v589, 4
      %v688 = vpop.permute.xlu0 %687
      %689 = vrot.lane.b32.xlu0 %v591, 4
      %v690 = vpop.permute.xlu0 %689
      %691 = vrot.lane.b32.xlu0 %v594, 4
      %v692 = vpop.permute.xlu0 %691
      %693 = vrot.lane.b32.xlu0 %v596, 4
      %v694 = vpop.permute.xlu0 %693
      %695 = vrot.lane.b32.xlu0 %v599, 4
      %v696 = vpop.permute.xlu0 %695
      %697 = vrot.lane.b32.xlu0 %v601, 4
      %v698 = vpop.permute.xlu0 %697
      %715 = vrot.lane.b32.xlu0 %v605, 8
      %v716 = vpop.permute.xlu0 %715
      %717 = vrot.lane.b32.xlu0 %v607, 8
      %v718 = vpop.permute.xlu0 %717
      %719 = vrot.lane.b32.xlu0 %v610, 8
      %v720 = vpop.permute.xlu0 %719
      %721 = vrot.lane.b32.xlu0 %v612, 8
      %v722 = vpop.permute.xlu0 %721
      %723 = vrot.lane.b32.xlu0 %v615, 8
      %v724 = vpop.permute.xlu0 %723
      %725 = vrot.lane.b32.xlu0 %v617, 8
      %v726 = vpop.permute.xlu0 %725
      %727 = vrot.lane.b32.xlu0 %v620, 8
      %v728 = vpop.permute.xlu0 %727
      %729 = vrot.lane.b32.xlu0 %v622, 8
      %v730 = vpop.permute.xlu0 %729
      %731 = vrot.lane.b32.xlu0 %v625, 8
      %v732 = vpop.permute.xlu0 %731
      %733 = vrot.lane.b32.xlu0 %v627, 8
      %v734 = vpop.permute.xlu0 %733
      %735 = vrot.lane.b32.xlu0 %v630, 8
      %v736 = vpop.permute.xlu0 %735
      %737 = vrot.lane.b32.xlu0 %v632, 8
      %v738 = vpop.permute.xlu0 %737
      %739 = vrot.lane.b32.xlu0 %v635, 8
      %v740 = vpop.permute.xlu0 %739
      %741 = vrot.lane.b32.xlu0 %v637, 8
      %v742 = vpop.permute.xlu0 %741
      %743 = vrot.lane.b32.xlu0 %v640, 8
      %v744 = vpop.permute.xlu0 %743
      %745 = vrot.lane.b32.xlu0 %v642, 8
      %v746 = vpop.permute.xlu0 %745
      %763 = vrot.lane.b32.xlu0 %v526, 12
      %v764 = vpop.permute.xlu0 %763
      %765 = vrot.lane.b32.xlu0 %v472, 12
      %v766 = vpop.permute.xlu0 %765
      %767 = vrot.lane.b32.xlu0 %v527, 12
      %v768 = vpop.permute.xlu0 %767
      %769 = vrot.lane.b32.xlu0 %v475, 12
      %v770 = vpop.permute.xlu0 %769
      %771 = vrot.lane.b32.xlu0 %v528, 12
      %v772 = vpop.permute.xlu0 %771
      %773 = vrot.lane.b32.xlu0 %v478, 12
      %v774 = vpop.permute.xlu0 %773
      %775 = vrot.lane.b32.xlu0 %v529, 12
      %v776 = vpop.permute.xlu0 %775
      %777 = vrot.lane.b32.xlu0 %v481, 12
      %v778 = vpop.permute.xlu0 %777
      %779 = vrot.lane.b32.xlu0 %v530, 12
      %v780 = vpop.permute.xlu0 %779
      %781 = vrot.lane.b32.xlu0 %v484, 12
      %v782 = vpop.permute.xlu0 %781
      %783 = vrot.lane.b32.xlu0 %v531, 12
      %v784 = vpop.permute.xlu0 %783
      %785 = vrot.lane.b32.xlu0 %v487, 12
      %v786 = vpop.permute.xlu0 %785
      %787 = vrot.lane.b32.xlu0 %v532, 12
      %v788 = vpop.permute.xlu0 %787
      %789 = vrot.lane.b32.xlu0 %v490, 12
      %v790 = vpop.permute.xlu0 %789
      %791 = vrot.lane.b32.xlu0 %v533, 12
      %v792 = vpop.permute.xlu0 %791
      %793 = vrot.lane.b32.xlu0 %v493, 12
      %v794 = vpop.permute.xlu0 %793
      %811 = vrot.lane.b32.xlu0 %v569, 16
      %v812 = vpop.permute.xlu0 %811
      %813 = vrot.lane.b32.xlu0 %v571, 16
      %v814 = vpop.permute.xlu0 %813
      %815 = vrot.lane.b32.xlu0 %v574, 16
      %v816 = vpop.permute.xlu0 %815
      %817 = vrot.lane.b32.xlu0 %v576, 16
      %v818 = vpop.permute.xlu0 %817
      %819 = vrot.lane.b32.xlu0 %v579, 16
      %v820 = vpop.permute.xlu0 %819
      %821 = vrot.lane.b32.xlu0 %v581, 16
      %v822 = vpop.permute.xlu0 %821
      %823 = vrot.lane.b32.xlu0 %v584, 16
      %v824 = vpop.permute.xlu0 %823
      %825 = vrot.lane.b32.xlu0 %v586, 16
      %v826 = vpop.permute.xlu0 %825
      %827 = vrot.lane.b32.xlu0 %v589, 16
      %v828 = vpop.permute.xlu0 %827
      %829 = vrot.lane.b32.xlu0 %v591, 16
      %v830 = vpop.permute.xlu0 %829
      %831 = vrot.lane.b32.xlu0 %v594, 16
      %v832 = vpop.permute.xlu0 %831
      %833 = vrot.lane.b32.xlu0 %v596, 16
      %v834 = vpop.permute.xlu0 %833
      %835 = vrot.lane.b32.xlu0 %v599, 16
      %v836 = vpop.permute.xlu0 %835
      %837 = vrot.lane.b32.xlu0 %v601, 16
      %v838 = vpop.permute.xlu0 %837
      %839 = vrot.lane.b32.xlu0 %v647, 16
      %v840 = vpop.permute.xlu0 %839
      %841 = vrot.lane.b32.xlu0 %v649, 16
      %v842 = vpop.permute.xlu0 %841
      %859 = vrot.lane.b32.xlu0 %v610, 20
      %v860 = vpop.permute.xlu0 %859
      %861 = vrot.lane.b32.xlu0 %v612, 20
      %v862 = vpop.permute.xlu0 %861
      %863 = vrot.lane.b32.xlu0 %v615, 20
      %v864 = vpop.permute.xlu0 %863
      %865 = vrot.lane.b32.xlu0 %v617, 20
      %v866 = vpop.permute.xlu0 %865
      %867 = vrot.lane.b32.xlu0 %v620, 20
      %v868 = vpop.permute.xlu0 %867
      %869 = vrot.lane.b32.xlu0 %v622, 20
      %v870 = vpop.permute.xlu0 %869
      %871 = vrot.lane.b32.xlu0 %v625, 20
      %v872 = vpop.permute.xlu0 %871
      %873 = vrot.lane.b32.xlu0 %v627, 20
      %v874 = vpop.permute.xlu0 %873
      %875 = vrot.lane.b32.xlu0 %v630, 20
      %v876 = vpop.permute.xlu0 %875
      %877 = vrot.lane.b32.xlu0 %v632, 20
      %v878 = vpop.permute.xlu0 %877
      %879 = vrot.lane.b32.xlu0 %v635, 20
      %v880 = vpop.permute.xlu0 %879
      %881 = vrot.lane.b32.xlu0 %v637, 20
      %v882 = vpop.permute.xlu0 %881
      %883 = vrot.lane.b32.xlu0 %v640, 20
      %v884 = vpop.permute.xlu0 %883
      %885 = vrot.lane.b32.xlu0 %v642, 20
      %v886 = vpop.permute.xlu0 %885
      %887 = vrot.lane.b32.xlu0 %v652, 20
      %v888 = vpop.permute.xlu0 %887
      %889 = vrot.lane.b32.xlu0 %v654, 20
      %v890 = vpop.permute.xlu0 %889
      %907 = vrot.lane.b32.xlu0 %v527, 24
      %v908 = vpop.permute.xlu0 %907
      %909 = vrot.lane.b32.xlu0 %v475, 24
      %v910 = vpop.permute.xlu0 %909
      %911 = vrot.lane.b32.xlu0 %v528, 24
      %v912 = vpop.permute.xlu0 %911
      %913 = vrot.lane.b32.xlu0 %v478, 24
      %v914 = vpop.permute.xlu0 %913
      %915 = vrot.lane.b32.xlu0 %v529, 24
      %v916 = vpop.permute.xlu0 %915
      %917 = vrot.lane.b32.xlu0 %v481, 24
      %v918 = vpop.permute.xlu0 %917
      %919 = vrot.lane.b32.xlu0 %v530, 24
      %v920 = vpop.permute.xlu0 %919
      %921 = vrot.lane.b32.xlu0 %v484, 24
      %v922 = vpop.permute.xlu0 %921
      %923 = vrot.lane.b32.xlu0 %v531, 24
      %v924 = vpop.permute.xlu0 %923
      %925 = vrot.lane.b32.xlu0 %v487, 24
      %v926 = vpop.permute.xlu0 %925
      %927 = vrot.lane.b32.xlu0 %v532, 24
      %v928 = vpop.permute.xlu0 %927
      %929 = vrot.lane.b32.xlu0 %v490, 24
      %v930 = vpop.permute.xlu0 %929
      %931 = vrot.lane.b32.xlu0 %v533, 24
      %v932 = vpop.permute.xlu0 %931
      %933 = vrot.lane.b32.xlu0 %v493, 24
      %v934 = vpop.permute.xlu0 %933
      %935 = vrot.lane.b32.xlu0 %v534, 24
      %v936 = vpop.permute.xlu0 %935
      %937 = vrot.lane.b32.xlu0 %v496, 24
      %v938 = vpop.permute.xlu0 %937
      %955 = vrot.lane.b32.xlu0 %v574, 28
      %v956 = vpop.permute.xlu0 %955
      %957 = vrot.lane.b32.xlu0 %v576, 28
      %v958 = vpop.permute.xlu0 %957
      %959 = vrot.lane.b32.xlu0 %v579, 28
      %v960 = vpop.permute.xlu0 %959
      %961 = vrot.lane.b32.xlu0 %v581, 28
      %v962 = vpop.permute.xlu0 %961
      %963 = vrot.lane.b32.xlu0 %v584, 28
      %v964 = vpop.permute.xlu0 %963
      %965 = vrot.lane.b32.xlu0 %v586, 28
      %v966 = vpop.permute.xlu0 %965
      %967 = vrot.lane.b32.xlu0 %v589, 28
      %v968 = vpop.permute.xlu0 %967
      %969 = vrot.lane.b32.xlu0 %v591, 28
      %v970 = vpop.permute.xlu0 %969
      %971 = vrot.lane.b32.xlu0 %v594, 28
      %v972 = vpop.permute.xlu0 %971
      %973 = vrot.lane.b32.xlu0 %v596, 28
      %v974 = vpop.permute.xlu0 %973
      %975 = vrot.lane.b32.xlu0 %v599, 28
      %v976 = vpop.permute.xlu0 %975
      %977 = vrot.lane.b32.xlu0 %v601, 28
      %v978 = vpop.permute.xlu0 %977
      %979 = vrot.lane.b32.xlu0 %v647, 28
      %v980 = vpop.permute.xlu0 %979
      %981 = vrot.lane.b32.xlu0 %v649, 28
      %v982 = vpop.permute.xlu0 %981
      %983 = vrot.lane.b32.xlu0 %v659, 28
      %v984 = vpop.permute.xlu0 %983
      %985 = vrot.lane.b32.xlu0 %v661, 28
      %v986 = vpop.permute.xlu0 %985
      %1003 = vrot.lane.b32.xlu0 %v615, 32
      %v1004 = vpop.permute.xlu0 %1003
      %1005 = vrot.lane.b32.xlu0 %v617, 32
      %v1006 = vpop.permute.xlu0 %1005
      %1007 = vrot.lane.b32.xlu0 %v620, 32
      %v1008 = vpop.permute.xlu0 %1007
      %1009 = vrot.lane.b32.xlu0 %v622, 32
      %v1010 = vpop.permute.xlu0 %1009
      %1011 = vrot.lane.b32.xlu0 %v625, 32
      %v1012 = vpop.permute.xlu0 %1011
      %1013 = vrot.lane.b32.xlu0 %v627, 32
      %v1014 = vpop.permute.xlu0 %1013
      %1015 = vrot.lane.b32.xlu0 %v630, 32
      %v1016 = vpop.permute.xlu0 %1015
      %1017 = vrot.lane.b32.xlu0 %v632, 32
      %v1018 = vpop.permute.xlu0 %1017
      %1019 = vrot.lane.b32.xlu0 %v635, 32
      %v1020 = vpop.permute.xlu0 %1019
      %1021 = vrot.lane.b32.xlu0 %v637, 32
      %v1022 = vpop.permute.xlu0 %1021
      %1023 = vrot.lane.b32.xlu0 %v640, 32
      %v1024 = vpop.permute.xlu0 %1023
      %1025 = vrot.lane.b32.xlu0 %v642, 32
      %v1026 = vpop.permute.xlu0 %1025
      %1027 = vrot.lane.b32.xlu0 %v652, 32
      %v1028 = vpop.permute.xlu0 %1027
      %1029 = vrot.lane.b32.xlu0 %v654, 32
      %v1030 = vpop.permute.xlu0 %1029
      %1031 = vrot.lane.b32.xlu0 %v664, 32
      %v1032 = vpop.permute.xlu0 %1031
      %1033 = vrot.lane.b32.xlu0 %v666, 32
      %v1034 = vpop.permute.xlu0 %1033
      %vm1051 = vcmask 31744
      %v1052 = vsel %vm1051, %v525, %v668
      %v1053 = vsel %vm1051, %v469, %v670
      %v1054 = vsel %vm1051, %v526, %v672
      %v1055 = vsel %vm1051, %v472, %v674
      %v1056 = vsel %vm1051, %v527, %v676
      %v1057 = vsel %vm1051, %v475, %v678
      %v1058 = vsel %vm1051, %v528, %v680
      %v1059 = vsel %vm1051, %v478, %v682
      %v1060 = vsel %vm1051, %v529, %v684
      %v1061 = vsel %vm1051, %v481, %v686
      %v1062 = vsel %vm1051, %v530, %v688
      %v1063 = vsel %vm1051, %v484, %v690
      %v1064 = vsel %vm1051, %v531, %v692
      %v1065 = vsel %vm1051, %v487, %v694
      %v1066 = vsel %vm1051, %v532, %v696
      %v1067 = vsel %vm1051, %v490, %v698
      %vm1068 = vcmask 64512
      %v1069 = vsel %vm1068, %v1052, %v716
      %v1070 = vsel %vm1068, %v1053, %v718
      %v1071 = vsel %vm1068, %v1054, %v720
      %v1072 = vsel %vm1068, %v1055, %v722
      %v1073 = vsel %vm1068, %v1056, %v724
      %v1074 = vsel %vm1068, %v1057, %v726
      %v1075 = vsel %vm1068, %v1058, %v728
      %v1076 = vsel %vm1068, %v1059, %v730
      %v1077 = vsel %vm1068, %v1060, %v732
      %v1078 = vsel %vm1068, %v1061, %v734
      %v1079 = vsel %vm1068, %v1062, %v736
      %v1080 = vsel %vm1068, %v1063, %v738
      %v1081 = vsel %vm1068, %v1064, %v740
      %v1082 = vsel %vm1068, %v1065, %v742
      %v1083 = vsel %vm1068, %v1066, %v744
      %v1084 = vsel %vm1068, %v1067, %v746
      %vm1085 = vcmask 97280
      %v1086 = vsel %vm1085, %v1069, %v764
      %v1087 = vsel %vm1085, %v1070, %v766
      %v1088 = vsel %vm1085, %v1071, %v768
      %v1089 = vsel %vm1085, %v1072, %v770
      %v1090 = vsel %vm1085, %v1073, %v772
      %v1091 = vsel %vm1085, %v1074, %v774
      %v1092 = vsel %vm1085, %v1075, %v776
      %v1093 = vsel %vm1085, %v1076, %v778
      %v1094 = vsel %vm1085, %v1077, %v780
      %v1095 = vsel %vm1085, %v1078, %v782
      %v1096 = vsel %vm1085, %v1079, %v784
      %v1097 = vsel %vm1085, %v1080, %v786
      %v1098 = vsel %vm1085, %v1081, %v788
      %v1099 = vsel %vm1085, %v1082, %v790
      %v1100 = vsel %vm1085, %v1083, %v792
      %v1101 = vsel %vm1085, %v1084, %v794
      %vm1102 = vcmask 130048
      %v1103 = vsel %vm1102, %v1086, %v812
      %v1104 = vsel %vm1102, %v1087, %v814
      %v1105 = vsel %vm1102, %v1088, %v816
      %v1106 = vsel %vm1102, %v1089, %v818
      %v1107 = vsel %vm1102, %v1090, %v820
      %v1108 = vsel %vm1102, %v1091, %v822
      %v1109 = vsel %vm1102, %v1092, %v824
      %v1110 = vsel %vm1102, %v1093, %v826
      %v1111 = vsel %vm1102, %v1094, %v828
      %v1112 = vsel %vm1102, %v1095, %v830
      %v1113 = vsel %vm1102, %v1096, %v832
      %v1114 = vsel %vm1102, %v1097, %v834
      %v1115 = vsel %vm1102, %v1098, %v836
      %v1116 = vsel %vm1102, %v1099, %v838
      %v1117 = vsel %vm1102, %v1100, %v840
      %v1118 = vsel %vm1102, %v1101, %v842
      %vm1119 = vcmask 162816
      %v1120 = vsel %vm1119, %v1103, %v860
      %v1121 = vsel %vm1119, %v1104, %v862
      %v1122 = vsel %vm1119, %v1105, %v864
      %v1123 = vsel %vm1119, %v1106, %v866
      %v1124 = vsel %vm1119, %v1107, %v868
      %v1125 = vsel %vm1119, %v1108, %v870
      %v1126 = vsel %vm1119, %v1109, %v872
      %v1127 = vsel %vm1119, %v1110, %v874
      %v1128 = vsel %vm1119, %v1111, %v876
      %v1129 = vsel %vm1119, %v1112, %v878
      %v1130 = vsel %vm1119, %v1113, %v880
      %v1131 = vsel %vm1119, %v1114, %v882
      %v1132 = vsel %vm1119, %v1115, %v884
      %v1133 = vsel %vm1119, %v1116, %v886
      %v1134 = vsel %vm1119, %v1117, %v888
      %v1135 = vsel %vm1119, %v1118, %v890
      %vm1136 = vcmask 195584
      %v1137 = vsel %vm1136, %v1120, %v908
      %v1138 = vsel %vm1136, %v1121, %v910
      %v1139 = vsel %vm1136, %v1122, %v912
      %v1140 = vsel %vm1136, %v1123, %v914
      %v1141 = vsel %vm1136, %v1124, %v916
      %v1142 = vsel %vm1136, %v1125, %v918
      %v1143 = vsel %vm1136, %v1126, %v920
      %v1144 = vsel %vm1136, %v1127, %v922
      %v1145 = vsel %vm1136, %v1128, %v924
      %v1146 = vsel %vm1136, %v1129, %v926
      %v1147 = vsel %vm1136, %v1130, %v928
      %v1148 = vsel %vm1136, %v1131, %v930
      %v1149 = vsel %vm1136, %v1132, %v932
      %v1150 = vsel %vm1136, %v1133, %v934
      %v1151 = vsel %vm1136, %v1134, %v936
      %v1152 = vsel %vm1136, %v1135, %v938
      %vm1153 = vcmask 228352
      %v1154 = vsel %vm1153, %v1137, %v956
      %v1155 = vsel %vm1153, %v1138, %v958
      %v1156 = vsel %vm1153, %v1139, %v960
      %v1157 = vsel %vm1153, %v1140, %v962
      %v1158 = vsel %vm1153, %v1141, %v964
      %v1159 = vsel %vm1153, %v1142, %v966
      %v1160 = vsel %vm1153, %v1143, %v968
      %v1161 = vsel %vm1153, %v1144, %v970
      %v1162 = vsel %vm1153, %v1145, %v972
      %v1163 = vsel %vm1153, %v1146, %v974
      %v1164 = vsel %vm1153, %v1147, %v976
      %v1165 = vsel %vm1153, %v1148, %v978
      %v1166 = vsel %vm1153, %v1149, %v980
      %v1167 = vsel %vm1153, %v1150, %v982
      %v1168 = vsel %vm1153, %v1151, %v984
      %v1169 = vsel %vm1153, %v1152, %v986
      %vm1170 = vcmask 261120
      %v1171 = vsel %vm1170, %v1154, %v1004
      %v1172 = vsel %vm1170, %v1155, %v1006
      %v1173 = vsel %vm1170, %v1156, %v1008
      %v1174 = vsel %vm1170, %v1157, %v1010
      %v1175 = vsel %vm1170, %v1158, %v1012
      %v1176 = vsel %vm1170, %v1159, %v1014
      %v1177 = vsel %vm1170, %v1160, %v1016
      %v1178 = vsel %vm1170, %v1161, %v1018
      %v1179 = vsel %vm1170, %v1162, %v1020
      %v1180 = vsel %vm1170, %v1163, %v1022
      %v1181 = vsel %vm1170, %v1164, %v1024
      %v1182 = vsel %vm1170, %v1165, %v1026
      %v1183 = vsel %vm1170, %v1166, %v1028
      %v1184 = vsel %vm1170, %v1167, %v1030
      %v1185 = vsel %vm1170, %v1168, %v1032
      %v1186 = vsel %vm1170, %v1169, %v1034
      %v1187 = vld [vmem:[%s3] sm:$0xff]
      %v1188 = vld [vmem:[%s3 + $0x8] sm:$0xff]
      %v1189 = vld [vmem:[%s3 + $0x10] sm:$0xff]
      %v1190 = vld [vmem:[%s3 + $0x18] sm:$0xff]
      %v1191 = vld [vmem:[%s3 + $0x20] sm:$0xf]
      %vm1192 = vcmask 293888
      %v1194 = vsel %vm1192, %v1171, 0
      %v1197 = vsel %vm1192, %v1172, 0
      %v1200 = vsel %vm1192, %v1173, 0
      %v1203 = vsel %vm1192, %v1174, 0
      %v1206 = vsel %vm1192, %v1175, 0
      %v1209 = vsel %vm1192, %v1176, 0
      %v1212 = vsel %vm1192, %v1177, 0
      %v1215 = vsel %vm1192, %v1178, 0
      %v1218 = vsel %vm1192, %v1179, 0
      %v1221 = vsel %vm1192, %v1180, 0
      %v1224 = vsel %vm1192, %v1181, 0
      %v1227 = vsel %vm1192, %v1182, 0
      %v1230 = vsel %vm1192, %v1183, 0
      %v1233 = vsel %vm1192, %v1184, 0
      %v1236 = vsel %vm1192, %v1185, 0
      %v1239 = vsel %vm1192, %v1186, 0
      %vm1241 = vcmask 1043456
      %v1243 = vsel %vm1241, %v1191, 0
      %1245 = vmatprep.subr.mxu0 0.0
      %1246 = vmatpush1.msra.mxu0 %v1187
      %1247 = vmatprep.subr.mxu0 0.0
      %1248 = vmatpush1.msra.mxu0 %v1188
      %1249 = vmatprep.subr.mxu0 0.0
      %1250 = vmatpush1.msra.mxu0 %v1189
      %1251 = vmatprep.subr.mxu0 0.0
      %1252 = vmatpush1.msra.mxu0 %v1190
      %1253 = vmatprep.subr.mxu0 0.0
      %1254 = vmatpush1.msra.mxu0 %v1243
      %1255 = vmatprep.subr.mxu0 0.0
      %1256 = vmatpush1.msra.mxu0 0.0
      %1257 = vmatprep.subr.mxu0 0.0
      %1258 = vmatpush1.msra.mxu0 0.0
      %1259 = vmatprep.subr.mxu0 0.0
      %1260 = vmatpush1.msra.mxu0 0.0
      %1261 = vmatprep.subr.mxu0 0.0
      %1262 = vmatpush1.msra.mxu0 0.0
      %1263 = vmatprep.subr.mxu0 0.0
      %1264 = vmatpush1.msra.mxu0 0.0
      %1265 = vmatprep.subr.mxu0 0.0
      %1266 = vmatpush1.msra.mxu0 0.0
      %1267 = vmatprep.subr.mxu0 0.0
      %1268 = vmatpush1.msra.mxu0 0.0
      %1269 = vmatprep.subr.mxu0 0.0
      %1270 = vmatpush1.msra.mxu0 0.0
      %1271 = vmatprep.subr.mxu0 0.0
      %1272 = vmatpush1.msra.mxu0 0.0
      %1273 = vmatprep.subr.mxu0 0.0
      %1274 = vmatpush1.msra.mxu0 0.0
      %1275 = vmatprep.subr.mxu0 0.0
      %1276 = vmatpush1.msra.mxu0 0.0
      %1277 = vmatprep.subr.mxu0 0.0
      %1278 = vmatpush1.msra.mxu0 0.0
      %1279 = vmatprep.subr.mxu0 0.0
      %1280 = vmatpush1.msra.mxu0 0.0
      %1281 = vmatprep.subr.mxu0 0.0
      %1282 = vmatpush1.msra.mxu0 0.0
      %1283 = vmatprep.subr.mxu0 0.0
      %1284 = vmatpush1.msra.mxu0 0.0
      %1285 = vmatprep.subr.mxu0 0.0
      %1286 = vmatpush1.msra.mxu0 0.0
      %1287 = vmatprep.subr.mxu0 0.0
      %1288 = vmatpush1.msra.mxu0 0.0
      %1289 = vmatprep.subr.mxu0 0.0
      %1290 = vmatpush1.msra.mxu0 0.0
      %1291 = vmatprep.subr.mxu0 0.0
      %1292 = vmatpush1.msra.mxu0 0.0
      %1293 = vmatprep.subr.mxu0 0.0
      %1294 = vmatpush1.msra.mxu0 0.0
      %1295 = vmatprep.subr.mxu0 0.0
      %1296 = vmatpush1.msra.mxu0 0.0
      %1297 = vmatprep.subr.mxu0 0.0
      %1298 = vmatpush1.msra.mxu0 0.0
      %1299 = vmatprep.subr.mxu0 0.0
      %1300 = vmatpush1.msra.mxu0 0.0
      %1301 = vmatprep.subr.mxu0 0.0
      %1302 = vmatpush1.msra.mxu0 0.0
      %1303 = vmatprep.subr.mxu0 0.0
      %1304 = vmatpush1.msra.mxu0 0.0
      %1305 = vmatprep.subr.mxu0 0.0
      %1306 = vmatpush1.msra.mxu0 0.0
      %1307 = vmatprep.subr.mxu0 0.0
      %1308 = vmatpush1.msra.mxu0 0.0
      %1309 = vmatprep.mubr.f32.mxu0 0.0
      %1310 = vmatmul.mubr.f32.gmra.mrb[0].mxu0 %v1194
      %v1311 = vpop.f32.mrb[0].mxu0
      %v1312 = vadd.f32 0.0, %v1311
      %v1313 = vpop.f32.mrb[0].mxu0
      %1314 = vmatprep.mubr.f32.mxu0 0.0
      %1315 = vmatmul.mubr.f32.gmra.mrb[0].mxu0 %v1197
      %v1316 = vpop.f32.mrb[0].mxu0
      %v1317 = vadd.f32 0.0, %v1316
      %v1318 = vpop.f32.mrb[0].mxu0
      %1319 = vmatprep.mubr.f32.mxu0 0.0
      %1320 = vmatmul.mubr.f32.gmra.mrb[0].mxu0 %v1200
      %v1321 = vpop.f32.mrb[0].mxu0
      %v1322 = vadd.f32 0.0, %v1321
      %v1323 = vpop.f32.mrb[0].mxu0
      %1324 = vmatprep.mubr.f32.mxu0 0.0
      %1325 = vmatmul.mubr.f32.gmra.mrb[0].mxu0 %v1203
      %v1326 = vpop.f32.mrb[0].mxu0
      %v1327 = vadd.f32 0.0, %v1326
      %v1328 = vpop.f32.mrb[0].mxu0
      %1329 = vmatprep.mubr.f32.mxu0 0.0
      %1330 = vmatmul.mubr.f32.gmra.mrb[0].mxu0 %v1206
      %v1331 = vpop.f32.mrb[0].mxu0
      %v1332 = vadd.f32 0.0, %v1331
      %v1333 = vpop.f32.mrb[0].mxu0
      %1334 = vmatprep.mubr.f32.mxu0 0.0
      %1335 = vmatmul.mubr.f32.gmra.mrb[0].mxu0 %v1209
      %v1336 = vpop.f32.mrb[0].mxu0
      %v1337 = vadd.f32 0.0, %v1336
      %v1338 = vpop.f32.mrb[0].mxu0
      %1339 = vmatprep.mubr.f32.mxu0 0.0
      %1340 = vmatmul.mubr.f32.gmra.mrb[0].mxu0 %v1212
      %v1341 = vpop.f32.mrb[0].mxu0
      %v1342 = vadd.f32 0.0, %v1341
      %v1343 = vpop.f32.mrb[0].mxu0
      %1344 = vmatprep.mubr.f32.mxu0 0.0
      %1345 = vmatmul.mubr.f32.gmra.mrb[0].mxu0 %v1215
      %v1346 = vpop.f32.mrb[0].mxu0
      %v1347 = vadd.f32 0.0, %v1346
      %v1348 = vpop.f32.mrb[0].mxu0
      %1349 = vmatprep.mubr.f32.mxu0 0.0
      %1350 = vmatmul.mubr.f32.gmra.mrb[0].mxu0 %v1218
      %v1351 = vpop.f32.mrb[0].mxu0
      %v1352 = vadd.f32 0.0, %v1351
      %v1353 = vpop.f32.mrb[0].mxu0
      %1354 = vmatprep.mubr.f32.mxu0 0.0
      %1355 = vmatmul.mubr.f32.gmra.mrb[0].mxu0 %v1221
      %v1356 = vpop.f32.mrb[0].mxu0
      %v1357 = vadd.f32 0.0, %v1356
      %v1358 = vpop.f32.mrb[0].mxu0
      %1359 = vmatprep.mubr.f32.mxu0 0.0
      %1360 = vmatmul.mubr.f32.gmra.mrb[0].mxu0 %v1224
      %v1361 = vpop.f32.mrb[0].mxu0
      %v1362 = vadd.f32 0.0, %v1361
      %v1363 = vpop.f32.mrb[0].mxu0
      %1364 = vmatprep.mubr.f32.mxu0 0.0
      %1365 = vmatmul.mubr.f32.gmra.mrb[0].mxu0 %v1227
      %v1366 = vpop.f32.mrb[0].mxu0
      %v1367 = vadd.f32 0.0, %v1366
      %v1368 = vpop.f32.mrb[0].mxu0
      %1369 = vmatprep.mubr.f32.mxu0 0.0
      %1370 = vmatmul.mubr.f32.gmra.mrb[0].mxu0 %v1230
      %v1371 = vpop.f32.mrb[0].mxu0
      %v1372 = vadd.f32 0.0, %v1371
      %v1373 = vpop.f32.mrb[0].mxu0
      %1374 = vmatprep.mubr.f32.mxu0 0.0
      %1375 = vmatmul.mubr.f32.gmra.mrb[0].mxu0 %v1233
      %v1376 = vpop.f32.mrb[0].mxu0
      %v1377 = vadd.f32 0.0, %v1376
      %v1378 = vpop.f32.mrb[0].mxu0
      %1379 = vmatprep.mubr.f32.mxu0 0.0
      %1380 = vmatmul.mubr.f32.gmra.mrb[0].mxu0 %v1236
      %v1381 = vpop.f32.mrb[0].mxu0
      %v1382 = vadd.f32 0.0, %v1381
      %v1383 = vpop.f32.mrb[0].mxu0
      %1384 = vmatprep.mubr.f32.mxu0 0.0
      %1385 = vmatmul.mubr.f32.gmra.mrb[0].mxu0 %v1239
      %v1386 = vpop.f32.mrb[0].mxu0
      %v1387 = vadd.f32 0.0, %v1386
      %v1388 = vpop.f32.mrb[0].mxu0
      %1389 = vdwg.mxu0
      %1390 = vst.msk [vmem:[%s404] sm:$0xff] %vm1068, %v1312
      %1391 = vst.msk [vmem:[%s404 + $0x8] sm:$0xff] %vm1068, %v1317
      %1392 = vst.msk [vmem:[%s404 + $0x10] sm:$0xff] %vm1068, %v1322
      %1393 = vst.msk [vmem:[%s404 + $0x18] sm:$0xff] %vm1068, %v1327
      %1394 = vst.msk [vmem:[%s404 + $0x20] sm:$0xff] %vm1068, %v1332
      %1395 = vst.msk [vmem:[%s404 + $0x28] sm:$0xff] %vm1068, %v1337
      %1396 = vst.msk [vmem:[%s404 + $0x30] sm:$0xff] %vm1068, %v1342
      %1397 = vst.msk [vmem:[%s404 + $0x38] sm:$0xff] %vm1068, %v1347
      %1398 = vst.msk [vmem:[%s404 + $0x40] sm:$0xff] %vm1068, %v1352
      %1399 = vst.msk [vmem:[%s404 + $0x48] sm:$0xff] %vm1068, %v1357
      %1400 = vst.msk [vmem:[%s404 + $0x50] sm:$0xff] %vm1068, %v1362
      %1401 = vst.msk [vmem:[%s404 + $0x58] sm:$0xff] %vm1068, %v1367
      %1402 = vst.msk [vmem:[%s404 + $0x60] sm:$0xff] %vm1068, %v1372
      %1403 = vst.msk [vmem:[%s404 + $0x68] sm:$0xff] %vm1068, %v1377
      %1404 = vst.msk [vmem:[%s404 + $0x70] sm:$0xff] %vm1068, %v1382
      %1405 = vst.msk [vmem:[%s404 + $0x78] sm:$0xff] %vm1068, %v1387
      %v1406 = vsel %vm1068, %v1312, 0.0
      %v1407 = vsel %vm1068, %v1317, 0.0
      %v1408 = vadd.f32 %v1406, %v1407
      %v1409 = vsel %vm1068, %v1322, 0.0
      %v1410 = vadd.f32 %v1408, %v1409
      %v1411 = vsel %vm1068, %v1327, 0.0
      %v1412 = vadd.f32 %v1410, %v1411
      %v1413 = vsel %vm1068, %v1332, 0.0
      %v1414 = vadd.f32 %v1412, %v1413
      %v1415 = vsel %vm1068, %v1337, 0.0
      %v1416 = vadd.f32 %v1414, %v1415
      %v1417 = vsel %vm1068, %v1342, 0.0
      %v1418 = vadd.f32 %v1416, %v1417
      %v1419 = vsel %vm1068, %v1347, 0.0
      %v1420 = vadd.f32 %v1418, %v1419
      %v1421 = vsel %vm1068, %v1352, 0.0
      %v1422 = vadd.f32 %v1420, %v1421
      %v1423 = vsel %vm1068, %v1357, 0.0
      %v1424 = vadd.f32 %v1422, %v1423
      %v1425 = vsel %vm1068, %v1362, 0.0
      %v1426 = vadd.f32 %v1424, %v1425
      %v1427 = vsel %vm1068, %v1367, 0.0
      %v1428 = vadd.f32 %v1426, %v1427
      %v1429 = vsel %vm1068, %v1372, 0.0
      %v1430 = vadd.f32 %v1428, %v1429
      %v1431 = vsel %vm1068, %v1377, 0.0
      %v1432 = vadd.f32 %v1430, %v1431
      %v1433 = vsel %vm1068, %v1382, 0.0
      %v1434 = vadd.f32 %v1432, %v1433
      %v1435 = vsel %vm1068, %v1387, 0.0
      %v1436 = vadd.f32 %v1434, %v1435
      %v1437 = vrot.slane %v1436, 4
      %v1438 = vadd.f32 %v1436, %v1437
      %v1439 = vrot.slane %v1438, 2
      %v1440 = vadd.f32 %v1438, %v1439
      %v1441 = vrot.slane %v1440, 1
      %v1442 = vadd.f32 %v1440, %v1441
      %v1443 = vmul.f32 %v1312, %v1312
      %v1444 = vmul.f32 %v1317, %v1317
      %v1445 = vmul.f32 %v1322, %v1322
      %v1446 = vmul.f32 %v1327, %v1327
      %v1447 = vmul.f32 %v1332, %v1332
      %v1448 = vmul.f32 %v1337, %v1337
      %v1449 = vmul.f32 %v1342, %v1342
      %v1450 = vmul.f32 %v1347, %v1347
      %v1451 = vmul.f32 %v1352, %v1352
      %v1452 = vmul.f32 %v1357, %v1357
      %v1453 = vmul.f32 %v1362, %v1362
      %v1454 = vmul.f32 %v1367, %v1367
      %v1455 = vmul.f32 %v1372, %v1372
      %v1456 = vmul.f32 %v1377, %v1377
      %v1457 = vmul.f32 %v1382, %v1382
      %v1458 = vmul.f32 %v1387, %v1387
      %v1459 = vsel %vm1068, %v1443, 0.0
      %v1460 = vsel %vm1068, %v1444, 0.0
      %v1461 = vadd.f32 %v1459, %v1460
      %v1462 = vsel %vm1068, %v1445, 0.0
      %v1463 = vadd.f32 %v1461, %v1462
      %v1464 = vsel %vm1068, %v1446, 0.0
      %v1465 = vadd.f32 %v1463, %v1464
      %v1466 = vsel %vm1068, %v1447, 0.0
      %v1467 = vadd.f32 %v1465, %v1466
      %v1468 = vsel %vm1068, %v1448, 0.0
      %v1469 = vadd.f32 %v1467, %v1468
      %v1470 = vsel %vm1068, %v1449, 0.0
      %v1471 = vadd.f32 %v1469, %v1470
      %v1472 = vsel %vm1068, %v1450, 0.0
      %v1473 = vadd.f32 %v1471, %v1472
      %v1474 = vsel %vm1068, %v1451, 0.0
      %v1475 = vadd.f32 %v1473, %v1474
      %v1476 = vsel %vm1068, %v1452, 0.0
      %v1477 = vadd.f32 %v1475, %v1476
      %v1478 = vsel %vm1068, %v1453, 0.0
      %v1479 = vadd.f32 %v1477, %v1478
      %v1480 = vsel %vm1068, %v1454, 0.0
      %v1481 = vadd.f32 %v1479, %v1480
      %v1482 = vsel %vm1068, %v1455, 0.0
      %v1483 = vadd.f32 %v1481, %v1482
      %v1484 = vsel %vm1068, %v1456, 0.0
      %v1485 = vadd.f32 %v1483, %v1484
      %v1486 = vsel %vm1068, %v1457, 0.0
      %v1487 = vadd.f32 %v1485, %v1486
      %v1488 = vsel %vm1068, %v1458, 0.0
      %v1489 = vadd.f32 %v1487, %v1488
      %v1490 = vrot.slane %v1489, 4
      %v1491 = vadd.f32 %v1489, %v1490
      %v1492 = vrot.slane %v1491, 2
      %v1493 = vadd.f32 %v1491, %v1492
      %v1494 = vrot.slane %v1493, 1
      %v1495 = vadd.f32 %v1493, %v1494
      %v1496 = vsel %vm466, %v1442, %v1495
      %vm1497 = vcmask 58368
      %1498 = vst.msk [vmem:[%s413] sm:$0x3] %vm1497, %v1496
      %s1499 = smul.u32 8, %s22
      %p1500 = scmp.lt.s32.totalorder %s21, 1
      %s1501 = scalar_select %p1500, %s21, 1
      %p1502 = scmp.lt.s32.totalorder %s1499, 15
      %s1503 = scalar_select %p1502, %s1499, 15
      %s1504 = smul.addr %s1503, 2
      %s1505 = smul.addr %s1501, 32
      %s1506 = sadd.s32 %s1504, %s1505
      %s1507 = smul.addr %s1506, 8
      %s1508 = scalar_lea.vmem %s4, %s1507
      %p1509 = scmp.lt.s32.totalorder %s21, 1
      %s1510 = scalar_select %p1509, %s21, 1
      %p1511 = scmp.lt.s32.totalorder %s22, 1
      %s1512 = scalar_select %p1511, %s22, 1
      %s1513 = smul.addr %s1510, 2
      %s1514 = sadd.s32 %s1512, %s1513
      %s1515 = smul.addr %s1514, 2
      %s1516 = scalar_lea.vmem %s5, %s1515
      // Predicated region
      $region37: #{double_conv.3} parent=35 // pred_check
        %p1517 = pneg %p170
      $region38: #{double_conv.3} parent=35 // pred_check_branch
        %1519 = sbr.rel (%p1517) target = $region40
      $region39: #{double_conv.3} parent=35 // pred_region
        %s1520 = smul.u32 8, %s22
      $region40: #{double_conv.3} parent=35 // pred_fallthru
        _
      // Predicated region
      $region41: #{double_conv.3} parent=35 // pred_check
        %p1521 = pneg %p198
      $region42: #{double_conv.3} parent=35 // pred_check_branch
        %1523 = sbr.rel (%p1521) target = $region44
      $region43: #{double_conv.3} parent=35 // pred_region
        _
      $region44: #{double_conv.3} parent=35 // pred_fallthru
        _
    $region36: #{double_conv.3} parent=5 // pred_fallthru
      _
    %p1524 = scmp.le.s32.totalorder 2, %s12
    // Predicated region
    $region45: #{double_conv.3} parent=5 // pred_check
      %p1525 = pneg %p1524
    $region46: #{double_conv.3} parent=5 // pred_check_branch
      %1527 = sbr.rel (%p1525) target = $region48
    $region47: #{double_conv.3} parent=5 // pred_region
      %s1528 = ssub.s32 %s12, 2
      // Predicated region
      $region49: #{double_conv.3} parent=47 // pred_check
        %p1529 = pneg %p176
      $region50: #{double_conv.3} parent=47 // pred_check_branch
        %1531 = sbr.rel (%p1529) target = $region52
      $region51: #{double_conv.3} parent=47 // pred_region
        %s1532 = smul.u32 8, %s24
        %p1533 = scmp.lt.s32.totalorder %s23, 1
        %s1534 = scalar_select %p1533, %s23, 1
        %p1535 = scmp.lt.s32.totalorder %s1532, 15
        %s1536 = scalar_select %p1535, %s1532, 15
        %s1537 = smul.addr %s1536, 2
        %s1538 = smul.addr %s1534, 32
        %s1539 = sadd.s32 %s1537, %s1538
        %s1540 = smul.addr %s1539, 8
        %s1541 = scalar_lea.vmem %s4, %s1540
      $region52: #{double_conv.3} parent=47 // pred_fallthru
        _
      // Predicated region
      $region53: #{double_conv.3} parent=47 // pred_check
        %p1542 = pneg %p204
      $region54: #{double_conv.3} parent=47 // pred_check_branch
        %1544 = sbr.rel (%p1542) target = $region56
      $region55: #{double_conv.3} parent=47 // pred_region
        %p1545 = scmp.lt.s32.totalorder %s23, 1
        %s1546 = scalar_select %p1545, %s23, 1
        %p1547 = scmp.lt.s32.totalorder %s24, 1
        %s1548 = scalar_select %p1547, %s24, 1
        %s1549 = smul.addr %s1546, 2
        %s1550 = sadd.s32 %s1548, %s1549
        %s1551 = smul.addr %s1550, 2
        %s1552 = scalar_lea.vmem %s5, %s1551
      $region56: #{double_conv.3} parent=47 // pred_fallthru
        _
    $region48: #{double_conv.3} parent=5 // pred_fallthru
      _
  $region6: #{double_conv.3} parent=0 // loop_footer
    %s16 = sadd.s32 1, %s12
  $region7: #{double_conv.3} parent=0 // loop_footer_branch
    %11 = sbr.rel target = $region3
  $region8: #{double_conv.3} parent=0 // loop_exit
    _

// kernel: double_conv.4
$region0: #{double_conv.4}
  #allocation0 [shape = 'u32[]', space=smem, size = 0x4, offset = 0x4, fixed_abs, tag = 'smem constant byte address 0x4 - core index']
  #allocation1 [shape = 'u32[144,128]{1,0:T(1,128)}', space=vmem, size = 0x12000, scoped, tag = 'internal scratch']
  %s0 = inlined_call_operand.vmem [shape: f32[2,16,16,8], index: 0, kind: input, shape index: {}, may-alias: {0,1,2}]
  %s1 = inlined_call_operand.vmem [shape: f32[2,16,16,8], index: 1, kind: input, shape index: {}, may-alias: {0,1,2}]
  %s2 = inlined_call_operand.vmem [shape: f32[2,16,16,8], index: 2, kind: input, shape index: {}, may-alias: {0,1,2}]
  %s3 = inlined_call_operand.vmem [shape: f32[1,8], index: 3, kind: input, shape index: {}]
  %s4 = inlined_call_operand.vmem [shape: f32[1,8], index: 4, kind: input, shape index: {}]
  %s5 = inlined_call_operand.vmem [shape: f32[72,8], index: 5, kind: input, shape index: {}]
  %s6 = inlined_call_operand.vmem [shape: f32[2,16,16,8], index: 6, kind: output, shape index: {0}]
  %s7 = inlined_call_operand.vmem [shape: f32[2,2,2,8], index: 7, kind: output, shape index: {1}]
  %8 = xla_tuple %s6, %s7
  %s9 = sld [smem:[#allocation0]]
  $region65: #{double_conv.4} parent=0
    _
  %s11 = ssub.s32 1, %s9
  %s12 = scalar_select 0, %s11, %s9
  loop: start=0, step=1, limit=6
  $region2: #{double_conv.4} parent=0 // loop_pre_header
    _
  $region3: #{double_conv.4} parent=0 // loop_header
    %s14 = sphi 0, %s18
    %p15 = scmp.ge.s32.totalorder %s14, 6
    %s21 = sphi 0, %s33
    %s22 = sphi 0, %s29
    %s23 = sphi 0, %s21
    %s24 = sphi 0, %s22
    %s25 = sphi 0, %s23
    %s26 = sphi 0, %s24
    %s38 = sphi 0, %s40
    %s41 = sphi 0, %s38
    %s42 = sphi 0, %s41
    %s58 = sphi 0, %s42
    %s74 = sphi 0, %s76
    %s77 = sphi 0, %s74
    %s78 = sphi 0, %s77
    %s94 = sphi 0, %s78
    %s110 = sphi 0, %s112
    %s113 = sphi 0, %s110
    %s114 = sphi 0, %s113
    %s130 = sphi 0, %s114
    %s134 = sphi 0, %s134
    %s136 = sphi 0, %s134
    %s137 = sphi 0, %s136
    %s151 = sphi 0, %s137
    %s155 = sphi 0, %s155
    %s157 = sphi 0, %s155
    %s158 = sphi 0, %s157
    %s172 = sphi 0, %s158
    %s176 = sphi 0, %s176
    %s178 = sphi 0, %s176
    %s179 = sphi 0, %s178
    %s193 = sphi 0, %s179
    %s201 = sphi 0, %s203
    %s204 = sphi 0, %s201
    %s205 = sphi 0, %s204
    %s221 = sphi 0, %s205
    %s229 = sphi 0, %s231
    %s232 = sphi 0, %s229
    %s233 = sphi 0, %s232
    %s249 = sphi 0, %s233
  $region4: #{double_conv.4} parent=0 // loop_header_branch
    %17 = sbr.rel (%p15) target = $region8
  $region5: #{double_conv.4} parent=0 // loop_body
    %s19 = ssub.s32 %s14, 1
    %s20 = ssub.s32 %s14, 2
    %s27 = sadd.s32 1, %s22
    %p28 = scmp.ge.s32.totalorder %s27, 2
    %s29 = scalar_select %p28, 0, %s27
    %s30 = sadd.s32 1, %s21
    %s31 = scalar_select %p28, %s30, %s21
    %p32 = scmp.ge.s32.totalorder %s31, 2
    %s33 = scalar_select %p32, 0, %s31
    %s34 = ssub.s32 %s21, %s33
    %s35 = ssub.s32 %s22, %s29
    %s36 = sor.u32 %s34, %s35
    %p37 = scmp.eq.s32.totalorder %s36, 0
    %s39 = sadd.s32 %s38, 1
    %s40 = scalar_select %p37, %s38, %s39
    %p43 = pneg %p37
    %p44 = scmp.eq.s32.totalorder %s14, 3
    %p45 = por %p43, %p44
    %p46 = scmp.ne.s32.totalorder %s38, %s41
    %p47 = scmp.eq.s32.totalorder %s14, 0
    %p48 = por %p46, %p47
    %p49 = scmp.ne.s32.totalorder %s38, %s41
    %p50 = scmp.eq.s32.totalorder %s19, 3
    %p51 = por %p49, %p50
    %p52 = scmp.ne.s32.totalorder %s41, %s42
    %p53 = scmp.eq.s32.totalorder %s19, 0
    %p54 = por %p52, %p53
    %p55 = scmp.ne.s32.totalorder %s41, %s42
    %p56 = scmp.eq.s32.totalorder %s20, 3
    %p57 = por %p55, %p56
    %p59 = scmp.ne.s32.totalorder %s42, %s58
    %p60 = scmp.eq.s32.totalorder %s20, 0
    %p61 = por %p59, %p60
    %s62 = smul.u32 %s22, 8
    %s63 = ssub.s32 %s62, 1
    %p64 = scmp.gt.s32.totalorder %s63, 0
    %s65 = scalar_select %p64, %s63, 0
    %s66 = smul.u32 %s29, 8
    %s67 = ssub.s32 %s66, 1
    %p68 = scmp.gt.s32.totalorder %s67, 0
    %s69 = scalar_select %p68, %s67, 0
    %s70 = ssub.s32 %s21, %s33
    %s71 = ssub.s32 %s65, %s69
    %s72 = sor.u32 %s70, %s71
    %p73 = scmp.eq.s32.totalorder %s72, 0
    %s75 = sadd.s32 %s74, 1
    %s76 = scalar_select %p73, %s74, %s75
    %p79 = pneg %p73
    %p80 = scmp.eq.s32.totalorder %s14, 3
    %p81 = por %p79, %p80
    %p82 = scmp.ne.s32.totalorder %s74, %s77
    %p83 = scmp.eq.s32.totalorder %s14, 0
    %p84 = por %p82, %p83
    %p85 = scmp.ne.s32.totalorder %s74, %s77
    %p86 = scmp.eq.s32.totalorder %s19, 3
    %p87 = por %p85, %p86
    %p88 = scmp.ne.s32.totalorder %s77, %s78
    %p89 = scmp.eq.s32.totalorder %s19, 0
    %p90 = por %p88, %p89
    %p91 = scmp.ne.s32.totalorder %s77, %s78
    %p92 = scmp.eq.s32.totalorder %s20, 3
    %p93 = por %p91, %p92
    %p95 = scmp.ne.s32.totalorder %s78, %s94
    %p96 = scmp.eq.s32.totalorder %s20, 0
    %p97 = por %p95, %p96
    %s98 = smul.u32 %s22, 8
    %s99 = sadd.s32 %s98, 8
    %p100 = scmp.lt.s32.totalorder %s99, 15
    %s101 = scalar_select %p100, %s99, 15
    %s102 = smul.u32 %s29, 8
    %s103 = sadd.s32 %s102, 8
    %p104 = scmp.lt.s32.totalorder %s103, 15
    %s105 = scalar_select %p104, %s103, 15
    %s106 = ssub.s32 %s21, %s33
    %s107 = ssub.s32 %s101, %s105
    %s108 = sor.u32 %s106, %s107
    %p109 = scmp.eq.s32.totalorder %s108, 0
    %s111 = sadd.s32 %s110, 1
    %s112 = scalar_select %p109, %s110, %s111
    %p115 = pneg %p109
    %p116 = scmp.eq.s32.totalorder %s14, 3
    %p117 = por %p115, %p116
    %p118 = scmp.ne.s32.totalorder %s110, %s113
    %p119 = scmp.eq.s32.totalorder %s14, 0
    %p120 = por %p118, %p119
    %p121 = scmp.ne.s32.totalorder %s110, %s113
    %p122 = scmp.eq.s32.totalorder %s19, 3
    %p123 = por %p121, %p122
    %p124 = scmp.ne.s32.totalorder %s113, %s114
    %p125 = scmp.eq.s32.totalorder %s19, 0
    %p126 = por %p124, %p125
    %p127 = scmp.ne.s32.totalorder %s113, %s114
    %p128 = scmp.eq.s32.totalorder %s20, 3
    %p129 = por %p127, %p128
    %p131 = scmp.ne.s32.totalorder %s114, %s130
    %p132 = scmp.eq.s32.totalorder %s20, 0
    %p133 = por %p131, %p132
    %s135 = sadd.s32 %s134, 1
    %p138 = scmp.eq.s32.totalorder %s14, 3
    %p139 = scmp.ne.s32.totalorder %s134, %s136
    %p140 = scmp.eq.s32.totalorder %s14, 0
    %p141 = por %p139, %p140
    %p142 = scmp.ne.s32.totalorder %s134, %s136
    %p143 = scmp.eq.s32.totalorder %s19, 3
    %p144 = por %p142, %p143
    %p145 = scmp.ne.s32.totalorder %s136, %s137
    %p146 = scmp.eq.s32.totalorder %s19, 0
    %p147 = por %p145, %p146
    %p148 = scmp.ne.s32.totalorder %s136, %s137
    %p149 = scmp.eq.s32.totalorder %s20, 3
    %p150 = por %p148, %p149
    %p152 = scmp.ne.s32.totalorder %s137, %s151
    %p153 = scmp.eq.s32.totalorder %s20, 0
    %p154 = por %p152, %p153
    %s156 = sadd.s32 %s155, 1
    %p159 = scmp.eq.s32.totalorder %s14, 3
    %p160 = scmp.ne.s32.totalorder %s155, %s157
    %p161 = scmp.eq.s32.totalorder %s14, 0
    %p162 = por %p160, %p161
    %p163 = scmp.ne.s32.totalorder %s155, %s157
    %p164 = scmp.eq.s32.totalorder %s19, 3
    %p165 = por %p163, %p164
    %p166 = scmp.ne.s32.totalorder %s157, %s158
    %p167 = scmp.eq.s32.totalorder %s19, 0
    %p168 = por %p166, %p167
    %p169 = scmp.ne.s32.totalorder %s157, %s158
    %p170 = scmp.eq.s32.totalorder %s20, 3
    %p171 = por %p169, %p170
    %p173 = scmp.ne.s32.totalorder %s158, %s172
    %p174 = scmp.eq.s32.totalorder %s20, 0
    %p175 = por %p173, %p174
    %s177 = sadd.s32 %s176, 1
    %p180 = scmp.eq.s32.totalorder %s14, 3
    %p181 = scmp.ne.s32.totalorder %s176, %s178
    %p182 = scmp.eq.s32.totalorder %s14, 0
    %p183 = por %p181, %p182
    %p184 = scmp.ne.s32.totalorder %s176, %s178
    %p185 = scmp.eq.s32.totalorder %s19, 3
    %p186 = por %p184, %p185
    %p187 = scmp.ne.s32.totalorder %s178, %s179
    %p188 = scmp.eq.s32.totalorder %s19, 0
    %p189 = por %p187, %p188
    %p190 = scmp.ne.s32.totalorder %s178, %s179
    %p191 = scmp.eq.s32.totalorder %s20, 3
    %p192 = por %p190, %p191
    %p194 = scmp.ne.s32.totalorder %s179, %s193
    %p195 = scmp.eq.s32.totalorder %s20, 0
    %p196 = por %p194, %p195
    %s197 = ssub.s32 %s21, %s33
    %s198 = ssub.s32 %s22, %s29
    %s199 = sor.u32 %s197, %s198
    %p200 = scmp.eq.s32.totalorder %s199, 0
    %s202 = sadd.s32 %s201, 1
    %s203 = scalar_select %p200, %s201, %s202
    %p206 = pneg %p200
    %p207 = scmp.eq.s32.totalorder %s14, 3
    %p208 = por %p206, %p207
    %p209 = scmp.ne.s32.totalorder %s201, %s204
    %p210 = scmp.eq.s32.totalorder %s14, 0
    %p211 = por %p209, %p210
    %p212 = scmp.ne.s32.totalorder %s201, %s204
    %p213 = scmp.eq.s32.totalorder %s19, 3
    %p214 = por %p212, %p213
    %p215 = scmp.ne.s32.totalorder %s204, %s205
    %p216 = scmp.eq.s32.totalorder %s19, 0
    %p217 = por %p215, %p216
    %p218 = scmp.ne.s32.totalorder %s204, %s205
    %p219 = scmp.eq.s32.totalorder %s20, 3
    %p220 = por %p218, %p219
    %p222 = scmp.ne.s32.totalorder %s205, %s221
    %p223 = scmp.eq.s32.totalorder %s20, 0
    %p224 = por %p222, %p223
    %s225 = ssub.s32 %s21, %s33
    %s226 = ssub.s32 %s22, %s29
    %s227 = sor.u32 %s225, %s226
    %p228 = scmp.eq.s32.totalorder %s227, 0
    %s230 = sadd.s32 %s229, 1
    %s231 = scalar_select %p228, %s229, %s230
    %p234 = pneg %p228
    %p235 = scmp.eq.s32.totalorder %s14, 3
    %p236 = por %p234, %p235
    %p237 = scmp.ne.s32.totalorder %s229, %s232
    %p238 = scmp.eq.s32.totalorder %s14, 0
    %p239 = por %p237, %p238
    %p240 = scmp.ne.s32.totalorder %s229, %s232
    %p241 = scmp.eq.s32.totalorder %s19, 3
    %p242 = por %p240, %p241
    %p243 = scmp.ne.s32.totalorder %s232, %s233
    %p244 = scmp.eq.s32.totalorder %s19, 0
    %p245 = por %p243, %p244
    %p246 = scmp.ne.s32.totalorder %s232, %s233
    %p247 = scmp.eq.s32.totalorder %s20, 3
    %p248 = por %p246, %p247
    %p250 = scmp.ne.s32.totalorder %s233, %s249
    %p251 = scmp.eq.s32.totalorder %s20, 0
    %p252 = por %p250, %p251
    %p253 = scmp.le.s32.totalorder 1, %s14
    %p254 = scmp.lt.s32.totalorder %s14, 5
    %p255 = pnand %p253, %p254
    %p256 = pneg %p255
    // Predicated region
    $region9: #{double_conv.4} parent=5 // pred_check
      _
    $region10: #{double_conv.4} parent=5 // pred_check_branch
      %258 = sbr.rel (%p255) target = $region12
    $region11: #{double_conv.4} parent=5 // pred_region
      %s259 = ssub.s32 %s14, 1
      // Predicated region
      $region13: #{double_conv.4} parent=11 // pred_check
        %p260 = pneg %p147
      $region14: #{double_conv.4} parent=11 // pred_check_branch
        %262 = sbr.rel (%p260) target = $region16
      $region15: #{double_conv.4} parent=11 // pred_region
        _
      $region16: #{double_conv.4} parent=11 // pred_fallthru
        _
      // Predicated region
      $region17: #{double_conv.4} parent=11 // pred_check
        %p263 = pneg %p168
      $region18: #{double_conv.4} parent=11 // pred_check_branch
        %265 = sbr.rel (%p263) target = $region20
      $region19: #{double_conv.4} parent=11 // pred_region
        _
      $region20: #{double_conv.4} parent=11 // pred_fallthru
        _
      // Predicated region
      $region21: #{double_conv.4} parent=11 // pred_check
        %p266 = pneg %p189
      $region22: #{double_conv.4} parent=11 // pred_check_branch
        %268 = sbr.rel (%p266) target = $region24
      $region23: #{double_conv.4} parent=11 // pred_region
        _
      $region24: #{double_conv.4} parent=11 // pred_fallthru
        _
    $region12: #{double_conv.4} parent=5 // pred_fallthru
      _
    %p269 = scmp.lt.s32.totalorder %s14, 4
    // Predicated region
    $region25: #{double_conv.4} parent=5 // pred_check
      %p270 = pneg %p269
    $region26: #{double_conv.4} parent=5 // pred_check_branch
      %272 = sbr.rel (%p270) target = $region28
    $region27: #{double_conv.4} parent=5 // pred_region
      // Predicated region
      $region29: #{double_conv.4} parent=27 // pred_check
        %p273 = pneg %p48
      $region30: #{double_conv.4} parent=27 // pred_check_branch
        %275 = sbr.rel (%p273) target = $region32
      $region31: #{double_conv.4} parent=27 // pred_region
        %s276 = smul.u32 8, %s22
        %p277 = scmp.lt.s32.totalorder %s21, 1
        %s278 = scalar_select %p277, %s21, 1
        %p279 = scmp.lt.s32.totalorder %s276, 15
        %s280 = scalar_select %p279, %s276, 15
        %s281 = smul.addr %s280, 2
        %s282 = smul.addr %s278, 32
        %s283 = sadd.s32 %s281, %s282
        %s284 = smul.addr %s283, 8
        %s285 = scalar_lea.vmem %s0, %s284
        %s286 = smul.u32 8, %s22
      $region32: #{double_conv.4} parent=27 // pred_fallthru
        _
      // Predicated region
      $region33: #{double_conv.4} parent=27 // pred_check
        %p287 = pneg %p84
      $region34: #{double_conv.4} parent=27 // pred_check_branch
        %289 = sbr.rel (%p287) target = $region36
      $region35: #{double_conv.4} parent=27 // pred_region
        %s290 = smul.u32 %s22, 8
        %s291 = ssub.s32 %s290, 1
        %p292 = scmp.gt.s32.totalorder %s291, 0
        %s293 = scalar_select %p292, %s291, 0
        %p294 = scmp.lt.s32.totalorder %s21, 1
        %s295 = scalar_select %p294, %s21, 1
        %p296 = scmp.lt.s32.totalorder %s293, 15
        %s297 = scalar_select %p296, %s293, 15
        %s298 = smul.addr %s297, 2
        %s299 = smul.addr %s295, 32
        %s300 = sadd.s32 %s298, %s299
        %s301 = smul.addr %s300, 8
        %s302 = scalar_lea.vmem %s1, %s301
        %s303 = smul.u32 %s22, 8
        %s304 = ssub.s32 %s303, 1
        %p305 = scmp.gt.s32.totalorder %s304, 0
        %s306 = scalar_select %p305, %s304, 0
      $region36: #{double_conv.4} parent=27 // pred_fallthru
        _
      // Predicated region
      $region37: #{double_conv.4} parent=27 // pred_check
        %p307 = pneg %p120
      $region38: #{double_conv.4} parent=27 // pred_check_branch
        %309 = sbr.rel (%p307) target = $region40
      $region39: #{double_conv.4} parent=27 // pred_region
        %s310 = smul.u32 %s22, 8
        %s311 = sadd.s32 %s310, 8
        %p312 = scmp.lt.s32.totalorder %s311, 15
        %s313 = scalar_select %p312, %s311, 15
        %p314 = scmp.lt.s32.totalorder %s21, 1
        %s315 = scalar_select %p314, %s21, 1
        %p316 = scmp.lt.s32.totalorder %s313, 15
        %s317 = scalar_select %p316, %s313, 15
        %s318 = smul.addr %s317, 2
        %s319 = smul.addr %s315, 32
        %s320 = sadd.s32 %s318, %s319
        %s321 = smul.addr %s320, 8
        %s322 = scalar_lea.vmem %s2, %s321
        %s323 = smul.u32 %s22, 8
        %s324 = sadd.s32 %s323, 8
        %p325 = scmp.lt.s32.totalorder %s324, 15
        %s326 = scalar_select %p325, %s324, 15
      $region40: #{double_conv.4} parent=27 // pred_fallthru
        _
    $region28: #{double_conv.4} parent=5 // pred_fallthru
      _
    %p327 = scmp.le.s32.totalorder 1, %s14
    %p328 = scmp.lt.s32.totalorder %s14, 5
    %p329 = pnand %p327, %p328
    %p330 = pneg %p329
    // Predicated region
    $region41: #{double_conv.4} parent=5 // pred_check
      _
    $region42: #{double_conv.4} parent=5 // pred_check_branch
      %332 = sbr.rel (%p329) target = $region44
    $region43: #{double_conv.4} parent=5 // pred_region
      %s333 = ssub.s32 %s14, 1
      %s334 = smul.u32 8, %s24
      %p335 = scmp.lt.s32.totalorder %s23, 1
      %s336 = scalar_select %p335, %s23, 1
      %p337 = scmp.lt.s32.totalorder %s334, 15
      %s338 = scalar_select %p337, %s334, 15
      %s339 = smul.addr %s338, 2
      %s340 = smul.addr %s336, 32
      %s341 = sadd.s32 %s339, %s340
      %s342 = smul.addr %s341, 8
      %s343 = scalar_lea.vmem %s0, %s342
      %p344 = pneg %p54
      %p345 = pneg %p51
      %s346 = smul.u32 %s24, 8
      %s347 = ssub.s32 %s346, 1
      %p348 = scmp.gt.s32.totalorder %s347, 0
      %s349 = scalar_select %p348, %s347, 0
      %p350 = scmp.lt.s32.totalorder %s23, 1
      %s351 = scalar_select %p350, %s23, 1
      %p352 = scmp.lt.s32.totalorder %s349, 15
      %s353 = scalar_select %p352, %s349, 15
      %s354 = smul.addr %s353, 2
      %s355 = smul.addr %s351, 32
      %s356 = sadd.s32 %s354, %s355
      %s357 = smul.addr %s356, 8
      %s358 = scalar_lea.vmem %s1, %s357
      %p359 = pneg %p90
      %p360 = pneg %p87
      %s361 = smul.u32 %s24, 8
      %s362 = sadd.s32 %s361, 8
      %p363 = scmp.lt.s32.totalorder %s362, 15
      %s364 = scalar_select %p363, %s362, 15
      %p365 = scmp.lt.s32.totalorder %s23, 1
      %s366 = scalar_select %p365, %s23, 1
      %p367 = scmp.lt.s32.totalorder %s364, 15
      %s368 = scalar_select %p367, %s364, 15
      %s369 = smul.addr %s368, 2
      %s370 = smul.addr %s366, 32
      %s371 = sadd.s32 %s369, %s370
      %s372 = smul.addr %s371, 8
      %s373 = scalar_lea.vmem %s2, %s372
      %p374 = pneg %p126
      %p375 = pneg %p123
      %p376 = pneg %p147
      %p377 = pneg %p144
      %p378 = pneg %p168
      %p379 = pneg %p165
      %p380 = pneg %p189
      %p381 = pneg %p186
      %p382 = pneg %p217
      %p383 = pneg %p214
      %s384 = smul.u32 8, %s24
      %p385 = scmp.lt.s32.totalorder %s23, 1
      %s386 = scalar_select %p385, %s23, 1
      %p387 = scmp.lt.s32.totalorder %s384, 15
      %s388 = scalar_select %p387, %s384, 15
      %s389 = smul.addr %s388, 2
      %s390 = smul.addr %s386, 32
      %s391 = sadd.s32 %s389, %s390
      %s392 = smul.addr %s391, 8
      %s393 = scalar_lea.vmem %s6, %s392
      %p394 = pneg %p245
      %p395 = pneg %p242
      %p396 = scmp.lt.s32.totalorder %s23, 1
      %s397 = scalar_select %p396, %s23, 1
      %p398 = scmp.lt.s32.totalorder %s24, 1
      %s399 = scalar_select %p398, %s24, 1
      %s400 = smul.addr %s397, 2
      %s401 = sadd.s32 %s399, %s400
      %s402 = smul.addr %s401, 2
      %s403 = scalar_lea.vmem %s7, %s402
      %s404 = smul.u32 8, %s24
      %p405 = scmp.lt.s32.totalorder %s23, 1
      %s406 = scalar_select %p405, %s23, 1
      %p407 = scmp.lt.s32.totalorder %s404, 15
      %s408 = scalar_select %p407, %s404, 15
      %s409 = smul.addr %s408, 2
      %s410 = smul.addr %s406, 32
      %s411 = sadd.s32 %s409, %s410
      %s412 = smul.addr %s411, 8
      %s413 = scalar_lea.vmem %s0, %s412
      %s414 = smul.u32 8, %s24
      %s415 = smul.u32 %s24, 8
      %s416 = ssub.s32 %s415, 1
      %p417 = scmp.gt.s32.totalorder %s416, 0
      %s418 = scalar_select %p417, %s416, 0
      %p419 = scmp.lt.s32.totalorder %s23, 1
      %s420 = scalar_select %p419, %s23, 1
      %p421 = scmp.lt.s32.totalorder %s418, 15
      %s422 = scalar_select %p421, %s418, 15
      %s423 = smul.addr %s422, 2
      %s424 = smul.addr %s420, 32
      %s425 = sadd.s32 %s423, %s424
      %s426 = smul.addr %s425, 8
      %s427 = scalar_lea.vmem %s1, %s426
      %s428 = smul.u32 %s24, 8
      %s429 = ssub.s32 %s428, 1
      %p430 = scmp.gt.s32.totalorder %s429, 0
      %s431 = scalar_select %p430, %s429, 0
      %s432 = smul.u32 %s24, 8
      %s433 = sadd.s32 %s432, 8
      %p434 = scmp.lt.s32.totalorder %s433, 15
      %s435 = scalar_select %p434, %s433, 15
      %p436 = scmp.lt.s32.totalorder %s23, 1
      %s437 = scalar_select %p436, %s23, 1
      %p438 = scmp.lt.s32.totalorder %s435, 15
      %s439 = scalar_select %p438, %s435, 15
      %s440 = smul.addr %s439, 2
      %s441 = smul.addr %s437, 32
      %s442 = sadd.s32 %s440, %s441
      %s443 = smul.addr %s442, 8
      %s444 = scalar_lea.vmem %s2, %s443
      %s445 = smul.u32 %s24, 8
      %s446 = sadd.s32 %s445, 8
      %p447 = scmp.lt.s32.totalorder %s446, 15
      %s448 = scalar_select %p447, %s446, 15
      %s449 = smul.u32 8, %s24
      %p450 = scmp.lt.s32.totalorder %s23, 1
      %s451 = scalar_select %p450, %s23, 1
      %p452 = scmp.lt.s32.totalorder %s449, 15
      %s453 = scalar_select %p452, %s449, 15
      %s454 = smul.addr %s453, 2
      %s455 = smul.addr %s451, 32
      %s456 = sadd.s32 %s454, %s455
      %s457 = smul.addr %s456, 8
      %s458 = scalar_lea.vmem %s6, %s457
      %s459 = smul.u32 8, %s24
      %p460 = scmp.lt.s32.totalorder %s23, 1
      %s461 = scalar_select %p460, %s23, 1
      %p462 = scmp.lt.s32.totalorder %s24, 1
      %s463 = scalar_select %p462, %s24, 1
      %s464 = smul.addr %s461, 2
      %s465 = sadd.s32 %s463, %s464
      %s466 = smul.addr %s465, 2
      %s467 = scalar_lea.vmem %s7, %s466
      %v468 = vld [vmem:[%s413] sm:$0xff]
      %v469 = vld [vmem:[%s413 + $0x8] sm:$0xff]
      %v470 = vld [vmem:[%s413 + $0x10] sm:$0xff]
      %v471 = vld [vmem:[%s413 + $0x18] sm:$0xff]
      %v472 = vld [vmem:[%s413 + $0x20] sm:$0xff]
      %v473 = vld [vmem:[%s413 + $0x28] sm:$0xff]
      %v474 = vld [vmem:[%s413 + $0x30] sm:$0xff]
      %v475 = vld [vmem:[%s413 + $0x38] sm:$0xff]
      %v476 = vld [vmem:[%s413 + $0x40] sm:$0xff]
      %v477 = vld [vmem:[%s413 + $0x48] sm:$0xff]
      %v478 = vld [vmem:[%s413 + $0x50] sm:$0xff]
      %v479 = vld [vmem:[%s413 + $0x58] sm:$0xff]
      %v480 = vld [vmem:[%s413 + $0x60] sm:$0xff]
      %v481 = vld [vmem:[%s413 + $0x68] sm:$0xff]
      %v482 = vld [vmem:[%s413 + $0x70] sm:$0xff]
      %v483 = vld [vmem:[%s413 + $0x78] sm:$0xff]
      %v484 = vld [vmem:[%s3] sm:$0x1]
      %v486 = vlaneseq
      %v487 = vshrl.u32 %v486, 7
      %v488 = vsub.s32 0, %v487
      %v489 = vrot.slane %v484, %v488
      %v491 = vmul.f32 %v468, %v489
      %v492 = vmul.f32 %v469, %v489
      %v493 = vmul.f32 %v470, %v489
      %v494 = vmul.f32 %v471, %v489
      %v495 = vmul.f32 %v472, %v489
      %v496 = vmul.f32 %v473, %v489
      %v497 = vmul.f32 %v474, %v489
      %v498 = vmul.f32 %v475, %v489
      %v499 = vmul.f32 %v476, %v489
      %v500 = vmul.f32 %v477, %v489
      %v501 = vmul.f32 %v478, %v489
      %v502 = vmul.f32 %v479, %v489
      %v503 = vmul.f32 %v480, %v489
      %v504 = vmul.f32 %v481, %v489
      %v505 = vmul.f32 %v482, %v489
      %v506 = vmul.f32 %v483, %v489
      %v507 = vld [vmem:[%s4] sm:$0x1]
      %v509 = vlaneseq
      %v510 = vshrl.u32 %v509, 7
      %v511 = vsub.s32 0, %v510
      %v512 = vrot.slane %v507, %v511
      %v514 = vadd.f32 %v491, %v512
      %v515 = vadd.f32 %v492, %v512
      %v516 = vadd.f32 %v493, %v512
      %v517 = vadd.f32 %v494, %v512
      %v518 = vadd.f32 %v495, %v512
      %v519 = vadd.f32 %v496, %v512
      %v520 = vadd.f32 %v497, %v512
      %v521 = vadd.f32 %v498, %v512
      %v522 = vadd.f32 %v499, %v512
      %v523 = vadd.f32 %v500, %v512
      %v524 = vadd.f32 %v501, %v512
      %v525 = vadd.f32 %v502, %v512
      %v526 = vadd.f32 %v503, %v512
      %v527 = vadd.f32 %v504, %v512
      %v528 = vadd.f32 %v505, %v512
      %v529 = vadd.f32 %v506, %v512
      %v530 = vmax.f32 %v514, 0.0
      %v531 = vmax.f32 %v515, 0.0
      %v532 = vmax.f32 %v516, 0.0
      %v533 = vmax.f32 %v517, 0.0
      %v534 = vmax.f32 %v518, 0.0
      %v535 = vmax.f32 %v519, 0.0
      %v536 = vmax.f32 %v520, 0.0
      %v537 = vmax.f32 %v521, 0.0
      %v538 = vmax.f32 %v522, 0.0
      %v539 = vmax.f32 %v523, 0.0
      %v540 = vmax.f32 %v524, 0.0
      %v541 = vmax.f32 %v525, 0.0
      %v542 = vmax.f32 %v526, 0.0
      %v543 = vmax.f32 %v527, 0.0
      %v544 = vmax.f32 %v528, 0.0
      %v545 = vmax.f32 %v529, 0.0
      %v546 = vld [vmem:[%s427] sm:$0xff]
      %v547 = vld [vmem:[%s427 + $0x8] sm:$0xff]
      %v548 = vmul.f32 %v546, %v489
      %v549 = vmul.f32 %v547, %v489
      %v550 = vadd.f32 %v548, %v512
      %v551 = vadd.f32 %v549, %v512
      %v552 = vmax.f32 %v550, 0.0
      %v553 = vmax.f32 %v551, 0.0
      %p554 = scmp.gt.s32.totalorder %s24, 0
      %s555 = scalar_select %p554, 1, 0
      %s556 = scvt.s32.f32 %s555
      %v557 = vstv %s556
      %v558 = vmul.f32 %v552, %v557
      %v559 = vmul.f32 %v553, %v557
      %v560 = vld [vmem:[%s444] sm:$0xff]
      %v561 = vld [vmem:[%s444 + $0x8] sm:$0xff]
      %v562 = vmul.f32 %v560, %v489
      %v563 = vmul.f32 %v561, %v489
      %v564 = vadd.f32 %v562, %v512
      %v565 = vadd.f32 %v563, %v512
      %v566 = vmax.f32 %v564, 0.0
      %v567 = vmax.f32 %v565, 0.0
      %p568 = scmp.lt.s32.totalorder %s24, 1
      %s569 = scalar_select %p568, 1, 0
      %s570 = scvt.s32.f32 %s569
      %v571 = vstv %s570
      %v572 = vmul.f32 %v566, %v571
      %v573 = vmul.f32 %v567, %v571
      %vm594 = vcmask 1040384
      %v595 = vrot.slane %v558, 7
      %v596 = vrot.slane %v559, 7
      %v597 = vsel %vm594, %v595, %v596
      %v598 = vrot.slane %v530, 7
      %v599 = vrot.slane %v531, 7
      %v600 = vsel %vm594, %v598, %v599
      %v601 = vrot.slane %v532, 7
      %v602 = vrot.slane %v533, 7
      %v603 = vsel %vm594, %v601, %v602
      %v604 = vrot.slane %v534, 7
      %v605 = vrot.slane %v535, 7
      %v606 = vsel %vm594, %v604, %v605
      %v607 = vrot.slane %v536, 7
      %v608 = vrot.slane %v537, 7
      %v609 = vsel %vm594, %v607, %v608
      %v610 = vrot.slane %v538, 7
      %v611 = vrot.slane %v539, 7
      %v612 = vsel %vm594, %v610, %v611
      %v613 = vrot.slane %v540, 7
      %v614 = vrot.slane %v541, 7
      %v615 = vsel %vm594, %v613, %v614
      %v616 = vrot.slane %v542, 7
      %v617 = vrot.slane %v543, 7
      %v618 = vsel %vm594, %v616, %v617
      %v619 = vrot.slane %v544, 7
      %v620 = vrot.slane %v545, 7
      %v621 = vsel %vm594, %v619, %v620
      %v622 = vrot.slane %v572, 7
      %v623 = vrot.slane %v573, 7
      %v624 = vsel %vm594, %v622, %v623
      %v653 = vsel %vm594, 0.0, %v595
      %v654 = vsel %vm594, 0.0, %v598
      %v655 = vsel %vm594, 0.0, %v601
      %v656 = vsel %vm594, 0.0, %v604
      %v657 = vsel %vm594, 0.0, %v607
      %v658 = vsel %vm594, 0.0, %v610
      %v659 = vsel %vm594, 0.0, %v613
      %v660 = vsel %vm594, 0.0, %v616
      %v661 = vsel %vm594, 0.0, %v619
      %v662 = vsel %vm594, 0.0, %v622
      %v663 = vsel %vm594, %v596, 0.0
      %v664 = vsel %vm594, %v599, 0.0
      %v665 = vsel %vm594, %v602, 0.0
      %v666 = vsel %vm594, %v605, 0.0
      %v667 = vsel %vm594, %v608, 0.0
      %v668 = vsel %vm594, %v611, 0.0
      %v669 = vsel %vm594, %v614, 0.0
      %v670 = vsel %vm594, %v617, 0.0
      %v671 = vsel %vm594, %v620, 0.0
      %v672 = vsel %vm594, %v623, 0.0
      %vm689 = vcmask 1046528
      %v690 = vrot.slane %v653, 1
      %v691 = vrot.slane %v597, 1
      %v692 = vsel %vm689, %v690, %v691
      %v693 = vrot.slane %v663, 1
      %v694 = vsel %vm689, %v691, %v693
      %v695 = vrot.slane %v654, 1
      %v696 = vrot.slane %v600, 1
      %v697 = vsel %vm689, %v695, %v696
      %v698 = vrot.slane %v664, 1
      %v699 = vsel %vm689, %v696, %v698
      %v700 = vrot.slane %v655, 1
      %v701 = vrot.slane %v603, 1
      %v702 = vsel %vm689, %v700, %v701
      %v703 = vrot.slane %v665, 1
      %v704 = vsel %vm689, %v701, %v703
      %v705 = vrot.slane %v656, 1
      %v706 = vrot.slane %v606, 1
      %v707 = vsel %vm689, %v705, %v706
      %v708 = vrot.slane %v666, 1
      %v709 = vsel %vm689, %v706, %v708
      %v710 = vrot.slane %v657, 1
      %v711 = vrot.slane %v609, 1
      %v712 = vsel %vm689, %v710, %v711
      %v713 = vrot.slane %v667, 1
      %v714 = vsel %vm689, %v711, %v713
      %v715 = vrot.slane %v658, 1
      %v716 = vrot.slane %v612, 1
      %v717 = vsel %vm689, %v715, %v716
      %v718 = vrot.slane %v668, 1
      %v719 = vsel %vm689, %v716, %v718
      %v720 = vrot.slane %v659, 1
      %v721 = vrot.slane %v615, 1
      %v722 = vsel %vm689, %v720, %v721
      %v723 = vrot.slane %v669, 1
      %v724 = vsel %vm689, %v721, %v723
      %v725 = vrot.slane %v660, 1
      %v726 = vrot.slane %v618, 1
      %v727 = vsel %vm689, %v725, %v726
      %v728 = vrot.slane %v670, 1
      %v729 = vsel %vm689, %v726, %v728
      %vm730 = vcmask 1045504
      %v731 = vrot.slane %v653, 2
      %v732 = vrot.slane %v597, 2
      %v733 = vsel %vm730, %v731, %v732
      %v734 = vrot.slane %v663, 2
      %v735 = vsel %vm730, %v732, %v734
      %v736 = vrot.slane %v654, 2
      %v737 = vrot.slane %v600, 2
      %v738 = vsel %vm730, %v736, %v737
      %v739 = vrot.slane %v664, 2
      %v740 = vsel %vm730, %v737, %v739
      %v741 = vrot.slane %v655, 2
      %v742 = vrot.slane %v603, 2
      %v743 = vsel %vm730, %v741, %v742
      %v744 = vrot.slane %v665, 2
      %v745 = vsel %vm730, %v742, %v744
      %v746 = vrot.slane %v656, 2
      %v747 = vrot.slane %v606, 2
      %v748 = vsel %vm730, %v746, %v747
      %v749 = vrot.slane %v666, 2
      %v750 = vsel %vm730, %v747, %v749
      %v751 = vrot.slane %v657, 2
      %v752 = vrot.slane %v609, 2
      %v753 = vsel %vm730, %v751, %v752
      %v754 = vrot.slane %v667, 2
      %v755 = vsel %vm730, %v752, %v754
      %v756 = vrot.slane %v658, 2
      %v757 = vrot.slane %v612, 2
      %v758 = vsel %vm730, %v756, %v757
      %v759 = vrot.slane %v668, 2
      %v760 = vsel %vm730, %v757, %v759
      %v761 = vrot.slane %v659, 2
      %v762 = vrot.slane %v615, 2
      %v763 = vsel %vm730, %v761, %v762
      %v764 = vrot.slane %v669, 2
      %v765 = vsel %vm730, %v762, %v764
      %v766 = vrot.slane %v660, 2
      %v767 = vrot.slane %v618, 2
      %v768 = vsel %vm730, %v766, %v767
      %v769 = vrot.slane %v670, 2
      %v770 = vsel %vm730, %v767, %v769
      %v773 = vrot.slane %v661, 1
      %v774 = vrot.slane %v621, 1
      %v775 = vsel %vm689, %v773, %v774
      %v776 = vrot.slane %v671, 1
      %v777 = vsel %vm689, %v774, %v776
      %v778 = vrot.slane %v661, 2
      %v779 = vrot.slane %v621, 2
      %v780 = vsel %vm730, %v778, %v779
      %v781 = vrot.slane %v671, 2
      %v782 = vsel %vm730, %v779, %v781
      %v785 = vrot.slane %v662, 1
      %v786 = vrot.slane %v624, 1
      %v787 = vsel %vm689, %v785, %v786
      %v788 = vrot.slane %v672, 1
      %v789 = vsel %vm689, %v786, %v788
      %v790 = vrot.slane %v662, 2
      %v791 = vrot.slane %v624, 2
      %v792 = vsel %vm730, %v790, %v791
      %v793 = vrot.slane %v672, 2
      %v794 = vsel %vm730, %v791, %v793
      %795 = vrot.lane.b32.xlu0 %v692, 8
      %v796 = vpop.permute.xlu0 %795
      %797 = vrot.lane.b32.xlu0 %v694, 8
      %v798 = vpop.permute.xlu0 %797
      %799 = vrot.lane.b32.xlu0 %v697, 8
      %v800 = vpop.permute.xlu0 %799
      %801 = vrot.lane.b32.xlu0 %v699, 8
      %v802 = vpop.permute.xlu0 %801
      %803 = vrot.lane.b32.xlu0 %v702, 8
      %v804 = vpop.permute.xlu0 %803
      %805 = vrot.lane.b32.xlu0 %v704, 8
      %v806 = vpop.permute.xlu0 %805
      %807 = vrot.lane.b32.xlu0 %v707, 8
      %v808 = vpop.permute.xlu0 %807
      %809 = vrot.lane.b32.xlu0 %v709, 8
      %v810 = vpop.permute.xlu0 %809
      %811 = vrot.lane.b32.xlu0 %v712, 8
      %v812 = vpop.permute.xlu0 %811
      %813 = vrot.lane.b32.xlu0 %v714, 8
      %v814 = vpop.permute.xlu0 %813
      %815 = vrot.lane.b32.xlu0 %v717, 8
      %v816 = vpop.permute.xlu0 %815
      %817 = vrot.lane.b32.xlu0 %v719, 8
      %v818 = vpop.permute.xlu0 %817
      %819 = vrot.lane.b32.xlu0 %v722, 8
      %v820 = vpop.permute.xlu0 %819
      %821 = vrot.lane.b32.xlu0 %v724, 8
      %v822 = vpop.permute.xlu0 %821
      %823 = vrot.lane.b32.xlu0 %v727, 8
      %v824 = vpop.permute.xlu0 %823
      %825 = vrot.lane.b32.xlu0 %v729, 8
      %v826 = vpop.permute.xlu0 %825
      %843 = vrot.lane.b32.xlu0 %v733, 16
      %v844 = vpop.permute.xlu0 %843
      %845 = vrot.lane.b32.xlu0 %v735, 16
      %v846 = vpop.permute.xlu0 %845
      %847 = vrot.lane.b32.xlu0 %v738, 16
      %v848 = vpop.permute.xlu0 %847
      %849 = vrot.lane.b32.xlu0 %v740, 16
      %v850 = vpop.permute.xlu0 %849
      %851 = vrot.lane.b32.xlu0 %v743, 16
      %v852 = vpop.permute.xlu0 %851
      %853 = vrot.lane.b32.xlu0 %v745, 16
      %v854 = vpop.permute.xlu0 %853
      %855 = vrot.lane.b32.xlu0 %v748, 16
      %v856 = vpop.permute.xlu0 %855
      %857 = vrot.lane.b32.xlu0 %v750, 16
      %v858 = vpop.permute.xlu0 %857
      %859 = vrot.lane.b32.xlu0 %v753, 16
      %v860 = vpop.permute.xlu0 %859
      %861 = vrot.lane.b32.xlu0 %v755, 16
      %v862 = vpop.permute.xlu0 %861
      %863 = vrot.lane.b32.xlu0 %v758, 16
      %v864 = vpop.permute.xlu0 %863
      %865 = vrot.lane.b32.xlu0 %v760, 16
      %v866 = vpop.permute.xlu0 %865
      %867 = vrot.lane.b32.xlu0 %v763, 16
      %v868 = vpop.permute.xlu0 %867
      %869 = vrot.lane.b32.xlu0 %v765, 16
      %v870 = vpop.permute.xlu0 %869
      %871 = vrot.lane.b32.xlu0 %v768, 16
      %v872 = vpop.permute.xlu0 %871
      %873 = vrot.lane.b32.xlu0 %v770, 16
      %v874 = vpop.permute.xlu0 %873
      %891 = vrot.lane.b32.xlu0 %v654, 24
      %v892 = vpop.permute.xlu0 %891
      %893 = vrot.lane.b32.xlu0 %v600, 24
      %v894 = vpop.permute.xlu0 %893
      %895 = vrot.lane.b32.xlu0 %v655, 24
      %v896 = vpop.permute.xlu0 %895
      %897 = vrot.lane.b32.xlu0 %v603, 24
      %v898 = vpop.permute.xlu0 %897
      %899 = vrot.lane.b32.xlu0 %v656, 24
      %v900 = vpop.permute.xlu0 %899
      %901 = vrot.lane.b32.xlu0 %v606, 24
      %v902 = vpop.permute.xlu0 %901
      %903 = vrot.lane.b32.xlu0 %v657, 24
      %v904 = vpop.permute.xlu0 %903
      %905 = vrot.lane.b32.xlu0 %v609, 24
      %v906 = vpop.permute.xlu0 %905
      %907 = vrot.lane.b32.xlu0 %v658, 24
      %v908 = vpop.permute.xlu0 %907
      %909 = vrot.lane.b32.xlu0 %v612, 24
      %v910 = vpop.permute.xlu0 %909
      %911 = vrot.lane.b32.xlu0 %v659, 24
      %v912 = vpop.permute.xlu0 %911
      %913 = vrot.lane.b32.xlu0 %v615, 24
      %v914 = vpop.permute.xlu0 %913
      %915 = vrot.lane.b32.xlu0 %v660, 24
      %v916 = vpop.permute.xlu0 %915
      %917 = vrot.lane.b32.xlu0 %v618, 24
      %v918 = vpop.permute.xlu0 %917
      %919 = vrot.lane.b32.xlu0 %v661, 24
      %v920 = vpop.permute.xlu0 %919
      %921 = vrot.lane.b32.xlu0 %v621, 24
      %v922 = vpop.permute.xlu0 %921
      %939 = vrot.lane.b32.xlu0 %v697, 32
      %v940 = vpop.permute.xlu0 %939
      %941 = vrot.lane.b32.xlu0 %v699, 32
      %v942 = vpop.permute.xlu0 %941
      %943 = vrot.lane.b32.xlu0 %v702, 32
      %v944 = vpop.permute.xlu0 %943
      %945 = vrot.lane.b32.xlu0 %v704, 32
      %v946 = vpop.permute.xlu0 %945
      %947 = vrot.lane.b32.xlu0 %v707, 32
      %v948 = vpop.permute.xlu0 %947
      %949 = vrot.lane.b32.xlu0 %v709, 32
      %v950 = vpop.permute.xlu0 %949
      %951 = vrot.lane.b32.xlu0 %v712, 32
      %v952 = vpop.permute.xlu0 %951
      %953 = vrot.lane.b32.xlu0 %v714, 32
      %v954 = vpop.permute.xlu0 %953
      %955 = vrot.lane.b32.xlu0 %v717, 32
      %v956 = vpop.permute.xlu0 %955
      %957 = vrot.lane.b32.xlu0 %v719, 32
      %v958 = vpop.permute.xlu0 %957
      %959 = vrot.lane.b32.xlu0 %v722, 32
      %v960 = vpop.permute.xlu0 %959
      %961 = vrot.lane.b32.xlu0 %v724, 32
      %v962 = vpop.permute.xlu0 %961
      %963 = vrot.lane.b32.xlu0 %v727, 32
      %v964 = vpop.permute.xlu0 %963
      %965 = vrot.lane.b32.xlu0 %v729, 32
      %v966 = vpop.permute.xlu0 %965
      %967 = vrot.lane.b32.xlu0 %v775, 32
      %v968 = vpop.permute.xlu0 %967
      %969 = vrot.lane.b32.xlu0 %v777, 32
      %v970 = vpop.permute.xlu0 %969
      %987 = vrot.lane.b32.xlu0 %v738, 40
      %v988 = vpop.permute.xlu0 %987
      %989 = vrot.lane.b32.xlu0 %v740, 40
      %v990 = vpop.permute.xlu0 %989
      %991 = vrot.lane.b32.xlu0 %v743, 40
      %v992 = vpop.permute.xlu0 %991
      %993 = vrot.lane.b32.xlu0 %v745, 40
      %v994 = vpop.permute.xlu0 %993
      %995 = vrot.lane.b32.xlu0 %v748, 40
      %v996 = vpop.permute.xlu0 %995
      %997 = vrot.lane.b32.xlu0 %v750, 40
      %v998 = vpop.permute.xlu0 %997
      %999 = vrot.lane.b32.xlu0 %v753, 40
      %v1000 = vpop.permute.xlu0 %999
      %1001 = vrot.lane.b32.xlu0 %v755, 40
      %v1002 = vpop.permute.xlu0 %1001
      %1003 = vrot.lane.b32.xlu0 %v758, 40
      %v1004 = vpop.permute.xlu0 %1003
      %1005 = vrot.lane.b32.xlu0 %v760, 40
      %v1006 = vpop.permute.xlu0 %1005
      %1007 = vrot.lane.b32.xlu0 %v763, 40
      %v1008 = vpop.permute.xlu0 %1007
      %1009 = vrot.lane.b32.xlu0 %v765, 40
      %v1010 = vpop.permute.xlu0 %1009
      %1011 = vrot.lane.b32.xlu0 %v768, 40
      %v1012 = vpop.permute.xlu0 %1011
      %1013 = vrot.lane.b32.xlu0 %v770, 40
      %v1014 = vpop.permute.xlu0 %1013
      %1015 = vrot.lane.b32.xlu0 %v780, 40
      %v1016 = vpop.permute.xlu0 %1015
      %1017 = vrot.lane.b32.xlu0 %v782, 40
      %v1018 = vpop.permute.xlu0 %1017
      %1035 = vrot.lane.b32.xlu0 %v655, 48
      %v1036 = vpop.permute.xlu0 %1035
      %1037 = vrot.lane.b32.xlu0 %v603, 48
      %v1038 = vpop.permute.xlu0 %1037
      %1039 = vrot.lane.b32.xlu0 %v656, 48
      %v1040 = vpop.permute.xlu0 %1039
      %1041 = vrot.lane.b32.xlu0 %v606, 48
      %v1042 = vpop.permute.xlu0 %1041
      %1043 = vrot.lane.b32.xlu0 %v657, 48
      %v1044 = vpop.permute.xlu0 %1043
      %1045 = vrot.lane.b32.xlu0 %v609, 48
      %v1046 = vpop.permute.xlu0 %1045
      %1047 = vrot.lane.b32.xlu0 %v658, 48
      %v1048 = vpop.permute.xlu0 %1047
      %1049 = vrot.lane.b32.xlu0 %v612, 48
      %v1050 = vpop.permute.xlu0 %1049
      %1051 = vrot.lane.b32.xlu0 %v659, 48
      %v1052 = vpop.permute.xlu0 %1051
      %1053 = vrot.lane.b32.xlu0 %v615, 48
      %v1054 = vpop.permute.xlu0 %1053
      %1055 = vrot.lane.b32.xlu0 %v660, 48
      %v1056 = vpop.permute.xlu0 %1055
      %1057 = vrot.lane.b32.xlu0 %v618, 48
      %v1058 = vpop.permute.xlu0 %1057
      %1059 = vrot.lane.b32.xlu0 %v661, 48
      %v1060 = vpop.permute.xlu0 %1059
      %1061 = vrot.lane.b32.xlu0 %v621, 48
      %v1062 = vpop.permute.xlu0 %1061
      %1063 = vrot.lane.b32.xlu0 %v662, 48
      %v1064 = vpop.permute.xlu0 %1063
      %1065 = vrot.lane.b32.xlu0 %v624, 48
      %v1066 = vpop.permute.xlu0 %1065
      %1083 = vrot.lane.b32.xlu0 %v702, 56
      %v1084 = vpop.permute.xlu0 %1083
      %1085 = vrot.lane.b32.xlu0 %v704, 56
      %v1086 = vpop.permute.xlu0 %1085
      %1087 = vrot.lane.b32.xlu0 %v707, 56
      %v1088 = vpop.permute.xlu0 %1087
      %1089 = vrot.lane.b32.xlu0 %v709, 56
      %v1090 = vpop.permute.xlu0 %1089
      %1091 = vrot.lane.b32.xlu0 %v712, 56
      %v1092 = vpop.permute.xlu0 %1091
      %1093 = vrot.lane.b32.xlu0 %v714, 56
      %v1094 = vpop.permute.xlu0 %1093
      %1095 = vrot.lane.b32.xlu0 %v717, 56
      %v1096 = vpop.permute.xlu0 %1095
      %1097 = vrot.lane.b32.xlu0 %v719, 56
      %v1098 = vpop.permute.xlu0 %1097
      %1099 = vrot.lane.b32.xlu0 %v722, 56
      %v1100 = vpop.permute.xlu0 %1099
      %1101 = vrot.lane.b32.xlu0 %v724, 56
      %v1102 = vpop.permute.xlu0 %1101
      %1103 = vrot.lane.b32.xlu0 %v727, 56
      %v1104 = vpop.permute.xlu0 %1103
      %1105 = vrot.lane.b32.xlu0 %v729, 56
      %v1106 = vpop.permute.xlu0 %1105
      %1107 = vrot.lane.b32.xlu0 %v775, 56
      %v1108 = vpop.permute.xlu0 %1107
      %1109 = vrot.lane.b32.xlu0 %v777, 56
      %v1110 = vpop.permute.xlu0 %1109
      %1111 = vrot.lane.b32.xlu0 %v787, 56
      %v1112 = vpop.permute.xlu0 %1111
      %1113 = vrot.lane.b32.xlu0 %v789, 56
      %v1114 = vpop.permute.xlu0 %1113
      %1131 = vrot.lane.b32.xlu0 %v743, 64
      %v1132 = vpop.permute.xlu0 %1131
      %1133 = vrot.lane.b32.xlu0 %v745, 64
      %v1134 = vpop.permute.xlu0 %1133
      %1135 = vrot.lane.b32.xlu0 %v748, 64
      %v1136 = vpop.permute.xlu0 %1135
      %1137 = vrot.lane.b32.xlu0 %v750, 64
      %v1138 = vpop.permute.xlu0 %1137
      %1139 = vrot.lane.b32.xlu0 %v753, 64
      %v1140 = vpop.permute.xlu0 %1139
      %1141 = vrot.lane.b32.xlu0 %v755, 64
      %v1142 = vpop.permute.xlu0 %1141
      %1143 = vrot.lane.b32.xlu0 %v758, 64
      %v1144 = vpop.permute.xlu0 %1143
      %1145 = vrot.lane.b32.xlu0 %v760, 64
      %v1146 = vpop.permute.xlu0 %1145
      %1147 = vrot.lane.b32.xlu0 %v763, 64
      %v1148 = vpop.permute.xlu0 %1147
      %1149 = vrot.lane.b32.xlu0 %v765, 64
      %v1150 = vpop.permute.xlu0 %1149
      %1151 = vrot.lane.b32.xlu0 %v768, 64
      %v1152 = vpop.permute.xlu0 %1151
      %1153 = vrot.lane.b32.xlu0 %v770, 64
      %v1154 = vpop.permute.xlu0 %1153
      %1155 = vrot.lane.b32.xlu0 %v780, 64
      %v1156 = vpop.permute.xlu0 %1155
      %1157 = vrot.lane.b32.xlu0 %v782, 64
      %v1158 = vpop.permute.xlu0 %1157
      %1159 = vrot.lane.b32.xlu0 %v792, 64
      %v1160 = vpop.permute.xlu0 %1159
      %1161 = vrot.lane.b32.xlu0 %v794, 64
      %v1162 = vpop.permute.xlu0 %1161
      %vm1179 = vcmask 64512
      %v1180 = vsel %vm1179, %v653, %v796
      %v1181 = vsel %vm1179, %v597, %v798
      %v1182 = vsel %vm1179, %v654, %v800
      %v1183 = vsel %vm1179, %v600, %v802
      %v1184 = vsel %vm1179, %v655, %v804
      %v1185 = vsel %vm1179, %v603, %v806
      %v1186 = vsel %vm1179, %v656, %v808
      %v1187 = vsel %vm1179, %v606, %v810
      %v1188 = vsel %vm1179, %v657, %v812
      %v1189 = vsel %vm1179, %v609, %v814
      %v1190 = vsel %vm1179, %v658, %v816
      %v1191 = vsel %vm1179, %v612, %v818
      %v1192 = vsel %vm1179, %v659, %v820
      %v1193 = vsel %vm1179, %v615, %v822
      %v1194 = vsel %vm1179, %v660, %v824
      %v1195 = vsel %vm1179, %v618, %v826
      %vm1196 = vcmask 130048
      %v1197 = vsel %vm1196, %v1180, %v844
      %v1198 = vsel %vm1196, %v1181, %v846
      %v1199 = vsel %vm1196, %v1182, %v848
      %v1200 = vsel %vm1196, %v1183, %v850
      %v1201 = vsel %vm1196, %v1184, %v852
      %v1202 = vsel %vm1196, %v1185, %v854
      %v1203 = vsel %vm1196, %v1186, %v856
      %v1204 = vsel %vm1196, %v1187, %v858
      %v1205 = vsel %vm1196, %v1188, %v860
      %v1206 = vsel %vm1196, %v1189, %v862
      %v1207 = vsel %vm1196, %v1190, %v864
      %v1208 = vsel %vm1196, %v1191, %v866
      %v1209 = vsel %vm1196, %v1192, %v868
      %v1210 = vsel %vm1196, %v1193, %v870
      %v1211 = vsel %vm1196, %v1194, %v872
      %v1212 = vsel %vm1196, %v1195, %v874
      %vm1213 = vcmask 195584
      %v1214 = vsel %vm1213, %v1197, %v892
      %v1215 = vsel %vm1213, %v1198, %v894
      %v1216 = vsel %vm1213, %v1199, %v896
      %v1217 = vsel %vm1213, %v1200, %v898
      %v1218 = vsel %vm1213, %v1201, %v900
      %v1219 = vsel %vm1213, %v1202, %v902
      %v1220 = vsel %vm1213, %v1203, %v904
      %v1221 = vsel %vm1213, %v1204, %v906
      %v1222 = vsel %vm1213, %v1205, %v908
      %v1223 = vsel %vm1213, %v1206, %v910
      %v1224 = vsel %vm1213, %v1207, %v912
      %v1225 = vsel %vm1213, %v1208, %v914
      %v1226 = vsel %vm1213, %v1209, %v916
      %v1227 = vsel %vm1213, %v1210, %v918
      %v1228 = vsel %vm1213, %v1211, %v920
      %v1229 = vsel %vm1213, %v1212, %v922
      %vm1230 = vcmask 261120
      %v1231 = vsel %vm1230, %v1214, %v940
      %v1232 = vsel %vm1230, %v1215, %v942
      %v1233 = vsel %vm1230, %v1216, %v944
      %v1234 = vsel %vm1230, %v1217, %v946
      %v1235 = vsel %vm1230, %v1218, %v948
      %v1236 = vsel %vm1230, %v1219, %v950
      %v1237 = vsel %vm1230, %v1220, %v952
      %v1238 = vsel %vm1230, %v1221, %v954
      %v1239 = vsel %vm1230, %v1222, %v956
      %v1240 = vsel %vm1230, %v1223, %v958
      %v1241 = vsel %vm1230, %v1224, %v960
      %v1242 = vsel %vm1230, %v1225, %v962
      %v1243 = vsel %vm1230, %v1226, %v964
      %v1244 = vsel %vm1230, %v1227, %v966
      %v1245 = vsel %vm1230, %v1228, %v968
      %v1246 = vsel %vm1230, %v1229, %v970
      %vm1247 = vcmask 326656
      %v1248 = vsel %vm1247, %v1231, %v988
      %v1249 = vsel %vm1247, %v1232, %v990
      %v1250 = vsel %vm1247, %v1233, %v992
      %v1251 = vsel %vm1247, %v1234, %v994
      %v1252 = vsel %vm1247, %v1235, %v996
      %v1253 = vsel %vm1247, %v1236, %v998
      %v1254 = vsel %vm1247, %v1237, %v1000
      %v1255 = vsel %vm1247, %v1238, %v1002
      %v1256 = vsel %vm1247, %v1239, %v1004
      %v1257 = vsel %vm1247, %v1240, %v1006
      %v1258 = vsel %vm1247, %v1241, %v1008
      %v1259 = vsel %vm1247, %v1242, %v1010
      %v1260 = vsel %vm1247, %v1243, %v1012
      %v1261 = vsel %vm1247, %v1244, %v1014
      %v1262 = vsel %vm1247, %v1245, %v1016
      %v1263 = vsel %vm1247, %v1246, %v1018
      %vm1264 = vcmask 392192
      %v1265 = vsel %vm1264, %v1248, %v1036
      %v1266 = vsel %vm1264, %v1249, %v1038
      %v1267 = vsel %vm1264, %v1250, %v1040
      %v1268 = vsel %vm1264, %v1251, %v1042
      %v1269 = vsel %vm1264, %v1252, %v1044
      %v1270 = vsel %vm1264, %v1253, %v1046
      %v1271 = vsel %vm1264, %v1254, %v1048
      %v1272 = vsel %vm1264, %v1255, %v1050
      %v1273 = vsel %vm1264, %v1256, %v1052
      %v1274 = vsel %vm1264, %v1257, %v1054
      %v1275 = vsel %vm1264, %v1258, %v1056
      %v1276 = vsel %vm1264, %v1259, %v1058
      %v1277 = vsel %vm1264, %v1260, %v1060
      %v1278 = vsel %vm1264, %v1261, %v1062
      %v1279 = vsel %vm1264, %v1262, %v1064
      %v1280 = vsel %vm1264, %v1263, %v1066
      %vm1281 = vcmask 457728
      %v1282 = vsel %vm1281, %v1265, %v1084
      %v1283 = vsel %vm1281, %v1266, %v1086
      %v1284 = vsel %vm1281, %v1267, %v1088
      %v1285 = vsel %vm1281, %v1268, %v1090
      %v1286 = vsel %vm1281, %v1269, %v1092
      %v1287 = vsel %vm1281, %v1270, %v1094
      %v1288 = vsel %vm1281, %v1271, %v1096
      %v1289 = vsel %vm1281, %v1272, %v1098
      %v1290 = vsel %vm1281, %v1273, %v1100
      %v1291 = vsel %vm1281, %v1274, %v1102
      %v1292 = vsel %vm1281, %v1275, %v1104
      %v1293 = vsel %vm1281, %v1276, %v1106
      %v1294 = vsel %vm1281, %v1277, %v1108
      %v1295 = vsel %vm1281, %v1278, %v1110
      %v1296 = vsel %vm1281, %v1279, %v1112
      %v1297 = vsel %vm1281, %v1280, %v1114
      %vm1298 = vcmask 523264
      %v1299 = vsel %vm1298, %v1282, %v1132
      %v1300 = vsel %vm1298, %v1283, %v1134
      %v1301 = vsel %vm1298, %v1284, %v1136
      %v1302 = vsel %vm1298, %v1285, %v1138
      %v1303 = vsel %vm1298, %v1286, %v1140
      %v1304 = vsel %vm1298, %v1287, %v1142
      %v1305 = vsel %vm1298, %v1288, %v1144
      %v1306 = vsel %vm1298, %v1289, %v1146
      %v1307 = vsel %vm1298, %v1290, %v1148
      %v1308 = vsel %vm1298, %v1291, %v1150
      %v1309 = vsel %vm1298, %v1292, %v1152
      %v1310 = vsel %vm1298, %v1293, %v1154
      %v1311 = vsel %vm1298, %v1294, %v1156
      %v1312 = vsel %vm1298, %v1295, %v1158
      %v1313 = vsel %vm1298, %v1296, %v1160
      %v1314 = vsel %vm1298, %v1297, %v1162
      %v1315 = vld [vmem:[%s5] sm:$0xff]
      %v1316 = vld [vmem:[%s5 + $0x8] sm:$0xff]
      %v1317 = vld [vmem:[%s5 + $0x10] sm:$0xff]
      %v1318 = vld [vmem:[%s5 + $0x18] sm:$0xff]
      %v1319 = vld [vmem:[%s5 + $0x20] sm:$0xff]
      %v1320 = vld [vmem:[%s5 + $0x28] sm:$0xff]
      %v1321 = vld [vmem:[%s5 + $0x30] sm:$0xff]
      %v1322 = vld [vmem:[%s5 + $0x38] sm:$0xff]
      %v1323 = vld [vmem:[%s5 + $0x40] sm:$0xff]
      %vm1324 = vcmask 588800
      %v1326 = vsel %vm1324, %v1299, 0
      %v1329 = vsel %vm1324, %v1300, 0
      %v1332 = vsel %vm1324, %v1301, 0
      %v1335 = vsel %vm1324, %v1302, 0
      %v1338 = vsel %vm1324, %v1303, 0
      %v1341 = vsel %vm1324, %v1304, 0
      %v1344 = vsel %vm1324, %v1305, 0
      %v1347 = vsel %vm1324, %v1306, 0
      %v1350 = vsel %vm1324, %v1307, 0
      %v1353 = vsel %vm1324, %v1308, 0
      %v1356 = vsel %vm1324, %v1309, 0
      %v1359 = vsel %vm1324, %v1310, 0
      %v1362 = vsel %vm1324, %v1311, 0
      %v1365 = vsel %vm1324, %v1312, 0
      %v1368 = vsel %vm1324, %v1313, 0
      %v1371 = vsel %vm1324, %v1314, 0
      %1373 = vmatprep.subr.mxu0 0.0
      %1374 = vmatpush1.msra.mxu0 %v1315
      %1375 = vmatprep.subr.mxu0 0.0
      %1376 = vmatpush1.msra.mxu0 %v1316
      %1377 = vmatprep.subr.mxu0 0.0
      %1378 = vmatpush1.msra.mxu0 %v1317
      %1379 = vmatprep.subr.mxu0 0.0
      %1380 = vmatpush1.msra.mxu0 %v1318
      %1381 = vmatprep.subr.mxu0 0.0
      %1382 = vmatpush1.msra.mxu0 %v1319
      %1383 = vmatprep.subr.mxu0 0.0
      %1384 = vmatpush1.msra.mxu0 %v1320
      %1385 = vmatprep.subr.mxu0 0.0
      %1386 = vmatpush1.msra.mxu0 %v1321
      %1387 = vmatprep.subr.mxu0 0.0
      %1388 = vmatpush1.msra.mxu0 %v1322
      %1389 = vmatprep.subr.mxu0 0.0
      %1390 = vmatpush1.msra.mxu0 %v1323
      %1391 = vmatprep.subr.mxu0 0.0
      %1392 = vmatpush1.msra.mxu0 0.0
      %1393 = vmatprep.subr.mxu0 0.0
      %1394 = vmatpush1.msra.mxu0 0.0
      %1395 = vmatprep.subr.mxu0 0.0
      %1396 = vmatpush1.msra.mxu0 0.0
      %1397 = vmatprep.subr.mxu0 0.0
      %1398 = vmatpush1.msra.mxu0 0.0
      %1399 = vmatprep.subr.mxu0 0.0
      %1400 = vmatpush1.msra.mxu0 0.0
      %1401 = vmatprep.subr.mxu0 0.0
      %1402 = vmatpush1.msra.mxu0 0.0
      %1403 = vmatprep.subr.mxu0 0.0
      %1404 = vmatpush1.msra.mxu0 0.0
      %1405 = vmatprep.subr.mxu0 0.0
      %1406 = vmatpush1.msra.mxu0 0.0
      %1407 = vmatprep.subr.mxu0 0.0
      %1408 = vmatpush1.msra.mxu0 0.0
      %1409 = vmatprep.subr.mxu0 0.0
      %1410 = vmatpush1.msra.mxu0 0.0
      %1411 = vmatprep.subr.mxu0 0.0
      %1412 = vmatpush1.msra.mxu0 0.0
      %1413 = vmatprep.subr.mxu0 0.0
      %1414 = vmatpush1.msra.mxu0 0.0
      %1415 = vmatprep.subr.mxu0 0.0
      %1416 = vmatpush1.msra.mxu0 0.0
      %1417 = vmatprep.subr.mxu0 0.0
      %1418 = vmatpush1.msra.mxu0 0.0
      %1419 = vmatprep.subr.mxu0 0.0
      %1420 = vmatpush1.msra.mxu0 0.0
      %1421 = vmatprep.subr.mxu0 0.0
      %1422 = vmatpush1.msra.mxu0 0.0
      %1423 = vmatprep.subr.mxu0 0.0
      %1424 = vmatpush1.msra.mxu0 0.0
      %1425 = vmatprep.subr.mxu0 0.0
      %1426 = vmatpush1.msra.mxu0 0.0
      %1427 = vmatprep.subr.mxu0 0.0
      %1428 = vmatpush1.msra.mxu0 0.0
      %1429 = vmatprep.subr.mxu0 0.0
      %1430 = vmatpush1.msra.mxu0 0.0
      %1431 = vmatprep.subr.mxu0 0.0
      %1432 = vmatpush1.msra.mxu0 0.0
      %1433 = vmatprep.subr.mxu0 0.0
      %1434 = vmatpush1.msra.mxu0 0.0
      %1435 = vmatprep.subr.mxu0 0.0
      %1436 = vmatpush1.msra.mxu0 0.0
      %1437 = vmatprep.mubr.f32.mxu0 0.0
      %1438 = vmatmul.mubr.f32.gmra.mrb[0].mxu0 %v1326
      %v1439 = vpop.f32.mrb[0].mxu0
      %v1440 = vadd.f32 0.0, %v1439
      %v1441 = vpop.f32.mrb[0].mxu0
      %1442 = vmatprep.mubr.f32.mxu0 0.0
      %1443 = vmatmul.mubr.f32.gmra.mrb[0].mxu0 %v1329
      %v1444 = vpop.f32.mrb[0].mxu0
      %v1445 = vadd.f32 0.0, %v1444
      %v1446 = vpop.f32.mrb[0].mxu0
      %1447 = vmatprep.mubr.f32.mxu0 0.0
      %1448 = vmatmul.mubr.f32.gmra.mrb[0].mxu0 %v1332
      %v1449 = vpop.f32.mrb[0].mxu0
      %v1450 = vadd.f32 0.0, %v1449
      %v1451 = vpop.f32.mrb[0].mxu0
      %1452 = vmatprep.mubr.f32.mxu0 0.0
      %1453 = vmatmul.mubr.f32.gmra.mrb[0].mxu0 %v1335
      %v1454 = vpop.f32.mrb[0].mxu0
      %v1455 = vadd.f32 0.0, %v1454
      %v1456 = vpop.f32.mrb[0].mxu0
      %1457 = vmatprep.mubr.f32.mxu0 0.0
      %1458 = vmatmul.mubr.f32.gmra.mrb[0].mxu0 %v1338
      %v1459 = vpop.f32.mrb[0].mxu0
      %v1460 = vadd.f32 0.0, %v1459
      %v1461 = vpop.f32.mrb[0].mxu0
      %1462 = vmatprep.mubr.f32.mxu0 0.0
      %1463 = vmatmul.mubr.f32.gmra.mrb[0].mxu0 %v1341
      %v1464 = vpop.f32.mrb[0].mxu0
      %v1465 = vadd.f32 0.0, %v1464
      %v1466 = vpop.f32.mrb[0].mxu0
      %1467 = vmatprep.mubr.f32.mxu0 0.0
      %1468 = vmatmul.mubr.f32.gmra.mrb[0].mxu0 %v1344
      %v1469 = vpop.f32.mrb[0].mxu0
      %v1470 = vadd.f32 0.0, %v1469
      %v1471 = vpop.f32.mrb[0].mxu0
      %1472 = vmatprep.mubr.f32.mxu0 0.0
      %1473 = vmatmul.mubr.f32.gmra.mrb[0].mxu0 %v1347
      %v1474 = vpop.f32.mrb[0].mxu0
      %v1475 = vadd.f32 0.0, %v1474
      %v1476 = vpop.f32.mrb[0].mxu0
      %1477 = vmatprep.mubr.f32.mxu0 0.0
      %1478 = vmatmul.mubr.f32.gmra.mrb[0].mxu0 %v1350
      %v1479 = vpop.f32.mrb[0].mxu0
      %v1480 = vadd.f32 0.0, %v1479
      %v1481 = vpop.f32.mrb[0].mxu0
      %1482 = vmatprep.mubr.f32.mxu0 0.0
      %1483 = vmatmul.mubr.f32.gmra.mrb[0].mxu0 %v1353
      %v1484 = vpop.f32.mrb[0].mxu0
      %v1485 = vadd.f32 0.0, %v1484
      %v1486 = vpop.f32.mrb[0].mxu0
      %1487 = vmatprep.mubr.f32.mxu0 0.0
      %1488 = vmatmul.mubr.f32.gmra.mrb[0].mxu0 %v1356
      %v1489 = vpop.f32.mrb[0].mxu0
      %v1490 = vadd.f32 0.0, %v1489
      %v1491 = vpop.f32.mrb[0].mxu0
      %1492 = vmatprep.mubr.f32.mxu0 0.0
      %1493 = vmatmul.mubr.f32.gmra.mrb[0].mxu0 %v1359
      %v1494 = vpop.f32.mrb[0].mxu0
      %v1495 = vadd.f32 0.0, %v1494
      %v1496 = vpop.f32.mrb[0].mxu0
      %1497 = vmatprep.mubr.f32.mxu0 0.0
      %1498 = vmatmul.mubr.f32.gmra.mrb[0].mxu0 %v1362
      %v1499 = vpop.f32.mrb[0].mxu0
      %v1500 = vadd.f32 0.0, %v1499
      %v1501 = vpop.f32.mrb[0].mxu0
      %1502 = vmatprep.mubr.f32.mxu0 0.0
      %1503 = vmatmul.mubr.f32.gmra.mrb[0].mxu0 %v1365
      %v1504 = vpop.f32.mrb[0].mxu0
      %v1505 = vadd.f32 0.0, %v1504
      %v1506 = vpop.f32.mrb[0].mxu0
      %1507 = vmatprep.mubr.f32.mxu0 0.0
      %1508 = vmatmul.mubr.f32.gmra.mrb[0].mxu0 %v1368
      %v1509 = vpop.f32.mrb[0].mxu0
      %v1510 = vadd.f32 0.0, %v1509
      %v1511 = vpop.f32.mrb[0].mxu0
      %1512 = vmatprep.mubr.f32.mxu0 0.0
      %1513 = vmatmul.mubr.f32.gmra.mrb[0].mxu0 %v1371
      %v1514 = vpop.f32.mrb[0].mxu0
      %v1515 = vadd.f32 0.0, %v1514
      %v1516 = vpop.f32.mrb[0].mxu0
      %1517 = vdwg.mxu0
      %1518 = vst.msk [vmem:[%s458] sm:$0xff] %vm1179, %v1440
      %1519 = vst.msk [vmem:[%s458 + $0x8] sm:$0xff] %vm1179, %v1445
      %1520 = vst.msk [vmem:[%s458 + $0x10] sm:$0xff] %vm1179, %v1450
      %1521 = vst.msk [vmem:[%s458 + $0x18] sm:$0xff] %vm1179, %v1455
      %1522 = vst.msk [vmem:[%s458 + $0x20] sm:$0xff] %vm1179, %v1460
      %1523 = vst.msk [vmem:[%s458 + $0x28] sm:$0xff] %vm1179, %v1465
      %1524 = vst.msk [vmem:[%s458 + $0x30] sm:$0xff] %vm1179, %v1470
      %1525 = vst.msk [vmem:[%s458 + $0x38] sm:$0xff] %vm1179, %v1475
      %1526 = vst.msk [vmem:[%s458 + $0x40] sm:$0xff] %vm1179, %v1480
      %1527 = vst.msk [vmem:[%s458 + $0x48] sm:$0xff] %vm1179, %v1485
      %1528 = vst.msk [vmem:[%s458 + $0x50] sm:$0xff] %vm1179, %v1490
      %1529 = vst.msk [vmem:[%s458 + $0x58] sm:$0xff] %vm1179, %v1495
      %1530 = vst.msk [vmem:[%s458 + $0x60] sm:$0xff] %vm1179, %v1500
      %1531 = vst.msk [vmem:[%s458 + $0x68] sm:$0xff] %vm1179, %v1505
      %1532 = vst.msk [vmem:[%s458 + $0x70] sm:$0xff] %vm1179, %v1510
      %1533 = vst.msk [vmem:[%s458 + $0x78] sm:$0xff] %vm1179, %v1515
      %v1534 = vsel %vm1179, %v1440, 0.0
      %v1535 = vsel %vm1179, %v1445, 0.0
      %v1536 = vadd.f32 %v1534, %v1535
      %v1537 = vsel %vm1179, %v1450, 0.0
      %v1538 = vadd.f32 %v1536, %v1537
      %v1539 = vsel %vm1179, %v1455, 0.0
      %v1540 = vadd.f32 %v1538, %v1539
      %v1541 = vsel %vm1179, %v1460, 0.0
      %v1542 = vadd.f32 %v1540, %v1541
      %v1543 = vsel %vm1179, %v1465, 0.0
      %v1544 = vadd.f32 %v1542, %v1543
      %v1545 = vsel %vm1179, %v1470, 0.0
      %v1546 = vadd.f32 %v1544, %v1545
      %v1547 = vsel %vm1179, %v1475, 0.0
      %v1548 = vadd.f32 %v1546, %v1547
      %v1549 = vsel %vm1179, %v1480, 0.0
      %v1550 = vadd.f32 %v1548, %v1549
      %v1551 = vsel %vm1179, %v1485, 0.0
      %v1552 = vadd.f32 %v1550, %v1551
      %v1553 = vsel %vm1179, %v1490, 0.0
      %v1554 = vadd.f32 %v1552, %v1553
      %v1555 = vsel %vm1179, %v1495, 0.0
      %v1556 = vadd.f32 %v1554, %v1555
      %v1557 = vsel %vm1179, %v1500, 0.0
      %v1558 = vadd.f32 %v1556, %v1557
      %v1559 = vsel %vm1179, %v1505, 0.0
      %v1560 = vadd.f32 %v1558, %v1559
      %v1561 = vsel %vm1179, %v1510, 0.0
      %v1562 = vadd.f32 %v1560, %v1561
      %v1563 = vsel %vm1179, %v1515, 0.0
      %v1564 = vadd.f32 %v1562, %v1563
      %v1565 = vrot.slane %v1564, 4
      %v1566 = vadd.f32 %v1564, %v1565
      %v1567 = vrot.slane %v1566, 2
      %v1568 = vadd.f32 %v1566, %v1567
      %v1569 = vrot.slane %v1568, 1
      %v1570 = vadd.f32 %v1568, %v1569
      %v1571 = vmul.f32 %v1440, %v1440
      %v1572 = vmul.f32 %v1445, %v1445
      %v1573 = vmul.f32 %v1450, %v1450
      %v1574 = vmul.f32 %v1455, %v1455
      %v1575 = vmul.f32 %v1460, %v1460
      %v1576 = vmul.f32 %v1465, %v1465
      %v1577 = vmul.f32 %v1470, %v1470
      %v1578 = vmul.f32 %v1475, %v1475
      %v1579 = vmul.f32 %v1480, %v1480
      %v1580 = vmul.f32 %v1485, %v1485
      %v1581 = vmul.f32 %v1490, %v1490
      %v1582 = vmul.f32 %v1495, %v1495
      %v1583 = vmul.f32 %v1500, %v1500
      %v1584 = vmul.f32 %v1505, %v1505
      %v1585 = vmul.f32 %v1510, %v1510
      %v1586 = vmul.f32 %v1515, %v1515
      %v1587 = vsel %vm1179, %v1571, 0.0
      %v1588 = vsel %vm1179, %v1572, 0.0
      %v1589 = vadd.f32 %v1587, %v1588
      %v1590 = vsel %vm1179, %v1573, 0.0
      %v1591 = vadd.f32 %v1589, %v1590
      %v1592 = vsel %vm1179, %v1574, 0.0
      %v1593 = vadd.f32 %v1591, %v1592
      %v1594 = vsel %vm1179, %v1575, 0.0
      %v1595 = vadd.f32 %v1593, %v1594
      %v1596 = vsel %vm1179, %v1576, 0.0
      %v1597 = vadd.f32 %v1595, %v1596
      %v1598 = vsel %vm1179, %v1577, 0.0
      %v1599 = vadd.f32 %v1597, %v1598
      %v1600 = vsel %vm1179, %v1578, 0.0
      %v1601 = vadd.f32 %v1599, %v1600
      %v1602 = vsel %vm1179, %v1579, 0.0
      %v1603 = vadd.f32 %v1601, %v1602
      %v1604 = vsel %vm1179, %v1580, 0.0
      %v1605 = vadd.f32 %v1603, %v1604
      %v1606 = vsel %vm1179, %v1581, 0.0
      %v1607 = vadd.f32 %v1605, %v1606
      %v1608 = vsel %vm1179, %v1582, 0.0
      %v1609 = vadd.f32 %v1607, %v1608
      %v1610 = vsel %vm1179, %v1583, 0.0
      %v1611 = vadd.f32 %v1609, %v1610
      %v1612 = vsel %vm1179, %v1584, 0.0
      %v1613 = vadd.f32 %v1611, %v1612
      %v1614 = vsel %vm1179, %v1585, 0.0
      %v1615 = vadd.f32 %v1613, %v1614
      %v1616 = vsel %vm1179, %v1586, 0.0
      %v1617 = vadd.f32 %v1615, %v1616
      %v1618 = vrot.slane %v1617, 4
      %v1619 = vadd.f32 %v1617, %v1618
      %v1620 = vrot.slane %v1619, 2
      %v1621 = vadd.f32 %v1619, %v1620
      %v1622 = vrot.slane %v1621, 1
      %v1623 = vadd.f32 %v1621, %v1622
      %v1624 = vsel %vm594, %v1570, %v1623
      %vm1625 = vcmask 58368
      %1626 = vst.msk [vmem:[%s467] sm:$0x3] %vm1625, %v1624
      %s1627 = smul.u32 8, %s24
      %p1628 = scmp.lt.s32.totalorder %s23, 1
      %s1629 = scalar_select %p1628, %s23, 1
      %p1630 = scmp.lt.s32.totalorder %s1627, 15
      %s1631 = scalar_select %p1630, %s1627, 15
      %s1632 = smul.addr %s1631, 2
      %s1633 = smul.addr %s1629, 32
      %s1634 = sadd.s32 %s1632, %s1633
      %s1635 = smul.addr %s1634, 8
      %s1636 = scalar_lea.vmem %s6, %s1635
      %p1637 = scmp.lt.s32.totalorder %s23, 1
      %s1638 = scalar_select %p1637, %s23, 1
      %p1639 = scmp.lt.s32.totalorder %s24, 1
      %s1640 = scalar_select %p1639, %s24, 1
      %s1641 = smul.addr %s1638, 2
      %s1642 = sadd.s32 %s1640, %s1641
      %s1643 = smul.addr %s1642, 2
      %s1644 = scalar_lea.vmem %s7, %s1643
      // Predicated region
      $region45: #{double_conv.4} parent=43 // pred_check
        %p1645 = pneg %p214
      $region46: #{double_conv.4} parent=43 // pred_check_branch
        %1647 = sbr.rel (%p1645) target = $region48
      $region47: #{double_conv.4} parent=43 // pred_region
        %s1648 = smul.u32 8, %s24
      $region48: #{double_conv.4} parent=43 // pred_fallthru
        _
      // Predicated region
      $region49: #{double_conv.4} parent=43 // pred_check
        %p1649 = pneg %p242
      $region50: #{double_conv.4} parent=43 // pred_check_branch
        %1651 = sbr.rel (%p1649) target = $region52
      $region51: #{double_conv.4} parent=43 // pred_region
        _
      $region52: #{double_conv.4} parent=43 // pred_fallthru
        _
    $region44: #{double_conv.4} parent=5 // pred_fallthru
      _
    %p1652 = scmp.le.s32.totalorder 2, %s14
    // Predicated region
    $region53: #{double_conv.4} parent=5 // pred_check
      %p1653 = pneg %p1652
    $region54: #{double_conv.4} parent=5 // pred_check_branch
      %1655 = sbr.rel (%p1653) target = $region56
    $region55: #{double_conv.4} parent=5 // pred_region
      %s1656 = ssub.s32 %s14, 2
      // Predicated region
      $region57: #{double_conv.4} parent=55 // pred_check
        %p1657 = pneg %p220
      $region58: #{double_conv.4} parent=55 // pred_check_branch
        %1659 = sbr.rel (%p1657) target = $region60
      $region59: #{double_conv.4} parent=55 // pred_region
        %s1660 = smul.u32 8, %s26
        %p1661 = scmp.lt.s32.totalorder %s25, 1
        %s1662 = scalar_select %p1661, %s25, 1
        %p1663 = scmp.lt.s32.totalorder %s1660, 15
        %s1664 = scalar_select %p1663, %s1660, 15
        %s1665 = smul.addr %s1664, 2
        %s1666 = smul.addr %s1662, 32
        %s1667 = sadd.s32 %s1665, %s1666
        %s1668 = smul.addr %s1667, 8
        %s1669 = scalar_lea.vmem %s6, %s1668
      $region60: #{double_conv.4} parent=55 // pred_fallthru
        _
      // Predicated region
      $region61: #{double_conv.4} parent=55 // pred_check
        %p1670 = pneg %p248
      $region62: #{double_conv.4} parent=55 // pred_check_branch
        %1672 = sbr.rel (%p1670) target = $region64
      $region63: #{double_conv.4} parent=55 // pred_region
        %p1673 = scmp.lt.s32.totalorder %s25, 1
        %s1674 = scalar_select %p1673, %s25, 1
        %p1675 = scmp.lt.s32.totalorder %s26, 1
        %s1676 = scalar_select %p1675, %s26, 1
        %s1677 = smul.addr %s1674, 2
        %s1678 = sadd.s32 %s1676, %s1677
        %s1679 = smul.addr %s1678, 2
        %s1680 = scalar_lea.vmem %s7, %s1679
      $region64: #{double_conv.4} parent=55 // pred_fallthru
        _
    $region56: #{double_conv.4} parent=5 // pred_fallthru
      _
  $region6: #{double_conv.4} parent=0 // loop_footer
    %s18 = sadd.s32 1, %s14
  $region7: #{double_conv.4} parent=0 // loop_footer_branch
    %13 = sbr.rel target = $region3
  $region8: #{double_conv.4} parent=0 // loop_exit
    _

</llo_original>
